<compile_context>
chip_gen: v7x
topology: tpu7x:2x2x1
jax: 0.10.0
libtpu: 0.0.40
codegen_flags: <defaults>
</compile_context>

<pallas_src>
import functools

import numpy as np
import jax
import jax.numpy as jnp
from jax import lax
from jax.experimental import pallas as pl
from jax.experimental.pallas import tpu as pltpu


# ---------------------------------------------------------------- helpers ---
def _vmem_limit_bytes():
    """Scoped-VMEM budget derived from the chip generation (v7x: 64 MiB/TC)."""
    cap = 128 * 1024 * 1024
    try:
        cap = int(pltpu.get_tpu_info().vmem_capacity_bytes)
    except Exception:
        pass
    return int(min(max(cap // 2, 32 * 1024 * 1024), 96 * 1024 * 1024))


def _mm(a, b):  # a @ b, f32 accumulation on the MXU
    return lax.dot_general(a, b, (((1,), (0,)), ((), ())),
                           preferred_element_type=jnp.float32)


def _mm_nt(a, b):  # a @ b.T, f32 accumulation on the MXU
    return lax.dot_general(a, b, (((1,), (1,)), ((), ())),
                           preferred_element_type=jnp.float32)


def _softmax_last(x):
    m = jnp.max(x, axis=-1, keepdims=True)
    e = jnp.exp(x - m)
    return e * pl.reciprocal(jnp.sum(e, axis=-1, keepdims=True), approx=True)


def _bilinear_resize_matrix(out_size, in_size):
    """1-D bilinear interpolation matrix, PyTorch align_corners=False semantics."""
    m = np.zeros((out_size, in_size), dtype=np.float32)
    scale = in_size / out_size
    for o in range(out_size):
        src = (o + 0.5) * scale - 0.5
        if src < 0.0:
            src = 0.0
        i0 = min(int(np.floor(src)), in_size - 1)
        lam = src - i0
        i1 = min(i0 + 1, in_size - 1)
        m[o, i0] += 1.0 - lam
        m[o, i1] += lam
    return m


def _rfft_matrices(t, keep):
    """Truncated rfft as real matmuls: real = cos @ x, imag = (-sin) @ x."""
    tt = np.arange(t)
    ff = np.arange(keep)
    ang = 2.0 * np.pi * np.outer(ff, tt) / t
    return np.cos(ang).astype(np.float32), (-np.sin(ang)).astype(np.float32)


def _pick_row_tile(m, cap=512):
    """Largest divisor of m <= cap, preferring bf16-friendly multiples of 16."""
    if m <= cap:
        return m
    divs = [d for d in range(1, cap + 1) if m % d == 0]
    for align in (16, 8, 1):
        cand = [d for d in divs if d % align == 0]
        if cand:
            return max(cand)
    return m


# ------------------------------------------------------- linear kernels -----
def _linear_kernel(x_ref, w_ref, o_ref):
    o_ref[...] = _mm(x_ref[...], w_ref[...]).astype(o_ref.dtype)


def _linear_bias_kernel(x_ref, w_ref, b_ref, o_ref):
    o_ref[...] = (_mm(x_ref[...], w_ref[...]) + b_ref[...]).astype(o_ref.dtype)


def linear_pallas(x2d, w, b=None, *, out_dtype=jnp.float32, tile_m_cap=512):
    m, kdim = x2d.shape
    n = w.shape[1]
    tile_m = _pick_row_tile(m, tile_m_cap)
    grid = (m // tile_m,)
    # NOTE: when n < 128 (small C / dim_out, as in the test shapes) the output
    # row-tile stores are masked partial stores; pad the feature dim to a
    # multiple of 128 upstream if this linear ever becomes the bottleneck.
    x_spec = pl.BlockSpec((tile_m, kdim), lambda i: (i, 0))
    w_spec = pl.BlockSpec((kdim, n), lambda i: (0, 0))
    o_spec = pl.BlockSpec((tile_m, n), lambda i: (i, 0))
    cp = pltpu.CompilerParams(dimension_semantics=("parallel",),
                              vmem_limit_bytes=_vmem_limit_bytes())
    out_shape = jax.ShapeDtypeStruct((m, n), out_dtype)
    if b is None:
        return pl.pallas_call(_linear_kernel, out_shape=out_shape, grid=grid,
                              in_specs=[x_spec, w_spec], out_specs=o_spec,
                              compiler_params=cp)(x2d, w)
    b_spec = pl.BlockSpec((1, n), lambda i: (0, 0))
    return pl.pallas_call(_linear_bias_kernel, out_shape=out_shape, grid=grid,
                          in_specs=[x_spec, w_spec, b_spec], out_specs=o_spec,
                          compiler_params=cp)(x2d, w, b.reshape(1, n))


# -------------------------------------------------- fused attention kernel --
def _attn_kernel(coef_ref, qkv_ref, amap_ref, cs_ref, rr_ref, rca_ref, o_ref,
                 *, heads, ch, keep, keep8):
    c_dim = heads * ch
    b_t = coef_ref[0]          # weight * (1 - gate): time-attention coefficient
    c_m = coef_ref[1]          # (1 - weight)       : cross att_map coefficient

    cs = cs_ref[...]           # (2*keep8, T)  stacked [cos; 0; -sin; 0]   (bf16)
    rr = rr_ref[...]           # (T, keep8)    row resize, zero-pad folded (bf16)
    rca = rca_ref[...]         # (T, keep8)    col resize * (weight*gate)  (bf16)

    # Batched truncated rfft across ALL heads: one full-lane-width MXU pass per
    # q / k instead of `heads` narrow ones.  keep8 is a sublane multiple, so the
    # real/imag split below is a tile-aligned (free) slice.
    qf = _mm(cs, qkv_ref[:, 0:c_dim]).astype(jnp.bfloat16)          # (2*keep8, C)
    kf = _mm(cs, qkv_ref[:, c_dim:2 * c_dim]).astype(jnp.bfloat16)  # (2*keep8, C)

    if keep != keep8:
        # additive -inf bias for the zero-padded frequency columns (hoisted;
        # padded score ROWS become junk but are killed by rr's zero columns)
        col = lax.broadcasted_iota(jnp.int32, (keep8, keep8), 1)
        fbias = jnp.where(col < keep, 0.0, -1e30).astype(jnp.float32)
    else:
        fbias = None

    # TODO(synk): for long T, tile the time path over the key axis (online
    # softmax) and switch this static unroll to lax.fori_loop so the per-head
    # (T, T) f32 temporaries do not stay live across the whole unroll.
    for h in range(heads):
        lo, hi = h * ch, (h + 1) * ch
        q = qkv_ref[:, lo:hi]                                  # (T, ch) bf16
        k = qkv_ref[:, c_dim + lo:c_dim + hi]                  # (T, ch) bf16
        v = qkv_ref[:, 2 * c_dim + lo:2 * c_dim + hi]          # (T, ch) bf16

        # ---- time-domain attention (qk scale already folded into q) ----
        p_time = _softmax_last(_mm_nt(q, k))                   # (T, T) f32

        # ---- frequency-domain attention, real part only (the reference also
        #      softmaxes the imaginary part but discards it before the resize)
        s_freq = (_mm_nt(qf[:keep8, lo:hi], kf[:keep8, lo:hi]) +
                  _mm_nt(qf[keep8:, lo:hi], kf[keep8:, lo:hi]))    # (keep8, keep8)
        if fbias is not None:
            s_freq = s_freq + fbias
        p_freq = _softmax_last(s_freq).astype(jnp.bfloat16)
        m1 = _mm(rr, p_freq).astype(jnp.bfloat16)              # (T, keep8)
        attn_freq = _mm_nt(m1, rca)                            # (T, T) f32 (already * w*gate)

        # ---- blend in f32 (portable to v5e); dropout layers have p=0 -> identity
        attn = attn_freq + b_t * p_time + c_m * amap_ref[h].astype(jnp.float32)
        o_ref[:, lo:hi] = _mm(attn.astype(jnp.bfloat16), v).astype(o_ref.dtype)


# --------------------------------------------------------------- wrapper ----
def frequency_aware_sum_attention(x, att_map, weight, params, *,
                                  num_heads=8, freq_ratio=0.5, qk_scale=None):
    B, T, J, C = x.shape
    H = num_heads
    ch = C // H
    scale = float(qk_scale) if qk_scale is not None else ch ** (-0.5)

    # Fold the qk scale into the q columns of the qkv weight.  The reference
    # multiplies BOTH the time and frequency score matrices by `scale`, and
    # DFT(scale*q) = scale*DFT(q), so this fold is exact for both paths.
    w_qkv = params["w_qkv"].astype(jnp.float32)
    col_scale = jnp.concatenate([jnp.full((C,), scale, jnp.float32),
                                 jnp.ones((2 * C,), jnp.float32)])
    w_qkv = (w_qkv * col_scale[None, :]).astype(jnp.bfloat16)

    # Single layout change up front: (B,T,J,C) -> (B,J,T,C).  The qkv / proj
    # linears are row-order agnostic, so everything downstream runs in
    # lane-dense (T, C) layout and only the final output is transposed back.
    # TODO(synk): fold even this transpose into the qkv linear's BlockSpec.
    x_t = jnp.transpose(x, (0, 2, 1, 3)).reshape(B * J * T, C).astype(jnp.bfloat16)
    qkv = linear_pallas(x_t, w_qkv, out_dtype=jnp.bfloat16)       # (B*J*T, 3C)
    qkv = qkv.reshape(B, J, T, 3 * C)

    # ---- static frequency / interpolation matrices (host-built) ------------
    f_orig = T // 2 + 1
    keep = max(1, int(f_orig * freq_ratio))
    keep8 = -(-keep // 8) * 8          # pad to a sublane multiple (aligned splits)
    cr, ci = _rfft_matrices(T, keep)
    cs_np = np.zeros((2 * keep8, T), np.float32)
    cs_np[:keep] = cr
    cs_np[keep8:keep8 + keep] = ci
    # Row axis: reference zero-pads the (keep,keep) softmax to f_orig rows before
    # the bilinear resize -> build the row matrix at f_orig and keep its first
    # `keep` columns.  Column axis: resized straight from `keep` (no padding).
    rr_np = np.zeros((T, keep8), np.float32)
    rr_np[:, :keep] = _bilinear_resize_matrix(T, f_orig)[:, :keep]
    rc_np = np.zeros((T, keep8), np.float32)
    rc_np[:, :keep] = _bilinear_resize_matrix(T, keep)

    gate = jax.nn.sigmoid(params["freq_gate"].astype(jnp.float32)).reshape(())
    wgt = jnp.asarray(weight, jnp.float32).reshape(())
    # attn = (w*g)*attn_freq + (w*(1-g))*attn_time + (1-w)*att_map;
    # the first coefficient is folded into the tiny column-resize matrix.
    cs = jnp.asarray(cs_np, jnp.bfloat16)
    rr = jnp.asarray(rr_np, jnp.bfloat16)
    rca = (jnp.asarray(rc_np) * (wgt * gate)).astype(jnp.bfloat16)
    coef = jnp.stack([wgt * (1.0 - gate), 1.0 - wgt])              # (b, c)

    out = pl.pallas_call(
        functools.partial(_attn_kernel, heads=H, ch=ch, keep=keep, keep8=keep8),
        out_shape=jax.ShapeDtypeStruct((B, J, T, C), jnp.bfloat16),
        grid=(B, J),
        in_specs=[
            pl.BlockSpec((2,), lambda b, j: (0,),
                         memory_space=pltpu.MemorySpace.SMEM),      # blend coeffs
            pl.BlockSpec((None, None, T, 3 * C), lambda b, j: (b, j, 0, 0)),   # qkv
            pl.BlockSpec((None, H, None, T, T), lambda b, j: (b, 0, j, 0, 0)), # att_map
            pl.BlockSpec((2 * keep8, T), lambda b, j: (0, 0)),      # stacked DFT
            pl.BlockSpec((T, keep8), lambda b, j: (0, 0)),          # row resize
            pl.BlockSpec((T, keep8), lambda b, j: (0, 0)),          # col resize * a
        ],
        out_specs=pl.BlockSpec((None, None, T, C), lambda b, j: (b, j, 0, 0)),
        compiler_params=pltpu.CompilerParams(
            dimension_semantics=("parallel", "parallel"),
            vmem_limit_bytes=_vmem_limit_bytes()),
    )(coef, qkv, att_map, cs, rr, rca)                             # (B, J, T, C)

    # output projection (tiled Pallas matmul + bias); proj_drop p=0 -> identity
    y = linear_pallas(out.reshape(B * J * T, C),
                      params["w_proj"].astype(jnp.bfloat16),
                      params["b_proj"].astype(jnp.float32),
                      out_dtype=jnp.float32)                       # (B*J*T, dim_out)
    y = jnp.transpose(y.reshape(B, J, T, -1), (0, 2, 1, 3))        # (B, T, J, dim_out)
    return y


# ------------------------------------------------------------------ main ----
if __name__ == "__main__":
    B, T, J, C = 2, 8, 4, 32
    H = 8
    dim_out = 32

    key = jax.random.PRNGKey(0)
    k1, k2, k3, k4, k5 = jax.random.split(key, 5)

    params = {
        "w_qkv": 0.05 * jax.random.normal(k1, (C, 3 * C), jnp.float32),
        "w_proj": 0.05 * jax.random.normal(k2, (C, dim_out), jnp.float32),
        "b_proj": 0.01 * jax.random.normal(k3, (dim_out,), jnp.float32),
        "freq_gate": jnp.ones((1,), jnp.float32),
    }

    x = jax.random.normal(k4, (B, T, J, C), jnp.float32)
    att_map = jax.nn.softmax(
        jax.random.normal(k5, (B, H, J, T, T), jnp.float32), axis=-1)
    weight = 0.7  # scalar blending weight between self-attn and cross att_map

    fn = jax.jit(functools.partial(frequency_aware_sum_attention,
                                   num_heads=H, freq_ratio=0.5))
    y = fn(x, att_map, weight, params)
    y = jax.block_until_ready(y)
    assert y.shape == (B, T, J, dim_out)
    assert jnp.all(jnp.isfinite(y))
    print("KERNEL_OK")
</pallas_src>

<mosaic_0001>
module attributes {stable_mosaic.version = 11 : i64} {
  func.func @_linear_kernel(%arg0: i32, %arg1: memref<64x32xbf16, #tpu.memory_space<vmem>>, %arg2: memref<32x96xbf16, #tpu.memory_space<vmem>>, %arg3: memref<64x96xbf16, #tpu.memory_space<vmem>>) attributes {dimension_semantics = [#tpu.dimension_semantics<parallel>], iteration_bounds = array<i64: 1>, scalar_prefetch = 0 : i64, scratch_operands = 0 : i64, tpu.core_type = #tpu.core_type<tc>, window_params = [{transform_indices = @transform_0, window_bounds = array<i64: 64, 32>}, {pipeline_mode = #tpu.pipeline_mode<synchronous>, transform_indices = @transform_1, window_bounds = array<i64: 32, 96>}, {transform_indices = @transform_2, window_bounds = array<i64: 64, 96>}]} {
    %c0 = arith.constant 0 : index
    %c0_0 = arith.constant 0 : index
    %0 = vector.load %arg1[%c0, %c0_0] : memref<64x32xbf16, #tpu.memory_space<vmem>>, vector<64x32xbf16>
    %c0_1 = arith.constant 0 : index
    %c0_2 = arith.constant 0 : index
    %1 = vector.load %arg2[%c0_1, %c0_2] : memref<32x96xbf16, #tpu.memory_space<vmem>>, vector<32x96xbf16>
    %cst = arith.constant dense<0.000000e+00> : vector<64x96xf32>
    %2 = tpu.matmul %0, %1, %cst {dimension_numbers = #tpu.dot_dimension_numbers<[1], [0], [0], [1], [0, 0, 1, 1], [], []>} : vector<64x32xbf16>, vector<32x96xbf16>, vector<64x96xf32> -> vector<64x96xf32>
    %3 = arith.truncf %2 : vector<64x96xf32> to vector<64x96xbf16>
    %c0_3 = arith.constant 0 : index
    %c0_4 = arith.constant 0 : index
    %4 = vector.load %arg3[%c0_3, %c0_4] : memref<64x96xbf16, #tpu.memory_space<vmem>>, vector<64x96xbf16>
    tpu.vector_store %arg3[%c0_3, %c0_4], %3 {strides = array<i32>} : memref<64x96xbf16, #tpu.memory_space<vmem>>, vector<64x96xbf16>,
    return
  }
  func.func @transform_0(%arg0: i32) -> (i32, i32) {
    %c0_i32 = arith.constant 0 : i32
    %c0_i32_0 = arith.constant 0 : i32
    return %arg0, %c0_i32 : i32, i32
  }
  func.func @transform_1(%arg0: i32) -> (i32, i32) {
    %c0_i32 = arith.constant 0 : i32
    %c0_i32_0 = arith.constant 0 : i32
    %c0_i32_1 = arith.constant 0 : i32
    return %c0_i32, %c0_i32_0 : i32, i32
  }
  func.func @transform_2(%arg0: i32) -> (i32, i32) {
    %c0_i32 = arith.constant 0 : i32
    %c0_i32_0 = arith.constant 0 : i32
    return %arg0, %c0_i32 : i32, i32
  }
}

module attributes {stable_mosaic.version = 11 : i64} {
  func.func @_linear_bias_kernel(%arg0: i32, %arg1: memref<64x32xbf16, #tpu.memory_space<vmem>>, %arg2: memref<32x32xbf16, #tpu.memory_space<vmem>>, %arg3: memref<1x32xf32, #tpu.memory_space<vmem>>, %arg4: memref<64x32xf32, #tpu.memory_space<vmem>>) attributes {dimension_semantics = [#tpu.dimension_semantics<parallel>], iteration_bounds = array<i64: 1>, scalar_prefetch = 0 : i64, scratch_operands = 0 : i64, tpu.core_type = #tpu.core_type<tc>, window_params = [{transform_indices = @transform_0, window_bounds = array<i64: 64, 32>}, {pipeline_mode = #tpu.pipeline_mode<synchronous>, transform_indices = @transform_1, window_bounds = array<i64: 32, 32>}, {pipeline_mode = #tpu.pipeline_mode<synchronous>, transform_indices = @transform_2, window_bounds = array<i64: 1, 32>}, {transform_indices = @transform_3, window_bounds = array<i64: 64, 32>}]} {
    %c0 = arith.constant 0 : index
    %c0_0 = arith.constant 0 : index
    %0 = vector.load %arg1[%c0, %c0_0] : memref<64x32xbf16, #tpu.memory_space<vmem>>, vector<64x32xbf16>
    %c0_1 = arith.constant 0 : index
    %c0_2 = arith.constant 0 : index
    %1 = vector.load %arg2[%c0_1, %c0_2] : memref<32x32xbf16, #tpu.memory_space<vmem>>, vector<32x32xbf16>
    %cst = arith.constant dense<0.000000e+00> : vector<64x32xf32>
    %2 = tpu.matmul %0, %1, %cst {dimension_numbers = #tpu.dot_dimension_numbers<[1], [0], [0], [1], [0, 0, 1, 1], [], []>} : vector<64x32xbf16>, vector<32x32xbf16>, vector<64x32xf32> -> vector<64x32xf32>
    %c0_3 = arith.constant 0 : index
    %c0_4 = arith.constant 0 : index
    %3 = vector.load %arg3[%c0_3, %c0_4] : memref<1x32xf32, #tpu.memory_space<vmem>>, vector<1x32xf32>
    %4 = vector.broadcast %3 : vector<1x32xf32> to vector<64x32xf32>
    %5 = arith.addf %2, %4 : vector<64x32xf32>
    %c0_5 = arith.constant 0 : index
    %c0_6 = arith.constant 0 : index
    %6 = vector.load %arg4[%c0_5, %c0_6] : memref<64x32xf32, #tpu.memory_space<vmem>>, vector<64x32xf32>
    tpu.vector_store %arg4[%c0_5, %c0_6], %5 {strides = array<i32>} : memref<64x32xf32, #tpu.memory_space<vmem>>, vector<64x32xf32>,
    return
  }
  func.func @transform_0(%arg0: i32) -> (i32, i32) {
    %c0_i32 = arith.constant 0 : i32
    %c0_i32_0 = arith.constant 0 : i32
    return %arg0, %c0_i32 : i32, i32
  }
  func.func @transform_1(%arg0: i32) -> (i32, i32) {
    %c0_i32 = arith.constant 0 : i32
    %c0_i32_0 = arith.constant 0 : i32
    %c0_i32_1 = arith.constant 0 : i32
    return %c0_i32, %c0_i32_0 : i32, i32
  }
  func.func @transform_2(%arg0: i32) -> (i32, i32) {
    %c0_i32 = arith.constant 0 : i32
    %c0_i32_0 = arith.constant 0 : i32
    %c0_i32_1 = arith.constant 0 : i32
    return %c0_i32, %c0_i32_0 : i32, i32
  }
  func.func @transform_3(%arg0: i32) -> (i32, i32) {
    %c0_i32 = arith.constant 0 : i32
    %c0_i32_0 = arith.constant 0 : i32
    return %arg0, %c0_i32 : i32, i32
  }
}

module attributes {stable_mosaic.version = 11 : i64} {
  func.func @_attn_kernel(%arg0: i32, %arg1: i32, %arg2: memref<2xf32, #tpu.memory_space<smem>>, %arg3: memref<1x1x8x96xbf16, #tpu.memory_space<vmem>>, %arg4: memref<1x8x1x8x8xf32, #tpu.memory_space<vmem>>, %arg5: memref<16x8xbf16, #tpu.memory_space<vmem>>, %arg6: memref<8x8xbf16, #tpu.memory_space<vmem>>, %arg7: memref<8x8xbf16, #tpu.memory_space<vmem>>, %arg8: memref<1x1x8x32xbf16, #tpu.memory_space<vmem>>) attributes {dimension_semantics = [#tpu.dimension_semantics<parallel>, #tpu.dimension_semantics<parallel>], iteration_bounds = array<i64: 2, 4>, scalar_prefetch = 0 : i64, scratch_operands = 0 : i64, tpu.core_type = #tpu.core_type<tc>, window_params = [{transform_indices = @transform_0, window_bounds = array<i64: 2>}, {transform_indices = @transform_1, window_bounds = array<i64: 1, 1, 8, 96>}, {transform_indices = @transform_2, window_bounds = array<i64: 1, 8, 1, 8, 8>}, {pipeline_mode = #tpu.pipeline_mode<synchronous>, transform_indices = @transform_3, window_bounds = array<i64: 16, 8>}, {pipeline_mode = #tpu.pipeline_mode<synchronous>, transform_indices = @transform_4, window_bounds = array<i64: 8, 8>}, {pipeline_mode = #tpu.pipeline_mode<synchronous>, transform_indices = @transform_5, window_bounds = array<i64: 8, 8>}, {transform_indices = @transform_6, window_bounds = array<i64: 1, 1, 8, 32>}]} {
    %c0 = arith.constant 0 : index
    %0 = memref.load %arg2[%c0] : memref<2xf32, #tpu.memory_space<smem>>
    %c1 = arith.constant 1 : index
    %1 = memref.load %arg2[%c1] : memref<2xf32, #tpu.memory_space<smem>>
    %c0_0 = arith.constant 0 : index
    %c0_1 = arith.constant 0 : index
    %2 = vector.load %arg5[%c0_0, %c0_1] : memref<16x8xbf16, #tpu.memory_space<vmem>>, vector<16x8xbf16>
    %c0_2 = arith.constant 0 : index
    %c0_3 = arith.constant 0 : index
    %3 = vector.load %arg6[%c0_2, %c0_3] : memref<8x8xbf16, #tpu.memory_space<vmem>>, vector<8x8xbf16>
    %c0_4 = arith.constant 0 : index
    %c0_5 = arith.constant 0 : index
    %4 = vector.load %arg7[%c0_4, %c0_5] : memref<8x8xbf16, #tpu.memory_space<vmem>>, vector<8x8xbf16>
    %c0_6 = arith.constant 0 : index
    %c0_7 = arith.constant 0 : index
    %c0_8 = arith.constant 0 : index
    %c0_9 = arith.constant 0 : index
    %5 = vector.load %arg3[%c0_6, %c0_7, %c0_8, %c0_9] : memref<1x1x8x96xbf16, #tpu.memory_space<vmem>>, vector<1x1x8x32xbf16>
    %6 = vector.shape_cast %5 : vector<1x1x8x32xbf16> to vector<8x32xbf16>
    %cst = arith.constant dense<0.000000e+00> : vector<16x32xf32>
    %7 = tpu.matmul %2, %6, %cst {dimension_numbers = #tpu.dot_dimension_numbers<[1], [0], [0], [1], [0, 0, 1, 1], [], []>} : vector<16x8xbf16>, vector<8x32xbf16>, vector<16x32xf32> -> vector<16x32xf32>
    %8 = arith.truncf %7 : vector<16x32xf32> to vector<16x32xbf16>
    %c0_10 = arith.constant 0 : index
    %c0_11 = arith.constant 0 : index
    %c0_12 = arith.constant 0 : index
    %c32 = arith.constant 32 : index
    %9 = vector.load %arg3[%c0_10, %c0_11, %c0_12, %c32] : memref<1x1x8x96xbf16, #tpu.memory_space<vmem>>, vector<1x1x8x32xbf16>
    %10 = vector.shape_cast %9 : vector<1x1x8x32xbf16> to vector<8x32xbf16>
    %cst_13 = arith.constant dense<0.000000e+00> : vector<16x32xf32>
    %11 = tpu.matmul %2, %10, %cst_13 {dimension_numbers = #tpu.dot_dimension_numbers<[1], [0], [0], [1], [0, 0, 1, 1], [], []>} : vector<16x8xbf16>, vector<8x32xbf16>, vector<16x32xf32> -> vector<16x32xf32>
    %12 = arith.truncf %11 : vector<16x32xf32> to vector<16x32xbf16>
    %13 = tpu.iota {dimensions = array<i32: 1>} : vector<8x8xi32>
    %c2_i32 = arith.constant 2 : i32
    %14 = vector.broadcast %c2_i32 : i32 to vector<8x8xi32>
    %15 = arith.cmpi slt, %13, %14 : vector<8x8xi32>
    %cst_14 = arith.constant 0.000000e+00 : f32
    %cst_15 = arith.constant -1.000000e+30 : f32
    %16 = vector.broadcast %cst_14 : f32 to vector<8x8xf32>
    %17 = vector.broadcast %cst_15 : f32 to vector<8x8xf32>
    %18 = arith.select %15, %16, %17 : vector<8x8xi1>, vector<8x8xf32>
    %c0_16 = arith.constant 0 : index
    %c0_17 = arith.constant 0 : index
    %c0_18 = arith.constant 0 : index
    %c0_19 = arith.constant 0 : index
    %19 = vector.load %arg3[%c0_16, %c0_17, %c0_18, %c0_19] : memref<1x1x8x96xbf16, #tpu.memory_space<vmem>>, vector<1x1x8x4xbf16>
    %20 = vector.shape_cast %19 : vector<1x1x8x4xbf16> to vector<8x4xbf16>
    %c0_20 = arith.constant 0 : index
    %c0_21 = arith.constant 0 : index
    %c0_22 = arith.constant 0 : index
    %c32_23 = arith.constant 32 : index
    %21 = vector.load %arg3[%c0_20, %c0_21, %c0_22, %c32_23] : memref<1x1x8x96xbf16, #tpu.memory_space<vmem>>, vector<1x1x8x4xbf16>
    %22 = vector.shape_cast %21 : vector<1x1x8x4xbf16> to vector<8x4xbf16>
    %c0_24 = arith.constant 0 : index
    %c0_25 = arith.constant 0 : index
    %c0_26 = arith.constant 0 : index
    %c64 = arith.constant 64 : index
    %23 = vector.load %arg3[%c0_24, %c0_25, %c0_26, %c64] : memref<1x1x8x96xbf16, #tpu.memory_space<vmem>>, vector<1x1x8x4xbf16>
    %24 = vector.shape_cast %23 : vector<1x1x8x4xbf16> to vector<8x4xbf16>
    %cst_27 = arith.constant dense<0.000000e+00> : vector<8x8xf32>
    %25 = tpu.matmul %20, %22, %cst_27 {dimension_numbers = #tpu.dot_dimension_numbers<[1], [1], [0], [0], [0, 0, 1, 0], [], []>} : vector<8x4xbf16>, vector<8x4xbf16>, vector<8x8xf32> -> vector<8x8xf32>
    %cst_28 = arith.constant dense<0xFF800000> : vector<8xf32>
    %26 = vector.multi_reduction <maximumf>, %25, %cst_28 [1] : vector<8x8xf32> to vector<8xf32>
    %27 = vector.shape_cast %26 : vector<8xf32> to vector<8x1xf32>
    %28 = vector.broadcast %27 : vector<8x1xf32> to vector<8x8xf32>
    %29 = arith.subf %25, %28 : vector<8x8xf32>
    %30 = math.exp %29 : vector<8x8xf32>
    %cst_29 = arith.constant dense<0.000000e+00> : vector<8xf32>
    %31 = vector.multi_reduction <add>, %30, %cst_29 [1] : vector<8x8xf32> to vector<8xf32>
    %32 = vector.shape_cast %31 : vector<8xf32> to vector<8x1xf32>
    %33 = tpu.reciprocal %32 {approx = true} : vector<8x1xf32> -> vector<8x1xf32>
    %34 = vector.broadcast %33 : vector<8x1xf32> to vector<8x8xf32>
    %35 = arith.mulf %30, %34 : vector<8x8xf32>
    %36 = vector.extract_strided_slice %8 {offsets = [0, 0], sizes = [8, 4], strides = [1, 1]} : vector<16x32xbf16> to vector<8x4xbf16>
    %37 = vector.extract_strided_slice %12 {offsets = [0, 0], sizes = [8, 4], strides = [1, 1]} : vector<16x32xbf16> to vector<8x4xbf16>
    %cst_30 = arith.constant dense<0.000000e+00> : vector<8x8xf32>
    %38 = tpu.matmul %36, %37, %cst_30 {dimension_numbers = #tpu.dot_dimension_numbers<[1], [1], [0], [0], [0, 0, 1, 0], [], []>} : vector<8x4xbf16>, vector<8x4xbf16>, vector<8x8xf32> -> vector<8x8xf32>
    %39 = vector.extract_strided_slice %8 {offsets = [8, 0], sizes = [8, 4], strides = [1, 1]} : vector<16x32xbf16> to vector<8x4xbf16>
    %40 = vector.extract_strided_slice %12 {offsets = [8, 0], sizes = [8, 4], strides = [1, 1]} : vector<16x32xbf16> to vector<8x4xbf16>
    %cst_31 = arith.constant dense<0.000000e+00> : vector<8x8xf32>
    %41 = tpu.matmul %39, %40, %cst_31 {dimension_numbers = #tpu.dot_dimension_numbers<[1], [1], [0], [0], [0, 0, 1, 0], [], []>} : vector<8x4xbf16>, vector<8x4xbf16>, vector<8x8xf32> -> vector<8x8xf32>
    %42 = arith.addf %38, %41 : vector<8x8xf32>
    %43 = arith.addf %42, %18 : vector<8x8xf32>
    %cst_32 = arith.constant dense<0xFF800000> : vector<8xf32>
    %44 = vector.multi_reduction <maximumf>, %43, %cst_32 [1] : vector<8x8xf32> to vector<8xf32>
    %45 = vector.shape_cast %44 : vector<8xf32> to vector<8x1xf32>
    %46 = vector.broadcast %45 : vector<8x1xf32> to vector<8x8xf32>
    %47 = arith.subf %43, %46 : vector<8x8xf32>
    %48 = math.exp %47 : vector<8x8xf32>
    %cst_33 = arith.constant dense<0.000000e+00> : vector<8xf32>
    %49 = vector.multi_reduction <add>, %48, %cst_33 [1] : vector<8x8xf32> to vector<8xf32>
    %50 = vector.shape_cast %49 : vector<8xf32> to vector<8x1xf32>
    %51 = tpu.reciprocal %50 {approx = true} : vector<8x1xf32> -> vector<8x1xf32>
    %52 = vector.broadcast %51 : vector<8x1xf32> to vector<8x8xf32>
    %53 = arith.mulf %48, %52 : vector<8x8xf32>
    %54 = arith.truncf %53 : vector<8x8xf32> to vector<8x8xbf16>
    %cst_34 = arith.constant dense<0.000000e+00> : vector<8x8xf32>
    %55 = tpu.matmul %3, %54, %cst_34 {dimension_numbers = #tpu.dot_dimension_numbers<[1], [0], [0], [1], [0, 0, 1, 1], [], []>} : vector<8x8xbf16>, vector<8x8xbf16>, vector<8x8xf32> -> vector<8x8xf32>
    %56 = arith.truncf %55 : vector<8x8xf32> to vector<8x8xbf16>
    %cst_35 = arith.constant dense<0.000000e+00> : vector<8x8xf32>
    %57 = tpu.matmul %56, %4, %cst_35 {dimension_numbers = #tpu.dot_dimension_numbers<[1], [1], [0], [0], [0, 0, 1, 0], [], []>} : vector<8x8xbf16>, vector<8x8xbf16>, vector<8x8xf32> -> vector<8x8xf32>
    %58 = vector.broadcast %0 : f32 to vector<8x8xf32>
    %59 = arith.mulf %58, %35 : vector<8x8xf32>
    %60 = arith.addf %57, %59 : vector<8x8xf32>
    %c0_36 = arith.constant 0 : index
    %c0_37 = arith.constant 0 : index
    %c0_38 = arith.constant 0 : index
    %c0_39 = arith.constant 0 : index
    %c0_40 = arith.constant 0 : index
    %61 = vector.load %arg4[%c0_36, %c0_37, %c0_38, %c0_39, %c0_40] : memref<1x8x1x8x8xf32, #tpu.memory_space<vmem>>, vector<1x1x1x8x8xf32>
    %62 = vector.shape_cast %61 : vector<1x1x1x8x8xf32> to vector<8x8xf32>
    %63 = vector.broadcast %1 : f32 to vector<8x8xf32>
    %64 = arith.mulf %63, %62 : vector<8x8xf32>
    %65 = arith.addf %60, %64 : vector<8x8xf32>
    %66 = arith.truncf %65 : vector<8x8xf32> to vector<8x8xbf16>
    %cst_41 = arith.constant dense<0.000000e+00> : vector<8x4xf32>
    %67 = tpu.matmul %66, %24, %cst_41 {dimension_numbers = #tpu.dot_dimension_numbers<[1], [0], [0], [1], [0, 0, 1, 1], [], []>} : vector<8x8xbf16>, vector<8x4xbf16>, vector<8x4xf32> -> vector<8x4xf32>
    %68 = arith.truncf %67 : vector<8x4xf32> to vector<8x4xbf16>
    %c0_42 = arith.constant 0 : index
    %c0_43 = arith.constant 0 : index
    %c0_44 = arith.constant 0 : index
    %c0_45 = arith.constant 0 : index
    %69 = vector.load %arg8[%c0_42, %c0_43, %c0_44, %c0_45] : memref<1x1x8x32xbf16, #tpu.memory_space<vmem>>, vector<1x1x8x4xbf16>
    %70 = vector.shape_cast %69 : vector<1x1x8x4xbf16> to vector<8x4xbf16>
    %71 = vector.shape_cast %68 : vector<8x4xbf16> to vector<1x1x8x4xbf16>
    tpu.vector_store %arg8[%c0_42, %c0_43, %c0_44, %c0_45], %71 {strides = array<i32>} : memref<1x1x8x32xbf16, #tpu.memory_space<vmem>>, vector<1x1x8x4xbf16>,
    %c0_46 = arith.constant 0 : index
    %c0_47 = arith.constant 0 : index
    %c0_48 = arith.constant 0 : index
    %c4 = arith.constant 4 : index
    %72 = vector.load %arg3[%c0_46, %c0_47, %c0_48, %c4] : memref<1x1x8x96xbf16, #tpu.memory_space<vmem>>, vector<1x1x8x4xbf16>
    %73 = vector.shape_cast %72 : vector<1x1x8x4xbf16> to vector<8x4xbf16>
    %c0_49 = arith.constant 0 : index
    %c0_50 = arith.constant 0 : index
    %c0_51 = arith.constant 0 : index
    %c36 = arith.constant 36 : index
    %74 = vector.load %arg3[%c0_49, %c0_50, %c0_51, %c36] : memref<1x1x8x96xbf16, #tpu.memory_space<vmem>>, vector<1x1x8x4xbf16>
    %75 = vector.shape_cast %74 : vector<1x1x8x4xbf16> to vector<8x4xbf16>
    %c0_52 = arith.constant 0 : index
    %c0_53 = arith.constant 0 : index
    %c0_54 = arith.constant 0 : index
    %c68 = arith.constant 68 : index
    %76 = vector.load %arg3[%c0_52, %c0_53, %c0_54, %c68] : memref<1x1x8x96xbf16, #tpu.memory_space<vmem>>, vector<1x1x8x4xbf16>
    %77 = vector.shape_cast %76 : vector<1x1x8x4xbf16> to vector<8x4xbf16>
    %cst_55 = arith.constant dense<0.000000e+00> : vector<8x8xf32>
    %78 = tpu.matmul %73, %75, %cst_55 {dimension_numbers = #tpu.dot_dimension_numbers<[1], [1], [0], [0], [0, 0, 1, 0], [], []>} : vector<8x4xbf16>, vector<8x4xbf16>, vector<8x8xf32> -> vector<8x8xf32>
    %cst_56 = arith.constant dense<0xFF800000> : vector<8xf32>
    %79 = vector.multi_reduction <maximumf>, %78, %cst_56 [1] : vector<8x8xf32> to vector<8xf32>
    %80 = vector.shape_cast %79 : vector<8xf32> to vector<8x1xf32>
    %81 = vector.broadcast %80 : vector<8x1xf32> to vector<8x8xf32>
    %82 = arith.subf %78, %81 : vector<8x8xf32>
    %83 = math.exp %82 : vector<8x8xf32>
    %cst_57 = arith.constant dense<0.000000e+00> : vector<8xf32>
    %84 = vector.multi_reduction <add>, %83, %cst_57 [1] : vector<8x8xf32> to vector<8xf32>
    %85 = vector.shape_cast %84 : vector<8xf32> to vector<8x1xf32>
    %86 = tpu.reciprocal %85 {approx = true} : vector<8x1xf32> -> vector<8x1xf32>
    %87 = vector.broadcast %86 : vector<8x1xf32> to vector<8x8xf32>
    %88 = arith.mulf %83, %87 : vector<8x8xf32>
    %89 = vector.extract_strided_slice %8 {offsets = [0, 4], sizes = [8, 4], strides = [1, 1]} : vector<16x32xbf16> to vector<8x4xbf16>
    %90 = vector.extract_strided_slice %12 {offsets = [0, 4], sizes = [8, 4], strides = [1, 1]} : vector<16x32xbf16> to vector<8x4xbf16>
    %cst_58 = arith.constant dense<0.000000e+00> : vector<8x8xf32>
    %91 = tpu.matmul %89, %90, %cst_58 {dimension_numbers = #tpu.dot_dimension_numbers<[1], [1], [0], [0], [0, 0, 1, 0], [], []>} : vector<8x4xbf16>, vector<8x4xbf16>, vector<8x8xf32> -> vector<8x8xf32>
    %92 = vector.extract_strided_slice %8 {offsets = [8, 4], sizes = [8, 4], strides = [1, 1]} : vector<16x32xbf16> to vector<8x4xbf16>
    %93 = vector.extract_strided_slice %12 {offsets = [8, 4], sizes = [8, 4], strides = [1, 1]} : vector<16x32xbf16> to vector<8x4xbf16>
    %cst_59 = arith.constant dense<0.000000e+00> : vector<8x8xf32>
    %94 = tpu.matmul %92, %93, %cst_59 {dimension_numbers = #tpu.dot_dimension_numbers<[1], [1], [0], [0], [0, 0, 1, 0], [], []>} : vector<8x4xbf16>, vector<8x4xbf16>, vector<8x8xf32> -> vector<8x8xf32>
    %95 = arith.addf %91, %94 : vector<8x8xf32>
    %96 = arith.addf %95, %18 : vector<8x8xf32>
    %cst_60 = arith.constant dense<0xFF800000> : vector<8xf32>
    %97 = vector.multi_reduction <maximumf>, %96, %cst_60 [1] : vector<8x8xf32> to vector<8xf32>
    %98 = vector.shape_cast %97 : vector<8xf32> to vector<8x1xf32>
    %99 = vector.broadcast %98 : vector<8x1xf32> to vector<8x8xf32>
    %100 = arith.subf %96, %99 : vector<8x8xf32>
    %101 = math.exp %100 : vector<8x8xf32>
    %cst_61 = arith.constant dense<0.000000e+00> : vector<8xf32>
    %102 = vector.multi_reduction <add>, %101, %cst_61 [1] : vector<8x8xf32> to vector<8xf32>
    %103 = vector.shape_cast %102 : vector<8xf32> to vector<8x1xf32>
    %104 = tpu.reciprocal %103 {approx = true} : vector<8x1xf32> -> vector<8x1xf32>
    %105 = vector.broadcast %104 : vector<8x1xf32> to vector<8x8xf32>
    %106 = arith.mulf %101, %105 : vector<8x8xf32>
    %107 = arith.truncf %106 : vector<8x8xf32> to vector<8x8xbf16>
    %cst_62 = arith.constant dense<0.000000e+00> : vector<8x8xf32>
    %108 = tpu.matmul %3, %107, %cst_62 {dimension_numbers = #tpu.dot_dimension_numbers<[1], [0], [0], [1], [0, 0, 1, 1], [], []>} : vector<8x8xbf16>, vector<8x8xbf16>, vector<8x8xf32> -> vector<8x8xf32>
    %109 = arith.truncf %108 : vector<8x8xf32> to vector<8x8xbf16>
    %cst_63 = arith.constant dense<0.000000e+00> : vector<8x8xf32>
    %110 = tpu.matmul %109, %4, %cst_63 {dimension_numbers = #tpu.dot_dimension_numbers<[1], [1], [0], [0], [0, 0, 1, 0], [], []>} : vector<8x8xbf16>, vector<8x8xbf16>, vector<8x8xf32> -> vector<8x8xf32>
    %111 = vector.broadcast %0 : f32 to vector<8x8xf32>
    %112 = arith.mulf %111, %88 : vector<8x8xf32>
    %113 = arith.addf %110, %112 : vector<8x8xf32>
    %c0_64 = arith.constant 0 : index
    %c1_65 = arith.constant 1 : index
    %c0_66 = arith.constant 0 : index
    %c0_67 = arith.constant 0 : index
    %c0_68 = arith.constant 0 : index
    %114 = vector.load %arg4[%c0_64, %c1_65, %c0_66, %c0_67, %c0_68] : memref<1x8x1x8x8xf32, #tpu.memory_space<vmem>>, vector<1x1x1x8x8xf32>
    %115 = vector.shape_cast %114 : vector<1x1x1x8x8xf32> to vector<8x8xf32>
    %116 = vector.broadcast %1 : f32 to vector<8x8xf32>
    %117 = arith.mulf %116, %115 : vector<8x8xf32>
    %118 = arith.addf %113, %117 : vector<8x8xf32>
    %119 = arith.truncf %118 : vector<8x8xf32> to vector<8x8xbf16>
    %cst_69 = arith.constant dense<0.000000e+00> : vector<8x4xf32>
    %120 = tpu.matmul %119, %77, %cst_69 {dimension_numbers = #tpu.dot_dimension_numbers<[1], [0], [0], [1], [0, 0, 1, 1], [], []>} : vector<8x8xbf16>, vector<8x4xbf16>, vector<8x4xf32> -> vector<8x4xf32>
    %121 = arith.truncf %120 : vector<8x4xf32> to vector<8x4xbf16>
    %c0_70 = arith.constant 0 : index
    %c0_71 = arith.constant 0 : index
    %c0_72 = arith.constant 0 : index
    %c4_73 = arith.constant 4 : index
    %122 = vector.load %arg8[%c0_70, %c0_71, %c0_72, %c4_73] : memref<1x1x8x32xbf16, #tpu.memory_space<vmem>>, vector<1x1x8x4xbf16>
    %123 = vector.shape_cast %122 : vector<1x1x8x4xbf16> to vector<8x4xbf16>
    %124 = vector.shape_cast %121 : vector<8x4xbf16> to vector<1x1x8x4xbf16>
    tpu.vector_store %arg8[%c0_70, %c0_71, %c0_72, %c4_73], %124 {strides = array<i32>} : memref<1x1x8x32xbf16, #tpu.memory_space<vmem>>, vector<1x1x8x4xbf16>,
    %c0_74 = arith.constant 0 : index
    %c0_75 = arith.constant 0 : index
    %c0_76 = arith.constant 0 : index
    %c8 = arith.constant 8 : index
    %125 = vector.load %arg3[%c0_74, %c0_75, %c0_76, %c8] : memref<1x1x8x96xbf16, #tpu.memory_space<vmem>>, vector<1x1x8x4xbf16>
    %126 = vector.shape_cast %125 : vector<1x1x8x4xbf16> to vector<8x4xbf16>
    %c0_77 = arith.constant 0 : index
    %c0_78 = arith.constant 0 : index
    %c0_79 = arith.constant 0 : index
    %c40 = arith.constant 40 : index
    %127 = vector.load %arg3[%c0_77, %c0_78, %c0_79, %c40] : memref<1x1x8x96xbf16, #tpu.memory_space<vmem>>, vector<1x1x8x4xbf16>
    %128 = vector.shape_cast %127 : vector<1x1x8x4xbf16> to vector<8x4xbf16>
    %c0_80 = arith.constant 0 : index
    %c0_81 = arith.constant 0 : index
    %c0_82 = arith.constant 0 : index
    %c72 = arith.constant 72 : index
    %129 = vector.load %arg3[%c0_80, %c0_81, %c0_82, %c72] : memref<1x1x8x96xbf16, #tpu.memory_space<vmem>>, vector<1x1x8x4xbf16>
    %130 = vector.shape_cast %129 : vector<1x1x8x4xbf16> to vector<8x4xbf16>
    %cst_83 = arith.constant dense<0.000000e+00> : vector<8x8xf32>
    %131 = tpu.matmul %126, %128, %cst_83 {dimension_numbers = #tpu.dot_dimension_numbers<[1], [1], [0], [0], [0, 0, 1, 0], [], []>} : vector<8x4xbf16>, vector<8x4xbf16>, vector<8x8xf32> -> vector<8x8xf32>
    %cst_84 = arith.constant dense<0xFF800000> : vector<8xf32>
    %132 = vector.multi_reduction <maximumf>, %131, %cst_84 [1] : vector<8x8xf32> to vector<8xf32>
    %133 = vector.shape_cast %132 : vector<8xf32> to vector<8x1xf32>
    %134 = vector.broadcast %133 : vector<8x1xf32> to vector<8x8xf32>
    %135 = arith.subf %131, %134 : vector<8x8xf32>
    %136 = math.exp %135 : vector<8x8xf32>
    %cst_85 = arith.constant dense<0.000000e+00> : vector<8xf32>
    %137 = vector.multi_reduction <add>, %136, %cst_85 [1] : vector<8x8xf32> to vector<8xf32>
    %138 = vector.shape_cast %137 : vector<8xf32> to vector<8x1xf32>
    %139 = tpu.reciprocal %138 {approx = true} : vector<8x1xf32> -> vector<8x1xf32>
    %140 = vector.broadcast %139 : vector<8x1xf32> to vector<8x8xf32>
    %141 = arith.mulf %136, %140 : vector<8x8xf32>
    %142 = vector.extract_strided_slice %8 {offsets = [0, 8], sizes = [8, 4], strides = [1, 1]} : vector<16x32xbf16> to vector<8x4xbf16>
    %143 = vector.extract_strided_slice %12 {offsets = [0, 8], sizes = [8, 4], strides = [1, 1]} : vector<16x32xbf16> to vector<8x4xbf16>
    %cst_86 = arith.constant dense<0.000000e+00> : vector<8x8xf32>
    %144 = tpu.matmul %142, %143, %cst_86 {dimension_numbers = #tpu.dot_dimension_numbers<[1], [1], [0], [0], [0, 0, 1, 0], [], []>} : vector<8x4xbf16>, vector<8x4xbf16>, vector<8x8xf32> -> vector<8x8xf32>
    %145 = vector.extract_strided_slice %8 {offsets = [8, 8], sizes = [8, 4], strides = [1, 1]} : vector<16x32xbf16> to vector<8x4xbf16>
    %146 = vector.extract_strided_slice %12 {offsets = [8, 8], sizes = [8, 4], strides = [1, 1]} : vector<16x32xbf16> to vector<8x4xbf16>
    %cst_87 = arith.constant dense<0.000000e+00> : vector<8x8xf32>
    %147 = tpu.matmul %145, %146, %cst_87 {dimension_numbers = #tpu.dot_dimension_numbers<[1], [1], [0], [0], [0, 0, 1, 0], [], []>} : vector<8x4xbf16>, vector<8x4xbf16>, vector<8x8xf32> -> vector<8x8xf32>
    %148 = arith.addf %144, %147 : vector<8x8xf32>
    %149 = arith.addf %148, %18 : vector<8x8xf32>
    %cst_88 = arith.constant dense<0xFF800000> : vector<8xf32>
    %150 = vector.multi_reduction <maximumf>, %149, %cst_88 [1] : vector<8x8xf32> to vector<8xf32>
    %151 = vector.shape_cast %150 : vector<8xf32> to vector<8x1xf32>
    %152 = vector.broadcast %151 : vector<8x1xf32> to vector<8x8xf32>
    %153 = arith.subf %149, %152 : vector<8x8xf32>
    %154 = math.exp %153 : vector<8x8xf32>
    %cst_89 = arith.constant dense<0.000000e+00> : vector<8xf32>
    %155 = vector.multi_reduction <add>, %154, %cst_89 [1] : vector<8x8xf32> to vector<8xf32>
    %156 = vector.shape_cast %155 : vector<8xf32> to vector<8x1xf32>
    %157 = tpu.reciprocal %156 {approx = true} : vector<8x1xf32> -> vector<8x1xf32>
    %158 = vector.broadcast %157 : vector<8x1xf32> to vector<8x8xf32>
    %159 = arith.mulf %154, %158 : vector<8x8xf32>
    %160 = arith.truncf %159 : vector<8x8xf32> to vector<8x8xbf16>
    %cst_90 = arith.constant dense<0.000000e+00> : vector<8x8xf32>
    %161 = tpu.matmul %3, %160, %cst_90 {dimension_numbers = #tpu.dot_dimension_numbers<[1], [0], [0], [1], [0, 0, 1, 1], [], []>} : vector<8x8xbf16>, vector<8x8xbf16>, vector<8x8xf32> -> vector<8x8xf32>
    %162 = arith.truncf %161 : vector<8x8xf32> to vector<8x8xbf16>
    %cst_91 = arith.constant dense<0.000000e+00> : vector<8x8xf32>
    %163 = tpu.matmul %162, %4, %cst_91 {dimension_numbers = #tpu.dot_dimension_numbers<[1], [1], [0], [0], [0, 0, 1, 0], [], []>} : vector<8x8xbf16>, vector<8x8xbf16>, vector<8x8xf32> -> vector<8x8xf32>
    %164 = vector.broadcast %0 : f32 to vector<8x8xf32>
    %165 = arith.mulf %164, %141 : vector<8x8xf32>
    %166 = arith.addf %163, %165 : vector<8x8xf32>
    %c0_92 = arith.constant 0 : index
    %c2 = arith.constant 2 : index
    %c0_93 = arith.constant 0 : index
    %c0_94 = arith.constant 0 : index
    %c0_95 = arith.constant 0 : index
    %167 = vector.load %arg4[%c0_92, %c2, %c0_93, %c0_94, %c0_95] : memref<1x8x1x8x8xf32, #tpu.memory_space<vmem>>, vector<1x1x1x8x8xf32>
    %168 = vector.shape_cast %167 : vector<1x1x1x8x8xf32> to vector<8x8xf32>
    %169 = vector.broadcast %1 : f32 to vector<8x8xf32>
    %170 = arith.mulf %169, %168 : vector<8x8xf32>
    %171 = arith.addf %166, %170 : vector<8x8xf32>
    %172 = arith.truncf %171 : vector<8x8xf32> to vector<8x8xbf16>
    %cst_96 = arith.constant dense<0.000000e+00> : vector<8x4xf32>
    %173 = tpu.matmul %172, %130, %cst_96 {dimension_numbers = #tpu.dot_dimension_numbers<[1], [0], [0], [1], [0, 0, 1, 1], [], []>} : vector<8x8xbf16>, vector<8x4xbf16>, vector<8x4xf32> -> vector<8x4xf32>
    %174 = arith.truncf %173 : vector<8x4xf32> to vector<8x4xbf16>
    %c0_97 = arith.constant 0 : index
    %c0_98 = arith.constant 0 : index
    %c0_99 = arith.constant 0 : index
    %c8_100 = arith.constant 8 : index
    %175 = vector.load %arg8[%c0_97, %c0_98, %c0_99, %c8_100] : memref<1x1x8x32xbf16, #tpu.memory_space<vmem>>, vector<1x1x8x4xbf16>
    %176 = vector.shape_cast %175 : vector<1x1x8x4xbf16> to vector<8x4xbf16>
    %177 = vector.shape_cast %174 : vector<8x4xbf16> to vector<1x1x8x4xbf16>
    tpu.vector_store %arg8[%c0_97, %c0_98, %c0_99, %c8_100], %177 {strides = array<i32>} : memref<1x1x8x32xbf16, #tpu.memory_space<vmem>>, vector<1x1x8x4xbf16>,
    %c0_101 = arith.constant 0 : index
    %c0_102 = arith.constant 0 : index
    %c0_103 = arith.constant 0 : index
    %c12 = arith.constant 12 : index
    %178 = vector.load %arg3[%c0_101, %c0_102, %c0_103, %c12] : memref<1x1x8x96xbf16, #tpu.memory_space<vmem>>, vector<1x1x8x4xbf16>
    %179 = vector.shape_cast %178 : vector<1x1x8x4xbf16> to vector<8x4xbf16>
    %c0_104 = arith.constant 0 : index
    %c0_105 = arith.constant 0 : index
    %c0_106 = arith.constant 0 : index
    %c44 = arith.constant 44 : index
    %180 = vector.load %arg3[%c0_104, %c0_105, %c0_106, %c44] : memref<1x1x8x96xbf16, #tpu.memory_space<vmem>>, vector<1x1x8x4xbf16>
    %181 = vector.shape_cast %180 : vector<1x1x8x4xbf16> to vector<8x4xbf16>
    %c0_107 = arith.constant 0 : index
    %c0_108 = arith.constant 0 : index
    %c0_109 = arith.constant 0 : index
    %c76 = arith.constant 76 : index
    %182 = vector.load %arg3[%c0_107, %c0_108, %c0_109, %c76] : memref<1x1x8x96xbf16, #tpu.memory_space<vmem>>, vector<1x1x8x4xbf16>
    %183 = vector.shape_cast %182 : vector<1x1x8x4xbf16> to vector<8x4xbf16>
    %cst_110 = arith.constant dense<0.000000e+00> : vector<8x8xf32>
    %184 = tpu.matmul %179, %181, %cst_110 {dimension_numbers = #tpu.dot_dimension_numbers<[1], [1], [0], [0], [0, 0, 1, 0], [], []>} : vector<8x4xbf16>, vector<8x4xbf16>, vector<8x8xf32> -> vector<8x8xf32>
    %cst_111 = arith.constant dense<0xFF800000> : vector<8xf32>
    %185 = vector.multi_reduction <maximumf>, %184, %cst_111 [1] : vector<8x8xf32> to vector<8xf32>
    %186 = vector.shape_cast %185 : vector<8xf32> to vector<8x1xf32>
    %187 = vector.broadcast %186 : vector<8x1xf32> to vector<8x8xf32>
    %188 = arith.subf %184, %187 : vector<8x8xf32>
    %189 = math.exp %188 : vector<8x8xf32>
    %cst_112 = arith.constant dense<0.000000e+00> : vector<8xf32>
    %190 = vector.multi_reduction <add>, %189, %cst_112 [1] : vector<8x8xf32> to vector<8xf32>
    %191 = vector.shape_cast %190 : vector<8xf32> to vector<8x1xf32>
    %192 = tpu.reciprocal %191 {approx = true} : vector<8x1xf32> -> vector<8x1xf32>
    %193 = vector.broadcast %192 : vector<8x1xf32> to vector<8x8xf32>
    %194 = arith.mulf %189, %193 : vector<8x8xf32>
    %195 = vector.extract_strided_slice %8 {offsets = [0, 12], sizes = [8, 4], strides = [1, 1]} : vector<16x32xbf16> to vector<8x4xbf16>
    %196 = vector.extract_strided_slice %12 {offsets = [0, 12], sizes = [8, 4], strides = [1, 1]} : vector<16x32xbf16> to vector<8x4xbf16>
    %cst_113 = arith.constant dense<0.000000e+00> : vector<8x8xf32>
    %197 = tpu.matmul %195, %196, %cst_113 {dimension_numbers = #tpu.dot_dimension_numbers<[1], [1], [0], [0], [0, 0, 1, 0], [], []>} : vector<8x4xbf16>, vector<8x4xbf16>, vector<8x8xf32> -> vector<8x8xf32>
    %198 = vector.extract_strided_slice %8 {offsets = [8, 12], sizes = [8, 4], strides = [1, 1]} : vector<16x32xbf16> to vector<8x4xbf16>
    %199 = vector.extract_strided_slice %12 {offsets = [8, 12], sizes = [8, 4], strides = [1, 1]} : vector<16x32xbf16> to vector<8x4xbf16>
    %cst_114 = arith.constant dense<0.000000e+00> : vector<8x8xf32>
    %200 = tpu.matmul %198, %199, %cst_114 {dimension_numbers = #tpu.dot_dimension_numbers<[1], [1], [0], [0], [0, 0, 1, 0], [], []>} : vector<8x4xbf16>, vector<8x4xbf16>, vector<8x8xf32> -> vector<8x8xf32>
    %201 = arith.addf %197, %200 : vector<8x8xf32>
    %202 = arith.addf %201, %18 : vector<8x8xf32>
    %cst_115 = arith.constant dense<0xFF800000> : vector<8xf32>
    %203 = vector.multi_reduction <maximumf>, %202, %cst_115 [1] : vector<8x8xf32> to vector<8xf32>
    %204 = vector.shape_cast %203 : vector<8xf32> to vector<8x1xf32>
    %205 = vector.broadcast %204 : vector<8x1xf32> to vector<8x8xf32>
    %206 = arith.subf %202, %205 : vector<8x8xf32>
    %207 = math.exp %206 : vector<8x8xf32>
    %cst_116 = arith.constant dense<0.000000e+00> : vector<8xf32>
    %208 = vector.multi_reduction <add>, %207, %cst_116 [1] : vector<8x8xf32> to vector<8xf32>
    %209 = vector.shape_cast %208 : vector<8xf32> to vector<8x1xf32>
    %210 = tpu.reciprocal %209 {approx = true} : vector<8x1xf32> -> vector<8x1xf32>
    %211 = vector.broadcast %210 : vector<8x1xf32> to vector<8x8xf32>
    %212 = arith.mulf %207, %211 : vector<8x8xf32>
    %213 = arith.truncf %212 : vector<8x8xf32> to vector<8x8xbf16>
    %cst_117 = arith.constant dense<0.000000e+00> : vector<8x8xf32>
    %214 = tpu.matmul %3, %213, %cst_117 {dimension_numbers = #tpu.dot_dimension_numbers<[1], [0], [0], [1], [0, 0, 1, 1], [], []>} : vector<8x8xbf16>, vector<8x8xbf16>, vector<8x8xf32> -> vector<8x8xf32>
    %215 = arith.truncf %214 : vector<8x8xf32> to vector<8x8xbf16>
    %cst_118 = arith.constant dense<0.000000e+00> : vector<8x8xf32>
    %216 = tpu.matmul %215, %4, %cst_118 {dimension_numbers = #tpu.dot_dimension_numbers<[1], [1], [0], [0], [0, 0, 1, 0], [], []>} : vector<8x8xbf16>, vector<8x8xbf16>, vector<8x8xf32> -> vector<8x8xf32>
    %217 = vector.broadcast %0 : f32 to vector<8x8xf32>
    %218 = arith.mulf %217, %194 : vector<8x8xf32>
    %219 = arith.addf %216, %218 : vector<8x8xf32>
    %c0_119 = arith.constant 0 : index
    %c3 = arith.constant 3 : index
    %c0_120 = arith.constant 0 : index
    %c0_121 = arith.constant 0 : index
    %c0_122 = arith.constant 0 : index
    %220 = vector.load %arg4[%c0_119, %c3, %c0_120, %c0_121, %c0_122] : memref<1x8x1x8x8xf32, #tpu.memory_space<vmem>>, vector<1x1x1x8x8xf32>
    %221 = vector.shape_cast %220 : vector<1x1x1x8x8xf32> to vector<8x8xf32>
    %222 = vector.broadcast %1 : f32 to vector<8x8xf32>
    %223 = arith.mulf %222, %221 : vector<8x8xf32>
    %224 = arith.addf %219, %223 : vector<8x8xf32>
    %225 = arith.truncf %224 : vector<8x8xf32> to vector<8x8xbf16>
    %cst_123 = arith.constant dense<0.000000e+00> : vector<8x4xf32>
    %226 = tpu.matmul %225, %183, %cst_123 {dimension_numbers = #tpu.dot_dimension_numbers<[1], [0], [0], [1], [0, 0, 1, 1], [], []>} : vector<8x8xbf16>, vector<8x4xbf16>, vector<8x4xf32> -> vector<8x4xf32>
    %227 = arith.truncf %226 : vector<8x4xf32> to vector<8x4xbf16>
    %c0_124 = arith.constant 0 : index
    %c0_125 = arith.constant 0 : index
    %c0_126 = arith.constant 0 : index
    %c12_127 = arith.constant 12 : index
    %228 = vector.load %arg8[%c0_124, %c0_125, %c0_126, %c12_127] : memref<1x1x8x32xbf16, #tpu.memory_space<vmem>>, vector<1x1x8x4xbf16>
    %229 = vector.shape_cast %228 : vector<1x1x8x4xbf16> to vector<8x4xbf16>
    %230 = vector.shape_cast %227 : vector<8x4xbf16> to vector<1x1x8x4xbf16>
    tpu.vector_store %arg8[%c0_124, %c0_125, %c0_126, %c12_127], %230 {strides = array<i32>} : memref<1x1x8x32xbf16, #tpu.memory_space<vmem>>, vector<1x1x8x4xbf16>,
    %c0_128 = arith.constant 0 : index
    %c0_129 = arith.constant 0 : index
    %c0_130 = arith.constant 0 : index
    %c16 = arith.constant 16 : index
    %231 = vector.load %arg3[%c0_128, %c0_129, %c0_130, %c16] : memref<1x1x8x96xbf16, #tpu.memory_space<vmem>>, vector<1x1x8x4xbf16>
    %232 = vector.shape_cast %231 : vector<1x1x8x4xbf16> to vector<8x4xbf16>
    %c0_131 = arith.constant 0 : index
    %c0_132 = arith.constant 0 : index
    %c0_133 = arith.constant 0 : index
    %c48 = arith.constant 48 : index
    %233 = vector.load %arg3[%c0_131, %c0_132, %c0_133, %c48] : memref<1x1x8x96xbf16, #tpu.memory_space<vmem>>, vector<1x1x8x4xbf16>
    %234 = vector.shape_cast %233 : vector<1x1x8x4xbf16> to vector<8x4xbf16>
    %c0_134 = arith.constant 0 : index
    %c0_135 = arith.constant 0 : index
    %c0_136 = arith.constant 0 : index
    %c80 = arith.constant 80 : index
    %235 = vector.load %arg3[%c0_134, %c0_135, %c0_136, %c80] : memref<1x1x8x96xbf16, #tpu.memory_space<vmem>>, vector<1x1x8x4xbf16>
    %236 = vector.shape_cast %235 : vector<1x1x8x4xbf16> to vector<8x4xbf16>
    %cst_137 = arith.constant dense<0.000000e+00> : vector<8x8xf32>
    %237 = tpu.matmul %232, %234, %cst_137 {dimension_numbers = #tpu.dot_dimension_numbers<[1], [1], [0], [0], [0, 0, 1, 0], [], []>} : vector<8x4xbf16>, vector<8x4xbf16>, vector<8x8xf32> -> vector<8x8xf32>
    %cst_138 = arith.constant dense<0xFF800000> : vector<8xf32>
    %238 = vector.multi_reduction <maximumf>, %237, %cst_138 [1] : vector<8x8xf32> to vector<8xf32>
    %239 = vector.shape_cast %238 : vector<8xf32> to vector<8x1xf32>
    %240 = vector.broadcast %239 : vector<8x1xf32> to vector<8x8xf32>
    %241 = arith.subf %237, %240 : vector<8x8xf32>
    %242 = math.exp %241 : vector<8x8xf32>
    %cst_139 = arith.constant dense<0.000000e+00> : vector<8xf32>
    %243 = vector.multi_reduction <add>, %242, %cst_139 [1] : vector<8x8xf32> to vector<8xf32>
    %244 = vector.shape_cast %243 : vector<8xf32> to vector<8x1xf32>
    %245 = tpu.reciprocal %244 {approx = true} : vector<8x1xf32> -> vector<8x1xf32>
    %246 = vector.broadcast %245 : vector<8x1xf32> to vector<8x8xf32>
    %247 = arith.mulf %242, %246 : vector<8x8xf32>
    %248 = vector.extract_strided_slice %8 {offsets = [0, 16], sizes = [8, 4], strides = [1, 1]} : vector<16x32xbf16> to vector<8x4xbf16>
    %249 = vector.extract_strided_slice %12 {offsets = [0, 16], sizes = [8, 4], strides = [1, 1]} : vector<16x32xbf16> to vector<8x4xbf16>
    %cst_140 = arith.constant dense<0.000000e+00> : vector<8x8xf32>
    %250 = tpu.matmul %248, %249, %cst_140 {dimension_numbers = #tpu.dot_dimension_numbers<[1], [1], [0], [0], [0, 0, 1, 0], [], []>} : vector<8x4xbf16>, vector<8x4xbf16>, vector<8x8xf32> -> vector<8x8xf32>
    %251 = vector.extract_strided_slice %8 {offsets = [8, 16], sizes = [8, 4], strides = [1, 1]} : vector<16x32xbf16> to vector<8x4xbf16>
    %252 = vector.extract_strided_slice %12 {offsets = [8, 16], sizes = [8, 4], strides = [1, 1]} : vector<16x32xbf16> to vector<8x4xbf16>
    %cst_141 = arith.constant dense<0.000000e+00> : vector<8x8xf32>
    %253 = tpu.matmul %251, %252, %cst_141 {dimension_numbers = #tpu.dot_dimension_numbers<[1], [1], [0], [0], [0, 0, 1, 0], [], []>} : vector<8x4xbf16>, vector<8x4xbf16>, vector<8x8xf32> -> vector<8x8xf32>
    %254 = arith.addf %250, %253 : vector<8x8xf32>
    %255 = arith.addf %254, %18 : vector<8x8xf32>
    %cst_142 = arith.constant dense<0xFF800000> : vector<8xf32>
    %256 = vector.multi_reduction <maximumf>, %255, %cst_142 [1] : vector<8x8xf32> to vector<8xf32>
    %257 = vector.shape_cast %256 : vector<8xf32> to vector<8x1xf32>
    %258 = vector.broadcast %257 : vector<8x1xf32> to vector<8x8xf32>
    %259 = arith.subf %255, %258 : vector<8x8xf32>
    %260 = math.exp %259 : vector<8x8xf32>
    %cst_143 = arith.constant dense<0.000000e+00> : vector<8xf32>
    %261 = vector.multi_reduction <add>, %260, %cst_143 [1] : vector<8x8xf32> to vector<8xf32>
    %262 = vector.shape_cast %261 : vector<8xf32> to vector<8x1xf32>
    %263 = tpu.reciprocal %262 {approx = true} : vector<8x1xf32> -> vector<8x1xf32>
    %264 = vector.broadcast %263 : vector<8x1xf32> to vector<8x8xf32>
    %265 = arith.mulf %260, %264 : vector<8x8xf32>
    %266 = arith.truncf %265 : vector<8x8xf32> to vector<8x8xbf16>
    %cst_144 = arith.constant dense<0.000000e+00> : vector<8x8xf32>
    %267 = tpu.matmul %3, %266, %cst_144 {dimension_numbers = #tpu.dot_dimension_numbers<[1], [0], [0], [1], [0, 0, 1, 1], [], []>} : vector<8x8xbf16>, vector<8x8xbf16>, vector<8x8xf32> -> vector<8x8xf32>
    %268 = arith.truncf %267 : vector<8x8xf32> to vector<8x8xbf16>
    %cst_145 = arith.constant dense<0.000000e+00> : vector<8x8xf32>
    %269 = tpu.matmul %268, %4, %cst_145 {dimension_numbers = #tpu.dot_dimension_numbers<[1], [1], [0], [0], [0, 0, 1, 0], [], []>} : vector<8x8xbf16>, vector<8x8xbf16>, vector<8x8xf32> -> vector<8x8xf32>
    %270 = vector.broadcast %0 : f32 to vector<8x8xf32>
    %271 = arith.mulf %270, %247 : vector<8x8xf32>
    %272 = arith.addf %269, %271 : vector<8x8xf32>
    %c0_146 = arith.constant 0 : index
    %c4_147 = arith.constant 4 : index
    %c0_148 = arith.constant 0 : index
    %c0_149 = arith.constant 0 : index
    %c0_150 = arith.constant 0 : index
    %273 = vector.load %arg4[%c0_146, %c4_147, %c0_148, %c0_149, %c0_150] : memref<1x8x1x8x8xf32, #tpu.memory_space<vmem>>, vector<1x1x1x8x8xf32>
    %274 = vector.shape_cast %273 : vector<1x1x1x8x8xf32> to vector<8x8xf32>
    %275 = vector.broadcast %1 : f32 to vector<8x8xf32>
    %276 = arith.mulf %275, %274 : vector<8x8xf32>
    %277 = arith.addf %272, %276 : vector<8x8xf32>
    %278 = arith.truncf %277 : vector<8x8xf32> to vector<8x8xbf16>
    %cst_151 = arith.constant dense<0.000000e+00> : vector<8x4xf32>
    %279 = tpu.matmul %278, %236, %cst_151 {dimension_numbers = #tpu.dot_dimension_numbers<[1], [0], [0], [1], [0, 0, 1, 1], [], []>} : vector<8x8xbf16>, vector<8x4xbf16>, vector<8x4xf32> -> vector<8x4xf32>
    %280 = arith.truncf %279 : vector<8x4xf32> to vector<8x4xbf16>
    %c0_152 = arith.constant 0 : index
    %c0_153 = arith.constant 0 : index
    %c0_154 = arith.constant 0 : index
    %c16_155 = arith.constant 16 : index
    %281 = vector.load %arg8[%c0_152, %c0_153, %c0_154, %c16_155] : memref<1x1x8x32xbf16, #tpu.memory_space<vmem>>, vector<1x1x8x4xbf16>
    %282 = vector.shape_cast %281 : vector<1x1x8x4xbf16> to vector<8x4xbf16>
    %283 = vector.shape_cast %280 : vector<8x4xbf16> to vector<1x1x8x4xbf16>
    tpu.vector_store %arg8[%c0_152, %c0_153, %c0_154, %c16_155], %283 {strides = array<i32>} : memref<1x1x8x32xbf16, #tpu.memory_space<vmem>>, vector<1x1x8x4xbf16>,
    %c0_156 = arith.constant 0 : index
    %c0_157 = arith.constant 0 : index
    %c0_158 = arith.constant 0 : index
    %c20 = arith.constant 20 : index
    %284 = vector.load %arg3[%c0_156, %c0_157, %c0_158, %c20] : memref<1x1x8x96xbf16, #tpu.memory_space<vmem>>, vector<1x1x8x4xbf16>
    %285 = vector.shape_cast %284 : vector<1x1x8x4xbf16> to vector<8x4xbf16>
    %c0_159 = arith.constant 0 : index
    %c0_160 = arith.constant 0 : index
    %c0_161 = arith.constant 0 : index
    %c52 = arith.constant 52 : index
    %286 = vector.load %arg3[%c0_159, %c0_160, %c0_161, %c52] : memref<1x1x8x96xbf16, #tpu.memory_space<vmem>>, vector<1x1x8x4xbf16>
    %287 = vector.shape_cast %286 : vector<1x1x8x4xbf16> to vector<8x4xbf16>
    %c0_162 = arith.constant 0 : index
    %c0_163 = arith.constant 0 : index
    %c0_164 = arith.constant 0 : index
    %c84 = arith.constant 84 : index
    %288 = vector.load %arg3[%c0_162, %c0_163, %c0_164, %c84] : memref<1x1x8x96xbf16, #tpu.memory_space<vmem>>, vector<1x1x8x4xbf16>
    %289 = vector.shape_cast %288 : vector<1x1x8x4xbf16> to vector<8x4xbf16>
    %cst_165 = arith.constant dense<0.000000e+00> : vector<8x8xf32>
    %290 = tpu.matmul %285, %287, %cst_165 {dimension_numbers = #tpu.dot_dimension_numbers<[1], [1], [0], [0], [0, 0, 1, 0], [], []>} : vector<8x4xbf16>, vector<8x4xbf16>, vector<8x8xf32> -> vector<8x8xf32>
    %cst_166 = arith.constant dense<0xFF800000> : vector<8xf32>
    %291 = vector.multi_reduction <maximumf>, %290, %cst_166 [1] : vector<8x8xf32> to vector<8xf32>
    %292 = vector.shape_cast %291 : vector<8xf32> to vector<8x1xf32>
    %293 = vector.broadcast %292 : vector<8x1xf32> to vector<8x8xf32>
    %294 = arith.subf %290, %293 : vector<8x8xf32>
    %295 = math.exp %294 : vector<8x8xf32>
    %cst_167 = arith.constant dense<0.000000e+00> : vector<8xf32>
    %296 = vector.multi_reduction <add>, %295, %cst_167 [1] : vector<8x8xf32> to vector<8xf32>
    %297 = vector.shape_cast %296 : vector<8xf32> to vector<8x1xf32>
    %298 = tpu.reciprocal %297 {approx = true} : vector<8x1xf32> -> vector<8x1xf32>
    %299 = vector.broadcast %298 : vector<8x1xf32> to vector<8x8xf32>
    %300 = arith.mulf %295, %299 : vector<8x8xf32>
    %301 = vector.extract_strided_slice %8 {offsets = [0, 20], sizes = [8, 4], strides = [1, 1]} : vector<16x32xbf16> to vector<8x4xbf16>
    %302 = vector.extract_strided_slice %12 {offsets = [0, 20], sizes = [8, 4], strides = [1, 1]} : vector<16x32xbf16> to vector<8x4xbf16>
    %cst_168 = arith.constant dense<0.000000e+00> : vector<8x8xf32>
    %303 = tpu.matmul %301, %302, %cst_168 {dimension_numbers = #tpu.dot_dimension_numbers<[1], [1], [0], [0], [0, 0, 1, 0], [], []>} : vector<8x4xbf16>, vector<8x4xbf16>, vector<8x8xf32> -> vector<8x8xf32>
    %304 = vector.extract_strided_slice %8 {offsets = [8, 20], sizes = [8, 4], strides = [1, 1]} : vector<16x32xbf16> to vector<8x4xbf16>
    %305 = vector.extract_strided_slice %12 {offsets = [8, 20], sizes = [8, 4], strides = [1, 1]} : vector<16x32xbf16> to vector<8x4xbf16>
    %cst_169 = arith.constant dense<0.000000e+00> : vector<8x8xf32>
    %306 = tpu.matmul %304, %305, %cst_169 {dimension_numbers = #tpu.dot_dimension_numbers<[1], [1], [0], [0], [0, 0, 1, 0], [], []>} : vector<8x4xbf16>, vector<8x4xbf16>, vector<8x8xf32> -> vector<8x8xf32>
    %307 = arith.addf %303, %306 : vector<8x8xf32>
    %308 = arith.addf %307, %18 : vector<8x8xf32>
    %cst_170 = arith.constant dense<0xFF800000> : vector<8xf32>
    %309 = vector.multi_reduction <maximumf>, %308, %cst_170 [1] : vector<8x8xf32> to vector<8xf32>
    %310 = vector.shape_cast %309 : vector<8xf32> to vector<8x1xf32>
    %311 = vector.broadcast %310 : vector<8x1xf32> to vector<8x8xf32>
    %312 = arith.subf %308, %311 : vector<8x8xf32>
    %313 = math.exp %312 : vector<8x8xf32>
    %cst_171 = arith.constant dense<0.000000e+00> : vector<8xf32>
    %314 = vector.multi_reduction <add>, %313, %cst_171 [1] : vector<8x8xf32> to vector<8xf32>
    %315 = vector.shape_cast %314 : vector<8xf32> to vector<8x1xf32>
    %316 = tpu.reciprocal %315 {approx = true} : vector<8x1xf32> -> vector<8x1xf32>
    %317 = vector.broadcast %316 : vector<8x1xf32> to vector<8x8xf32>
    %318 = arith.mulf %313, %317 : vector<8x8xf32>
    %319 = arith.truncf %318 : vector<8x8xf32> to vector<8x8xbf16>
    %cst_172 = arith.constant dense<0.000000e+00> : vector<8x8xf32>
    %320 = tpu.matmul %3, %319, %cst_172 {dimension_numbers = #tpu.dot_dimension_numbers<[1], [0], [0], [1], [0, 0, 1, 1], [], []>} : vector<8x8xbf16>, vector<8x8xbf16>, vector<8x8xf32> -> vector<8x8xf32>
    %321 = arith.truncf %320 : vector<8x8xf32> to vector<8x8xbf16>
    %cst_173 = arith.constant dense<0.000000e+00> : vector<8x8xf32>
    %322 = tpu.matmul %321, %4, %cst_173 {dimension_numbers = #tpu.dot_dimension_numbers<[1], [1], [0], [0], [0, 0, 1, 0], [], []>} : vector<8x8xbf16>, vector<8x8xbf16>, vector<8x8xf32> -> vector<8x8xf32>
    %323 = vector.broadcast %0 : f32 to vector<8x8xf32>
    %324 = arith.mulf %323, %300 : vector<8x8xf32>
    %325 = arith.addf %322, %324 : vector<8x8xf32>
    %c0_174 = arith.constant 0 : index
    %c5 = arith.constant 5 : index
    %c0_175 = arith.constant 0 : index
    %c0_176 = arith.constant 0 : index
    %c0_177 = arith.constant 0 : index
    %326 = vector.load %arg4[%c0_174, %c5, %c0_175, %c0_176, %c0_177] : memref<1x8x1x8x8xf32, #tpu.memory_space<vmem>>, vector<1x1x1x8x8xf32>
    %327 = vector.shape_cast %326 : vector<1x1x1x8x8xf32> to vector<8x8xf32>
    %328 = vector.broadcast %1 : f32 to vector<8x8xf32>
    %329 = arith.mulf %328, %327 : vector<8x8xf32>
    %330 = arith.addf %325, %329 : vector<8x8xf32>
    %331 = arith.truncf %330 : vector<8x8xf32> to vector<8x8xbf16>
    %cst_178 = arith.constant dense<0.000000e+00> : vector<8x4xf32>
    %332 = tpu.matmul %331, %289, %cst_178 {dimension_numbers = #tpu.dot_dimension_numbers<[1], [0], [0], [1], [0, 0, 1, 1], [], []>} : vector<8x8xbf16>, vector<8x4xbf16>, vector<8x4xf32> -> vector<8x4xf32>
    %333 = arith.truncf %332 : vector<8x4xf32> to vector<8x4xbf16>
    %c0_179 = arith.constant 0 : index
    %c0_180 = arith.constant 0 : index
    %c0_181 = arith.constant 0 : index
    %c20_182 = arith.constant 20 : index
    %334 = vector.load %arg8[%c0_179, %c0_180, %c0_181, %c20_182] : memref<1x1x8x32xbf16, #tpu.memory_space<vmem>>, vector<1x1x8x4xbf16>
    %335 = vector.shape_cast %334 : vector<1x1x8x4xbf16> to vector<8x4xbf16>
    %336 = vector.shape_cast %333 : vector<8x4xbf16> to vector<1x1x8x4xbf16>
    tpu.vector_store %arg8[%c0_179, %c0_180, %c0_181, %c20_182], %336 {strides = array<i32>} : memref<1x1x8x32xbf16, #tpu.memory_space<vmem>>, vector<1x1x8x4xbf16>,
    %c0_183 = arith.constant 0 : index
    %c0_184 = arith.constant 0 : index
    %c0_185 = arith.constant 0 : index
    %c24 = arith.constant 24 : index
    %337 = vector.load %arg3[%c0_183, %c0_184, %c0_185, %c24] : memref<1x1x8x96xbf16, #tpu.memory_space<vmem>>, vector<1x1x8x4xbf16>
    %338 = vector.shape_cast %337 : vector<1x1x8x4xbf16> to vector<8x4xbf16>
    %c0_186 = arith.constant 0 : index
    %c0_187 = arith.constant 0 : index
    %c0_188 = arith.constant 0 : index
    %c56 = arith.constant 56 : index
    %339 = vector.load %arg3[%c0_186, %c0_187, %c0_188, %c56] : memref<1x1x8x96xbf16, #tpu.memory_space<vmem>>, vector<1x1x8x4xbf16>
    %340 = vector.shape_cast %339 : vector<1x1x8x4xbf16> to vector<8x4xbf16>
    %c0_189 = arith.constant 0 : index
    %c0_190 = arith.constant 0 : index
    %c0_191 = arith.constant 0 : index
    %c88 = arith.constant 88 : index
    %341 = vector.load %arg3[%c0_189, %c0_190, %c0_191, %c88] : memref<1x1x8x96xbf16, #tpu.memory_space<vmem>>, vector<1x1x8x4xbf16>
    %342 = vector.shape_cast %341 : vector<1x1x8x4xbf16> to vector<8x4xbf16>
    %cst_192 = arith.constant dense<0.000000e+00> : vector<8x8xf32>
    %343 = tpu.matmul %338, %340, %cst_192 {dimension_numbers = #tpu.dot_dimension_numbers<[1], [1], [0], [0], [0, 0, 1, 0], [], []>} : vector<8x4xbf16>, vector<8x4xbf16>, vector<8x8xf32> -> vector<8x8xf32>
    %cst_193 = arith.constant dense<0xFF800000> : vector<8xf32>
    %344 = vector.multi_reduction <maximumf>, %343, %cst_193 [1] : vector<8x8xf32> to vector<8xf32>
    %345 = vector.shape_cast %344 : vector<8xf32> to vector<8x1xf32>
    %346 = vector.broadcast %345 : vector<8x1xf32> to vector<8x8xf32>
    %347 = arith.subf %343, %346 : vector<8x8xf32>
    %348 = math.exp %347 : vector<8x8xf32>
    %cst_194 = arith.constant dense<0.000000e+00> : vector<8xf32>
    %349 = vector.multi_reduction <add>, %348, %cst_194 [1] : vector<8x8xf32> to vector<8xf32>
    %350 = vector.shape_cast %349 : vector<8xf32> to vector<8x1xf32>
    %351 = tpu.reciprocal %350 {approx = true} : vector<8x1xf32> -> vector<8x1xf32>
    %352 = vector.broadcast %351 : vector<8x1xf32> to vector<8x8xf32>
    %353 = arith.mulf %348, %352 : vector<8x8xf32>
    %354 = vector.extract_strided_slice %8 {offsets = [0, 24], sizes = [8, 4], strides = [1, 1]} : vector<16x32xbf16> to vector<8x4xbf16>
    %355 = vector.extract_strided_slice %12 {offsets = [0, 24], sizes = [8, 4], strides = [1, 1]} : vector<16x32xbf16> to vector<8x4xbf16>
    %cst_195 = arith.constant dense<0.000000e+00> : vector<8x8xf32>
    %356 = tpu.matmul %354, %355, %cst_195 {dimension_numbers = #tpu.dot_dimension_numbers<[1], [1], [0], [0], [0, 0, 1, 0], [], []>} : vector<8x4xbf16>, vector<8x4xbf16>, vector<8x8xf32> -> vector<8x8xf32>
    %357 = vector.extract_strided_slice %8 {offsets = [8, 24], sizes = [8, 4], strides = [1, 1]} : vector<16x32xbf16> to vector<8x4xbf16>
    %358 = vector.extract_strided_slice %12 {offsets = [8, 24], sizes = [8, 4], strides = [1, 1]} : vector<16x32xbf16> to vector<8x4xbf16>
    %cst_196 = arith.constant dense<0.000000e+00> : vector<8x8xf32>
    %359 = tpu.matmul %357, %358, %cst_196 {dimension_numbers = #tpu.dot_dimension_numbers<[1], [1], [0], [0], [0, 0, 1, 0], [], []>} : vector<8x4xbf16>, vector<8x4xbf16>, vector<8x8xf32> -> vector<8x8xf32>
    %360 = arith.addf %356, %359 : vector<8x8xf32>
    %361 = arith.addf %360, %18 : vector<8x8xf32>
    %cst_197 = arith.constant dense<0xFF800000> : vector<8xf32>
    %362 = vector.multi_reduction <maximumf>, %361, %cst_197 [1] : vector<8x8xf32> to vector<8xf32>
    %363 = vector.shape_cast %362 : vector<8xf32> to vector<8x1xf32>
    %364 = vector.broadcast %363 : vector<8x1xf32> to vector<8x8xf32>
    %365 = arith.subf %361, %364 : vector<8x8xf32>
    %366 = math.exp %365 : vector<8x8xf32>
    %cst_198 = arith.constant dense<0.000000e+00> : vector<8xf32>
    %367 = vector.multi_reduction <add>, %366, %cst_198 [1] : vector<8x8xf32> to vector<8xf32>
    %368 = vector.shape_cast %367 : vector<8xf32> to vector<8x1xf32>
    %369 = tpu.reciprocal %368 {approx = true} : vector<8x1xf32> -> vector<8x1xf32>
    %370 = vector.broadcast %369 : vector<8x1xf32> to vector<8x8xf32>
    %371 = arith.mulf %366, %370 : vector<8x8xf32>
    %372 = arith.truncf %371 : vector<8x8xf32> to vector<8x8xbf16>
    %cst_199 = arith.constant dense<0.000000e+00> : vector<8x8xf32>
    %373 = tpu.matmul %3, %372, %cst_199 {dimension_numbers = #tpu.dot_dimension_numbers<[1], [0], [0], [1], [0, 0, 1, 1], [], []>} : vector<8x8xbf16>, vector<8x8xbf16>, vector<8x8xf32> -> vector<8x8xf32>
    %374 = arith.truncf %373 : vector<8x8xf32> to vector<8x8xbf16>
    %cst_200 = arith.constant dense<0.000000e+00> : vector<8x8xf32>
    %375 = tpu.matmul %374, %4, %cst_200 {dimension_numbers = #tpu.dot_dimension_numbers<[1], [1], [0], [0], [0, 0, 1, 0], [], []>} : vector<8x8xbf16>, vector<8x8xbf16>, vector<8x8xf32> -> vector<8x8xf32>
    %376 = vector.broadcast %0 : f32 to vector<8x8xf32>
    %377 = arith.mulf %376, %353 : vector<8x8xf32>
    %378 = arith.addf %375, %377 : vector<8x8xf32>
    %c0_201 = arith.constant 0 : index
    %c6 = arith.constant 6 : index
    %c0_202 = arith.constant 0 : index
    %c0_203 = arith.constant 0 : index
    %c0_204 = arith.constant 0 : index
    %379 = vector.load %arg4[%c0_201, %c6, %c0_202, %c0_203, %c0_204] : memref<1x8x1x8x8xf32, #tpu.memory_space<vmem>>, vector<1x1x1x8x8xf32>
    %380 = vector.shape_cast %379 : vector<1x1x1x8x8xf32> to vector<8x8xf32>
    %381 = vector.broadcast %1 : f32 to vector<8x8xf32>
    %382 = arith.mulf %381, %380 : vector<8x8xf32>
    %383 = arith.addf %378, %382 : vector<8x8xf32>
    %384 = arith.truncf %383 : vector<8x8xf32> to vector<8x8xbf16>
    %cst_205 = arith.constant dense<0.000000e+00> : vector<8x4xf32>
    %385 = tpu.matmul %384, %342, %cst_205 {dimension_numbers = #tpu.dot_dimension_numbers<[1], [0], [0], [1], [0, 0, 1, 1], [], []>} : vector<8x8xbf16>, vector<8x4xbf16>, vector<8x4xf32> -> vector<8x4xf32>
    %386 = arith.truncf %385 : vector<8x4xf32> to vector<8x4xbf16>
    %c0_206 = arith.constant 0 : index
    %c0_207 = arith.constant 0 : index
    %c0_208 = arith.constant 0 : index
    %c24_209 = arith.constant 24 : index
    %387 = vector.load %arg8[%c0_206, %c0_207, %c0_208, %c24_209] : memref<1x1x8x32xbf16, #tpu.memory_space<vmem>>, vector<1x1x8x4xbf16>
    %388 = vector.shape_cast %387 : vector<1x1x8x4xbf16> to vector<8x4xbf16>
    %389 = vector.shape_cast %386 : vector<8x4xbf16> to vector<1x1x8x4xbf16>
    tpu.vector_store %arg8[%c0_206, %c0_207, %c0_208, %c24_209], %389 {strides = array<i32>} : memref<1x1x8x32xbf16, #tpu.memory_space<vmem>>, vector<1x1x8x4xbf16>,
    %c0_210 = arith.constant 0 : index
    %c0_211 = arith.constant 0 : index
    %c0_212 = arith.constant 0 : index
    %c28 = arith.constant 28 : index
    %390 = vector.load %arg3[%c0_210, %c0_211, %c0_212, %c28] : memref<1x1x8x96xbf16, #tpu.memory_space<vmem>>, vector<1x1x8x4xbf16>
    %391 = vector.shape_cast %390 : vector<1x1x8x4xbf16> to vector<8x4xbf16>
    %c0_213 = arith.constant 0 : index
    %c0_214 = arith.constant 0 : index
    %c0_215 = arith.constant 0 : index
    %c60 = arith.constant 60 : index
    %392 = vector.load %arg3[%c0_213, %c0_214, %c0_215, %c60] : memref<1x1x8x96xbf16, #tpu.memory_space<vmem>>, vector<1x1x8x4xbf16>
    %393 = vector.shape_cast %392 : vector<1x1x8x4xbf16> to vector<8x4xbf16>
    %c0_216 = arith.constant 0 : index
    %c0_217 = arith.constant 0 : index
    %c0_218 = arith.constant 0 : index
    %c92 = arith.constant 92 : index
    %394 = vector.load %arg3[%c0_216, %c0_217, %c0_218, %c92] : memref<1x1x8x96xbf16, #tpu.memory_space<vmem>>, vector<1x1x8x4xbf16>
    %395 = vector.shape_cast %394 : vector<1x1x8x4xbf16> to vector<8x4xbf16>
    %cst_219 = arith.constant dense<0.000000e+00> : vector<8x8xf32>
    %396 = tpu.matmul %391, %393, %cst_219 {dimension_numbers = #tpu.dot_dimension_numbers<[1], [1], [0], [0], [0, 0, 1, 0], [], []>} : vector<8x4xbf16>, vector<8x4xbf16>, vector<8x8xf32> -> vector<8x8xf32>
    %cst_220 = arith.constant dense<0xFF800000> : vector<8xf32>
    %397 = vector.multi_reduction <maximumf>, %396, %cst_220 [1] : vector<8x8xf32> to vector<8xf32>
    %398 = vector.shape_cast %397 : vector<8xf32> to vector<8x1xf32>
    %399 = vector.broadcast %398 : vector<8x1xf32> to vector<8x8xf32>
    %400 = arith.subf %396, %399 : vector<8x8xf32>
    %401 = math.exp %400 : vector<8x8xf32>
    %cst_221 = arith.constant dense<0.000000e+00> : vector<8xf32>
    %402 = vector.multi_reduction <add>, %401, %cst_221 [1] : vector<8x8xf32> to vector<8xf32>
    %403 = vector.shape_cast %402 : vector<8xf32> to vector<8x1xf32>
    %404 = tpu.reciprocal %403 {approx = true} : vector<8x1xf32> -> vector<8x1xf32>
    %405 = vector.broadcast %404 : vector<8x1xf32> to vector<8x8xf32>
    %406 = arith.mulf %401, %405 : vector<8x8xf32>
    %407 = vector.extract_strided_slice %8 {offsets = [0, 28], sizes = [8, 4], strides = [1, 1]} : vector<16x32xbf16> to vector<8x4xbf16>
    %408 = vector.extract_strided_slice %12 {offsets = [0, 28], sizes = [8, 4], strides = [1, 1]} : vector<16x32xbf16> to vector<8x4xbf16>
    %cst_222 = arith.constant dense<0.000000e+00> : vector<8x8xf32>
    %409 = tpu.matmul %407, %408, %cst_222 {dimension_numbers = #tpu.dot_dimension_numbers<[1], [1], [0], [0], [0, 0, 1, 0], [], []>} : vector<8x4xbf16>, vector<8x4xbf16>, vector<8x8xf32> -> vector<8x8xf32>
    %410 = vector.extract_strided_slice %8 {offsets = [8, 28], sizes = [8, 4], strides = [1, 1]} : vector<16x32xbf16> to vector<8x4xbf16>
    %411 = vector.extract_strided_slice %12 {offsets = [8, 28], sizes = [8, 4], strides = [1, 1]} : vector<16x32xbf16> to vector<8x4xbf16>
    %cst_223 = arith.constant dense<0.000000e+00> : vector<8x8xf32>
    %412 = tpu.matmul %410, %411, %cst_223 {dimension_numbers = #tpu.dot_dimension_numbers<[1], [1], [0], [0], [0, 0, 1, 0], [], []>} : vector<8x4xbf16>, vector<8x4xbf16>, vector<8x8xf32> -> vector<8x8xf32>
    %413 = arith.addf %409, %412 : vector<8x8xf32>
    %414 = arith.addf %413, %18 : vector<8x8xf32>
    %cst_224 = arith.constant dense<0xFF800000> : vector<8xf32>
    %415 = vector.multi_reduction <maximumf>, %414, %cst_224 [1] : vector<8x8xf32> to vector<8xf32>
    %416 = vector.shape_cast %415 : vector<8xf32> to vector<8x1xf32>
    %417 = vector.broadcast %416 : vector<8x1xf32> to vector<8x8xf32>
    %418 = arith.subf %414, %417 : vector<8x8xf32>
    %419 = math.exp %418 : vector<8x8xf32>
    %cst_225 = arith.constant dense<0.000000e+00> : vector<8xf32>
    %420 = vector.multi_reduction <add>, %419, %cst_225 [1] : vector<8x8xf32> to vector<8xf32>
    %421 = vector.shape_cast %420 : vector<8xf32> to vector<8x1xf32>
    %422 = tpu.reciprocal %421 {approx = true} : vector<8x1xf32> -> vector<8x1xf32>
    %423 = vector.broadcast %422 : vector<8x1xf32> to vector<8x8xf32>
    %424 = arith.mulf %419, %423 : vector<8x8xf32>
    %425 = arith.truncf %424 : vector<8x8xf32> to vector<8x8xbf16>
    %cst_226 = arith.constant dense<0.000000e+00> : vector<8x8xf32>
    %426 = tpu.matmul %3, %425, %cst_226 {dimension_numbers = #tpu.dot_dimension_numbers<[1], [0], [0], [1], [0, 0, 1, 1], [], []>} : vector<8x8xbf16>, vector<8x8xbf16>, vector<8x8xf32> -> vector<8x8xf32>
    %427 = arith.truncf %426 : vector<8x8xf32> to vector<8x8xbf16>
    %cst_227 = arith.constant dense<0.000000e+00> : vector<8x8xf32>
    %428 = tpu.matmul %427, %4, %cst_227 {dimension_numbers = #tpu.dot_dimension_numbers<[1], [1], [0], [0], [0, 0, 1, 0], [], []>} : vector<8x8xbf16>, vector<8x8xbf16>, vector<8x8xf32> -> vector<8x8xf32>
    %429 = vector.broadcast %0 : f32 to vector<8x8xf32>
    %430 = arith.mulf %429, %406 : vector<8x8xf32>
    %431 = arith.addf %428, %430 : vector<8x8xf32>
    %c0_228 = arith.constant 0 : index
    %c7 = arith.constant 7 : index
    %c0_229 = arith.constant 0 : index
    %c0_230 = arith.constant 0 : index
    %c0_231 = arith.constant 0 : index
    %432 = vector.load %arg4[%c0_228, %c7, %c0_229, %c0_230, %c0_231] : memref<1x8x1x8x8xf32, #tpu.memory_space<vmem>>, vector<1x1x1x8x8xf32>
    %433 = vector.shape_cast %432 : vector<1x1x1x8x8xf32> to vector<8x8xf32>
    %434 = vector.broadcast %1 : f32 to vector<8x8xf32>
    %435 = arith.mulf %434, %433 : vector<8x8xf32>
    %436 = arith.addf %431, %435 : vector<8x8xf32>
    %437 = arith.truncf %436 : vector<8x8xf32> to vector<8x8xbf16>
    %cst_232 = arith.constant dense<0.000000e+00> : vector<8x4xf32>
    %438 = tpu.matmul %437, %395, %cst_232 {dimension_numbers = #tpu.dot_dimension_numbers<[1], [0], [0], [1], [0, 0, 1, 1], [], []>} : vector<8x8xbf16>, vector<8x4xbf16>, vector<8x4xf32> -> vector<8x4xf32>
    %439 = arith.truncf %438 : vector<8x4xf32> to vector<8x4xbf16>
    %c0_233 = arith.constant 0 : index
    %c0_234 = arith.constant 0 : index
    %c0_235 = arith.constant 0 : index
    %c28_236 = arith.constant 28 : index
    %440 = vector.load %arg8[%c0_233, %c0_234, %c0_235, %c28_236] : memref<1x1x8x32xbf16, #tpu.memory_space<vmem>>, vector<1x1x8x4xbf16>
    %441 = vector.shape_cast %440 : vector<1x1x8x4xbf16> to vector<8x4xbf16>
    %442 = vector.shape_cast %439 : vector<8x4xbf16> to vector<1x1x8x4xbf16>
    tpu.vector_store %arg8[%c0_233, %c0_234, %c0_235, %c28_236], %442 {strides = array<i32>} : memref<1x1x8x32xbf16, #tpu.memory_space<vmem>>, vector<1x1x8x4xbf16>,
    return
  }
  func.func @transform_0(%arg0: i32, %arg1: i32) -> i32 {
    %c0_i32 = arith.constant 0 : i32
    %c0_i32_0 = arith.constant 0 : i32
    return %c0_i32 : i32
  }
  func.func @transform_1(%arg0: i32, %arg1: i32) -> (i32, i32, i32, i32) {
    %c0_i32 = arith.constant 0 : i32
    %c0_i32_0 = arith.constant 0 : i32
    %c0_i32_1 = arith.constant 0 : i32
    return %arg0, %arg1, %c0_i32, %c0_i32_0 : i32, i32, i32, i32
  }
  func.func @transform_2(%arg0: i32, %arg1: i32) -> (i32, i32, i32, i32, i32) {
    %c0_i32 = arith.constant 0 : i32
    %c0_i32_0 = arith.constant 0 : i32
    %c0_i32_1 = arith.constant 0 : i32
    %c0_i32_2 = arith.constant 0 : i32
    return %arg0, %c0_i32, %arg1, %c0_i32_0, %c0_i32_1 : i32, i32, i32, i32, i32
  }
  func.func @transform_3(%arg0: i32, %arg1: i32) -> (i32, i32) {
    %c0_i32 = arith.constant 0 : i32
    %c0_i32_0 = arith.constant 0 : i32
    %c0_i32_1 = arith.constant 0 : i32
    return %c0_i32, %c0_i32_0 : i32, i32
  }
  func.func @transform_4(%arg0: i32, %arg1: i32) -> (i32, i32) {
    %c0_i32 = arith.constant 0 : i32
    %c0_i32_0 = arith.constant 0 : i32
    %c0_i32_1 = arith.constant 0 : i32
    return %c0_i32, %c0_i32_0 : i32, i32
  }
  func.func @transform_5(%arg0: i32, %arg1: i32) -> (i32, i32) {
    %c0_i32 = arith.constant 0 : i32
    %c0_i32_0 = arith.constant 0 : i32
    %c0_i32_1 = arith.constant 0 : i32
    return %c0_i32, %c0_i32_0 : i32, i32
  }
  func.func @transform_6(%arg0: i32, %arg1: i32) -> (i32, i32, i32, i32) {
    %c0_i32 = arith.constant 0 : i32
    %c0_i32_0 = arith.constant 0 : i32
    %c0_i32_1 = arith.constant 0 : i32
    return %arg0, %arg1, %c0_i32, %c0_i32_0 : i32, i32, i32, i32
  }
}

</mosaic_0001>

<llo_original>
// kernel: frequency_aware_sum_attention.5
$region0: #{frequency_aware_sum_attention.5}
  #allocation0 [shape = 'u32[]', space=smem, size = 0x4, offset = 0x4, fixed_abs, tag = 'smem constant byte address 0x4 - core index']
  #allocation1 [shape = 'u32[144,128]{1,0:T(1,128)}', space=vmem, size = 0x12000, scoped, tag = 'internal scratch']
  %s0 = inlined_call_operand.hbm [shape: bf16[64,32], index: 0, kind: input, shape index: {}]
  %s1 = inlined_call_operand.hbm [shape: bf16[32,32], index: 1, kind: input, shape index: {}]
  %s2 = inlined_call_operand.hbm [shape: f32[1,32], index: 2, kind: input, shape index: {}]
  %s3 = inlined_call_operand.hbm [shape: f32[64,32], index: 3, kind: output, shape index: {}]
  %s4 = sld [smem:[#allocation0]]
  $region34: #{frequency_aware_sum_attention.5} parent=0
    _
  %s6 = ssub.s32 1, %s4
  %s7 = scalar_select 0, %s6, %s4
  $region1: #{frequency_aware_sum_attention.5} parent=0
    #allocation2 [shape = 'u8[16384]{0}', space=vmem, size = 0x4000, scoped, tag = 'input window, operand 0, single buffered']
    #allocation3 [shape = 's32[1]{0}', space=sflag, size = 0x4, scoped, tag = 'scoped memory for frequency_aware_sum_attention.5']
    #allocation4 [shape = 's32[1]{0}', space=sflag, size = 0x4, scoped, tag = 'scoped memory for frequency_aware_sum_attention.5']
    #allocation5 [shape = 'u8[8192]{0}', space=vmem, size = 0x2000, scoped, tag = 'input window, operand 1, single buffered']
    #allocation6 [shape = 's32[1]{0}', space=sflag, size = 0x4, scoped, tag = 'scoped memory for frequency_aware_sum_attention.5']
    #allocation7 [shape = 'u8[512]{0}', space=vmem, size = 0x400, scoped, tag = 'input window, operand 2, single buffered']
    #allocation8 [shape = 'u8[32768]{0}', space=vmem, size = 0x8000, scoped, tag = 'output window, operand 0, single buffered']
    %8 = vsyncpa [#allocation3], 0
    %9 = vsyncpa [#allocation6], 0
    %10 = vsyncpa [#allocation4], 0
    // Predicated region
    $region2: #{frequency_aware_sum_attention.5} parent=1 // pred_check
      _
    $region3: #{frequency_aware_sum_attention.5} parent=1 // pred_check_branch
      %12 = sbr.rel (0) target = $region5
    $region4: #{frequency_aware_sum_attention.5} parent=1 // pred_region
      %s14 = ssub.s32 512, 512
      %15 = vsyncadd [#allocation3], %s14
      %s16 = sshll.u32 [#allocation2], 4
      %s17 = int_to_ptr.vmem [resolvable:$true] %s16
      %22 = dma.hbm_to_vmem [thread:$0]  %s0, 512, %s17, [#allocation3], 64, 64, 4
    $region5: #{frequency_aware_sum_attention.5} parent=1 // pred_fallthru
      _
    // Predicated region
    $region6: #{frequency_aware_sum_attention.5} parent=1 // pred_check
      _
    $region7: #{frequency_aware_sum_attention.5} parent=1 // pred_check_branch
      %24 = sbr.rel (0) target = $region9
    $region8: #{frequency_aware_sum_attention.5} parent=1 // pred_region
      %s26 = ssub.s32 256, 256
      %27 = vsyncadd [#allocation6], %s26
      %s28 = sshll.u32 [#allocation5], 4
      %s29 = int_to_ptr.vmem [resolvable:$true] %s28
      %34 = dma.hbm_to_vmem [thread:$0]  %s1, 256, %s29, [#allocation6], 64, 64, 4
    $region9: #{frequency_aware_sum_attention.5} parent=1 // pred_fallthru
      _
    // Predicated region
    $region10: #{frequency_aware_sum_attention.5} parent=1 // pred_check
      _
    $region11: #{frequency_aware_sum_attention.5} parent=1 // pred_check_branch
      %36 = sbr.rel (0) target = $region13
    $region12: #{frequency_aware_sum_attention.5} parent=1 // pred_region
      %s38 = ssub.s32 16, 16
      %39 = vsyncadd [#allocation6], %s38
      %s41 = sshll.u32 [#allocation7], 4
      %s42 = int_to_ptr.vmem [resolvable:$true] %s41
      %44 = dma.hbm_to_vmem [thread:$0]  %s2, 16, %s42, [#allocation6]
    $region13: #{frequency_aware_sum_attention.5} parent=1 // pred_fallthru
      _
    // Predicated region
    $region14: #{frequency_aware_sum_attention.5} parent=1 // pred_check
      _
    $region15: #{frequency_aware_sum_attention.5} parent=1 // pred_check_branch
      %46 = sbr.rel (0) target = $region17
    $region16: #{frequency_aware_sum_attention.5} parent=1 // pred_region
      %47 = dma.done [#allocation3], 512
    $region17: #{frequency_aware_sum_attention.5} parent=1 // pred_fallthru
      _
    // Predicated region
    $region18: #{frequency_aware_sum_attention.5} parent=1 // pred_check
      _
    $region19: #{frequency_aware_sum_attention.5} parent=1 // pred_check_branch
      %49 = sbr.rel (0) target = $region21
    $region20: #{frequency_aware_sum_attention.5} parent=1 // pred_region
      %50 = dma.done [#allocation6], 256
    $region21: #{frequency_aware_sum_attention.5} parent=1 // pred_fallthru
      _
    // Predicated region
    $region22: #{frequency_aware_sum_attention.5} parent=1 // pred_check
      _
    $region23: #{frequency_aware_sum_attention.5} parent=1 // pred_check_branch
      %52 = sbr.rel (0) target = $region25
    $region24: #{frequency_aware_sum_attention.5} parent=1 // pred_region
      %53 = dma.done [#allocation6], 16
    $region25: #{frequency_aware_sum_attention.5} parent=1 // pred_fallthru
      _
    %v55 = vld [vmem:[#allocation2] sm:$0xf]
    %v56 = vld [vmem:[#allocation2 + $0x4] sm:$0xf]
    %v57 = vld [vmem:[#allocation2 + $0x8] sm:$0xf]
    %v58 = vld [vmem:[#allocation2 + $0xc] sm:$0xf]
    %v59 = vld [vmem:[#allocation2 + $0x10] sm:$0xf]
    %v60 = vld [vmem:[#allocation2 + $0x14] sm:$0xf]
    %v61 = vld [vmem:[#allocation2 + $0x18] sm:$0xf]
    %v62 = vld [vmem:[#allocation2 + $0x1c] sm:$0xf]
    %v63 = vld [vmem:[#allocation5] sm:$0xf]
    %v64 = vld [vmem:[#allocation5 + $0x4] sm:$0xf]
    %v65 = vld [vmem:[#allocation5 + $0x8] sm:$0xf]
    %v66 = vld [vmem:[#allocation5 + $0xc] sm:$0xf]
    %v67 = vld [vmem:[#allocation7] sm:$0x1]
    %v69 = vlaneseq
    %v70 = vshrl.u32 %v69, 7
    %v71 = vsub.s32 0, %v70
    %v72 = vrot.slane %v67, %v71
    %v82 = vunpack.c.l.b16 %v55
    %v83 = vunpack.c.l.b16 %v56
    %v84 = vunpack.c.l.b16 %v57
    %v85 = vunpack.c.l.b16 %v58
    %v86 = vunpack.c.l.b16 %v59
    %v87 = vunpack.c.l.b16 %v60
    %v88 = vunpack.c.l.b16 %v61
    %v89 = vunpack.c.l.b16 %v62
    %v90 = vpack.c.b16 %v83, %v82
    %v91 = vpack.c.b16 %v85, %v84
    %v92 = vpack.c.b16 %v87, %v86
    %v93 = vpack.c.b16 %v89, %v88
    %v98 = vunpack.c.l.b16 %v63
    %v99 = vunpack.c.l.b16 %v64
    %v100 = vunpack.c.l.b16 %v65
    %v101 = vunpack.c.l.b16 %v66
    %v102 = vpack.c.b16 %v99, %v98
    %v103 = vpack.c.b16 %v101, %v100
    %vm106 = vcmask 261120
    %v108 = vsel %vm106, %v90, 0
    %v111 = vsel %vm106, %v91, 0
    %v114 = vsel %vm106, %v92, 0
    %v117 = vsel %vm106, %v93, 0
    %119 = vmatprep.subr.bf16.mxu0 0
    %120 = vmatpush1.bf16.msra.mxu0 %v102
    %121 = vmatprep.subr.bf16.mxu0 0
    %122 = vmatpush1.bf16.msra.mxu0 %v103
    %123 = vmatprep.subr.bf16.mxu0 0
    %124 = vmatpush1.bf16.msra.mxu0 0
    %125 = vmatprep.subr.bf16.mxu0 0
    %126 = vmatpush1.bf16.msra.mxu0 0
    %127 = vmatprep.subr.bf16.mxu0 0
    %128 = vmatpush1.bf16.msra.mxu0 0
    %129 = vmatprep.subr.bf16.mxu0 0
    %130 = vmatpush1.bf16.msra.mxu0 0
    %131 = vmatprep.subr.bf16.mxu0 0
    %132 = vmatpush1.bf16.msra.mxu0 0
    %133 = vmatprep.subr.bf16.mxu0 0
    %134 = vmatpush1.bf16.msra.mxu0 0
    %135 = vmatprep.subr.bf16.mxu0 0
    %136 = vmatpush1.bf16.msra.mxu0 0
    %137 = vmatprep.subr.bf16.mxu0 0
    %138 = vmatpush1.bf16.msra.mxu0 0
    %139 = vmatprep.subr.bf16.mxu0 0
    %140 = vmatpush1.bf16.msra.mxu0 0
    %141 = vmatprep.subr.bf16.mxu0 0
    %142 = vmatpush1.bf16.msra.mxu0 0
    %143 = vmatprep.subr.bf16.mxu0 0
    %144 = vmatpush1.bf16.msra.mxu0 0
    %145 = vmatprep.subr.bf16.mxu0 0
    %146 = vmatpush1.bf16.msra.mxu0 0
    %147 = vmatprep.subr.bf16.mxu0 0
    %148 = vmatpush1.bf16.msra.mxu0 0
    %149 = vmatprep.subr.bf16.mxu0 0
    %150 = vmatpush1.bf16.msra.mxu0 0
    %151 = vmatprep.mubr.bf16.mxu0 0
    %152 = vmatmul.mubr.bf16.gmra.mrb[0].mxu0 %v108
    %v153 = vpop.f32.mrb[0].mxu0
    %v154 = vadd.f32 %v72, %v153
    %v155 = vpop.f32.mrb[0].mxu0
    %v156 = vpop.f32.mrb[0].mxu0
    %v157 = vadd.f32 %v72, %v156
    %v158 = vpop.f32.mrb[0].mxu0
    %159 = vmatprep.mubr.bf16.mxu0 0
    %160 = vmatmul.mubr.bf16.gmra.mrb[0].mxu0 %v111
    %v161 = vpop.f32.mrb[0].mxu0
    %v162 = vadd.f32 %v72, %v161
    %v163 = vpop.f32.mrb[0].mxu0
    %v164 = vpop.f32.mrb[0].mxu0
    %v165 = vadd.f32 %v72, %v164
    %v166 = vpop.f32.mrb[0].mxu0
    %167 = vmatprep.mubr.bf16.mxu0 0
    %168 = vmatmul.mubr.bf16.gmra.mrb[0].mxu0 %v114
    %v169 = vpop.f32.mrb[0].mxu0
    %v170 = vadd.f32 %v72, %v169
    %v171 = vpop.f32.mrb[0].mxu0
    %v172 = vpop.f32.mrb[0].mxu0
    %v173 = vadd.f32 %v72, %v172
    %v174 = vpop.f32.mrb[0].mxu0
    %175 = vmatprep.mubr.bf16.mxu0 0
    %176 = vmatmul.mubr.bf16.gmra.mrb[0].mxu0 %v117
    %v177 = vpop.f32.mrb[0].mxu0
    %v178 = vadd.f32 %v72, %v177
    %v179 = vpop.f32.mrb[0].mxu0
    %v180 = vpop.f32.mrb[0].mxu0
    %v181 = vadd.f32 %v72, %v180
    %v182 = vpop.f32.mrb[0].mxu0
    %183 = vdwg.mxu0
    %184 = vst.msk [vmem:[#allocation8] sm:$0xff] %vm106, %v154
    %185 = vst.msk [vmem:[#allocation8 + $0x8] sm:$0xff] %vm106, %v157
    %186 = vst.msk [vmem:[#allocation8 + $0x10] sm:$0xff] %vm106, %v162
    %187 = vst.msk [vmem:[#allocation8 + $0x18] sm:$0xff] %vm106, %v165
    %188 = vst.msk [vmem:[#allocation8 + $0x20] sm:$0xff] %vm106, %v170
    %189 = vst.msk [vmem:[#allocation8 + $0x28] sm:$0xff] %vm106, %v173
    %190 = vst.msk [vmem:[#allocation8 + $0x30] sm:$0xff] %vm106, %v178
    %191 = vst.msk [vmem:[#allocation8 + $0x38] sm:$0xff] %vm106, %v181
    // Predicated region
    $region26: #{frequency_aware_sum_attention.5} parent=1 // pred_check
      _
    $region27: #{frequency_aware_sum_attention.5} parent=1 // pred_check_branch
      %193 = sbr.rel (0) target = $region29
    $region28: #{frequency_aware_sum_attention.5} parent=1 // pred_region
      %s195 = ssub.s32 1024, 1024
      %196 = vsyncadd [#allocation4], %s195
      %s197 = sshll.u32 [#allocation8], 4
      %s198 = int_to_ptr.vmem [resolvable:$true] %s197
      %203 = dma.vmem_to_hbm [thread:$0]  %s198, 1024, %s3, [#allocation4], 128, 128, 8
    $region29: #{frequency_aware_sum_attention.5} parent=1 // pred_fallthru
      _
    // Predicated region
    $region30: #{frequency_aware_sum_attention.5} parent=1 // pred_check
      _
    $region31: #{frequency_aware_sum_attention.5} parent=1 // pred_check_branch
      %205 = sbr.rel (0) target = $region33
    $region32: #{frequency_aware_sum_attention.5} parent=1 // pred_region
      %206 = dma.done [#allocation4], 1024
    $region33: #{frequency_aware_sum_attention.5} parent=1 // pred_fallthru
      _
    %207 = vsyncpa [#allocation3], 1
    %208 = vsyncpa [#allocation6], 1
    %209 = vsyncpa [#allocation4], 1

// kernel: frequency_aware_sum_attention.3
$region0: #{frequency_aware_sum_attention.3}
  #allocation0 [shape = 'u32[]', space=smem, size = 0x4, offset = 0x4, fixed_abs, tag = 'smem constant byte address 0x4 - core index']
  #allocation1 [shape = 'u32[144,128]{1,0:T(1,128)}', space=vmem, size = 0x12000, scoped, tag = 'internal scratch']
  %s0 = inlined_call_operand.hbm [shape: bf16[64,32], index: 0, kind: input, shape index: {}]
  %s1 = inlined_call_operand.hbm [shape: bf16[32,96], index: 1, kind: input, shape index: {}]
  %s2 = inlined_call_operand.hbm [shape: bf16[64,96], index: 2, kind: output, shape index: {}]
  %s3 = sld [smem:[#allocation0]]
  $region26: #{frequency_aware_sum_attention.3} parent=0
    _
  %s5 = ssub.s32 1, %s3
  %s6 = scalar_select 0, %s5, %s3
  $region1: #{frequency_aware_sum_attention.3} parent=0
    #allocation2 [shape = 'u8[16384]{0}', space=vmem, size = 0x4000, scoped, tag = 'input window, operand 0, single buffered']
    #allocation3 [shape = 's32[1]{0}', space=sflag, size = 0x4, scoped, tag = 'scoped memory for frequency_aware_sum_attention.3']
    #allocation4 [shape = 's32[1]{0}', space=sflag, size = 0x4, scoped, tag = 'scoped memory for frequency_aware_sum_attention.3']
    #allocation5 [shape = 'u8[8192]{0}', space=vmem, size = 0x2000, scoped, tag = 'input window, operand 1, single buffered']
    #allocation6 [shape = 's32[1]{0}', space=sflag, size = 0x4, scoped, tag = 'scoped memory for frequency_aware_sum_attention.3']
    #allocation7 [shape = 'u8[16384]{0}', space=vmem, size = 0x4000, scoped, tag = 'output window, operand 0, single buffered']
    %7 = vsyncpa [#allocation3], 0
    %8 = vsyncpa [#allocation6], 0
    %9 = vsyncpa [#allocation4], 0
    // Predicated region
    $region2: #{frequency_aware_sum_attention.3} parent=1 // pred_check
      _
    $region3: #{frequency_aware_sum_attention.3} parent=1 // pred_check_branch
      %11 = sbr.rel (0) target = $region5
    $region4: #{frequency_aware_sum_attention.3} parent=1 // pred_region
      %s13 = ssub.s32 512, 512
      %14 = vsyncadd [#allocation3], %s13
      %s15 = sshll.u32 [#allocation2], 4
      %s16 = int_to_ptr.vmem [resolvable:$true] %s15
      %21 = dma.hbm_to_vmem [thread:$0]  %s0, 512, %s16, [#allocation3], 64, 64, 4
    $region5: #{frequency_aware_sum_attention.3} parent=1 // pred_fallthru
      _
    // Predicated region
    $region6: #{frequency_aware_sum_attention.3} parent=1 // pred_check
      _
    $region7: #{frequency_aware_sum_attention.3} parent=1 // pred_check_branch
      %23 = sbr.rel (0) target = $region9
    $region8: #{frequency_aware_sum_attention.3} parent=1 // pred_region
      %s25 = ssub.s32 256, 256
      %26 = vsyncadd [#allocation6], %s25
      %s27 = sshll.u32 [#allocation5], 4
      %s28 = int_to_ptr.vmem [resolvable:$true] %s27
      %33 = dma.hbm_to_vmem [thread:$0]  %s1, 256, %s28, [#allocation6], 64, 64, 4
    $region9: #{frequency_aware_sum_attention.3} parent=1 // pred_fallthru
      _
    // Predicated region
    $region10: #{frequency_aware_sum_attention.3} parent=1 // pred_check
      _
    $region11: #{frequency_aware_sum_attention.3} parent=1 // pred_check_branch
      %35 = sbr.rel (0) target = $region13
    $region12: #{frequency_aware_sum_attention.3} parent=1 // pred_region
      %36 = dma.done [#allocation3], 512
    $region13: #{frequency_aware_sum_attention.3} parent=1 // pred_fallthru
      _
    // Predicated region
    $region14: #{frequency_aware_sum_attention.3} parent=1 // pred_check
      _
    $region15: #{frequency_aware_sum_attention.3} parent=1 // pred_check_branch
      %38 = sbr.rel (0) target = $region17
    $region16: #{frequency_aware_sum_attention.3} parent=1 // pred_region
      %39 = dma.done [#allocation6], 256
    $region17: #{frequency_aware_sum_attention.3} parent=1 // pred_fallthru
      _
    %v41 = vld [vmem:[#allocation2] sm:$0xf]
    %v42 = vld [vmem:[#allocation2 + $0x4] sm:$0xf]
    %v43 = vld [vmem:[#allocation2 + $0x8] sm:$0xf]
    %v44 = vld [vmem:[#allocation2 + $0xc] sm:$0xf]
    %v45 = vld [vmem:[#allocation2 + $0x10] sm:$0xf]
    %v46 = vld [vmem:[#allocation2 + $0x14] sm:$0xf]
    %v47 = vld [vmem:[#allocation2 + $0x18] sm:$0xf]
    %v48 = vld [vmem:[#allocation2 + $0x1c] sm:$0xf]
    %v49 = vld [vmem:[#allocation5] sm:$0xf]
    %v50 = vld [vmem:[#allocation5 + $0x4] sm:$0xf]
    %v51 = vld [vmem:[#allocation5 + $0x8] sm:$0xf]
    %v52 = vld [vmem:[#allocation5 + $0xc] sm:$0xf]
    %v61 = vunpack.c.l.b16 %v41
    %v62 = vunpack.c.l.b16 %v42
    %v63 = vunpack.c.l.b16 %v43
    %v64 = vunpack.c.l.b16 %v44
    %v65 = vunpack.c.l.b16 %v45
    %v66 = vunpack.c.l.b16 %v46
    %v67 = vunpack.c.l.b16 %v47
    %v68 = vunpack.c.l.b16 %v48
    %v69 = vpack.c.b16 %v62, %v61
    %v70 = vpack.c.b16 %v64, %v63
    %v71 = vpack.c.b16 %v66, %v65
    %v72 = vpack.c.b16 %v68, %v67
    %v77 = vunpack.c.l.b16 %v49
    %v78 = vunpack.c.l.b16 %v50
    %v79 = vunpack.c.l.b16 %v51
    %v80 = vunpack.c.l.b16 %v52
    %v81 = vpack.c.b16 %v78, %v77
    %v82 = vpack.c.b16 %v80, %v79
    %vm85 = vcmask 261120
    %v87 = vsel %vm85, %v69, 0
    %v90 = vsel %vm85, %v70, 0
    %v93 = vsel %vm85, %v71, 0
    %v96 = vsel %vm85, %v72, 0
    %98 = vmatprep.subr.bf16.mxu0 0
    %99 = vmatpush1.bf16.msra.mxu0 %v81
    %100 = vmatprep.subr.bf16.mxu0 0
    %101 = vmatpush1.bf16.msra.mxu0 %v82
    %102 = vmatprep.subr.bf16.mxu0 0
    %103 = vmatpush1.bf16.msra.mxu0 0
    %104 = vmatprep.subr.bf16.mxu0 0
    %105 = vmatpush1.bf16.msra.mxu0 0
    %106 = vmatprep.subr.bf16.mxu0 0
    %107 = vmatpush1.bf16.msra.mxu0 0
    %108 = vmatprep.subr.bf16.mxu0 0
    %109 = vmatpush1.bf16.msra.mxu0 0
    %110 = vmatprep.subr.bf16.mxu0 0
    %111 = vmatpush1.bf16.msra.mxu0 0
    %112 = vmatprep.subr.bf16.mxu0 0
    %113 = vmatpush1.bf16.msra.mxu0 0
    %114 = vmatprep.subr.bf16.mxu0 0
    %115 = vmatpush1.bf16.msra.mxu0 0
    %116 = vmatprep.subr.bf16.mxu0 0
    %117 = vmatpush1.bf16.msra.mxu0 0
    %118 = vmatprep.subr.bf16.mxu0 0
    %119 = vmatpush1.bf16.msra.mxu0 0
    %120 = vmatprep.subr.bf16.mxu0 0
    %121 = vmatpush1.bf16.msra.mxu0 0
    %122 = vmatprep.subr.bf16.mxu0 0
    %123 = vmatpush1.bf16.msra.mxu0 0
    %124 = vmatprep.subr.bf16.mxu0 0
    %125 = vmatpush1.bf16.msra.mxu0 0
    %126 = vmatprep.subr.bf16.mxu0 0
    %127 = vmatpush1.bf16.msra.mxu0 0
    %128 = vmatprep.subr.bf16.mxu0 0
    %129 = vmatpush1.bf16.msra.mxu0 0
    %130 = vmatprep.mubr.bf16.mxu0 0
    %131 = vmatmul.mubr.bf16.gmra.mrb[0].mxu0 %v87
    %v132 = vpop.f32.mrb[0].mxu0
    %v133 = vadd.f32 0.0, %v132
    %v134 = vpop.f32.mrb[0].mxu0
    %v135 = vpop.f32.mrb[0].mxu0
    %v136 = vadd.f32 0.0, %v135
    %v137 = vpop.f32.mrb[0].mxu0
    %138 = vmatprep.mubr.bf16.mxu0 0
    %139 = vmatmul.mubr.bf16.gmra.mrb[0].mxu0 %v90
    %v140 = vpop.f32.mrb[0].mxu0
    %v141 = vadd.f32 0.0, %v140
    %v142 = vpop.f32.mrb[0].mxu0
    %v143 = vpop.f32.mrb[0].mxu0
    %v144 = vadd.f32 0.0, %v143
    %v145 = vpop.f32.mrb[0].mxu0
    %146 = vmatprep.mubr.bf16.mxu0 0
    %147 = vmatmul.mubr.bf16.gmra.mrb[0].mxu0 %v93
    %v148 = vpop.f32.mrb[0].mxu0
    %v149 = vadd.f32 0.0, %v148
    %v150 = vpop.f32.mrb[0].mxu0
    %v151 = vpop.f32.mrb[0].mxu0
    %v152 = vadd.f32 0.0, %v151
    %v153 = vpop.f32.mrb[0].mxu0
    %154 = vmatprep.mubr.bf16.mxu0 0
    %155 = vmatmul.mubr.bf16.gmra.mrb[0].mxu0 %v96
    %v156 = vpop.f32.mrb[0].mxu0
    %v157 = vadd.f32 0.0, %v156
    %v158 = vpop.f32.mrb[0].mxu0
    %v159 = vpop.f32.mrb[0].mxu0
    %v160 = vadd.f32 0.0, %v159
    %v161 = vpop.f32.mrb[0].mxu0
    %162 = vdwg.mxu0
    %v163 = vpack.c.bf16 %v136, %v133
    %v164 = vpack.c.bf16 %v144, %v141
    %v165 = vpack.c.bf16 %v152, %v149
    %v166 = vpack.c.bf16 %v160, %v157
    %v171 = vunpack.c.l.b16 %v163
    %v172 = vunpack.c.h.b16 %v163
    %v173 = vunpack.c.l.b16 %v164
    %v174 = vunpack.c.h.b16 %v164
    %v175 = vunpack.c.l.b16 %v165
    %v176 = vunpack.c.h.b16 %v165
    %v177 = vunpack.c.l.b16 %v166
    %v178 = vunpack.c.h.b16 %v166
    %v179 = vpack.c.b16 %v171, %v171
    %v180 = vpack.c.b16 %v172, %v172
    %v181 = vpack.c.b16 %v173, %v173
    %v182 = vpack.c.b16 %v174, %v174
    %v183 = vpack.c.b16 %v175, %v175
    %v184 = vpack.c.b16 %v176, %v176
    %v185 = vpack.c.b16 %v177, %v177
    %v186 = vpack.c.b16 %v178, %v178
    %vm195 = vcmask 781312
    %196 = vst.msk [vmem:[#allocation7] sm:$0xf] %vm195, %v179
    %197 = vst.msk [vmem:[#allocation7 + $0x4] sm:$0xf] %vm195, %v180
    %198 = vst.msk [vmem:[#allocation7 + $0x8] sm:$0xf] %vm195, %v181
    %199 = vst.msk [vmem:[#allocation7 + $0xc] sm:$0xf] %vm195, %v182
    %200 = vst.msk [vmem:[#allocation7 + $0x10] sm:$0xf] %vm195, %v183
    %201 = vst.msk [vmem:[#allocation7 + $0x14] sm:$0xf] %vm195, %v184
    %202 = vst.msk [vmem:[#allocation7 + $0x18] sm:$0xf] %vm195, %v185
    %203 = vst.msk [vmem:[#allocation7 + $0x1c] sm:$0xf] %vm195, %v186
    // Predicated region
    $region18: #{frequency_aware_sum_attention.3} parent=1 // pred_check
      _
    $region19: #{frequency_aware_sum_attention.3} parent=1 // pred_check_branch
      %205 = sbr.rel (0) target = $region21
    $region20: #{frequency_aware_sum_attention.3} parent=1 // pred_region
      %s207 = ssub.s32 512, 512
      %208 = vsyncadd [#allocation4], %s207
      %s209 = sshll.u32 [#allocation7], 4
      %s210 = int_to_ptr.vmem [resolvable:$true] %s209
      %215 = dma.vmem_to_hbm [thread:$0]  %s210, 512, %s2, [#allocation4], 64, 64, 4
    $region21: #{frequency_aware_sum_attention.3} parent=1 // pred_fallthru
      _
    // Predicated region
    $region22: #{frequency_aware_sum_attention.3} parent=1 // pred_check
      _
    $region23: #{frequency_aware_sum_attention.3} parent=1 // pred_check_branch
      %217 = sbr.rel (0) target = $region25
    $region24: #{frequency_aware_sum_attention.3} parent=1 // pred_region
      %218 = dma.done [#allocation4], 512
    $region25: #{frequency_aware_sum_attention.3} parent=1 // pred_fallthru
      _
    %219 = vsyncpa [#allocation3], 1
    %220 = vsyncpa [#allocation6], 1
    %221 = vsyncpa [#allocation4], 1

// kernel: frequency_aware_sum_attention.4
$region0: #{frequency_aware_sum_attention.4}
  #allocation0 [shape = 'u32[]', space=smem, size = 0x4, offset = 0x4, fixed_abs, tag = 'smem constant byte address 0x4 - core index']
  #allocation1 [shape = 'u32[144,128]{1,0:T(1,128)}', space=vmem, size = 0x12000, scoped, tag = 'internal scratch']
  %s0 = inlined_call_operand.hbm [shape: f32[2], index: 0, kind: input, shape index: {}]
  %s1 = inlined_call_operand.hbm [shape: bf16[2,4,8,96], index: 1, kind: input, shape index: {}]
  %s2 = inlined_call_operand.hbm [shape: f32[2,8,4,8,8], index: 2, kind: input, shape index: {}]
  %s3 = inlined_call_operand.hbm [shape: bf16[16,8], index: 3, kind: input, shape index: {}]
  %s4 = inlined_call_operand.hbm [shape: bf16[8,8], index: 4, kind: input, shape index: {}]
  %s5 = inlined_call_operand.hbm [shape: bf16[8,8], index: 5, kind: input, shape index: {}]
  %s6 = inlined_call_operand.hbm [shape: bf16[2,4,8,32], index: 6, kind: output, shape index: {}]
  %s7 = sld [smem:[#allocation0]]
  $region81: #{frequency_aware_sum_attention.4} parent=0
    _
  %s9 = ssub.s32 1, %s7
  %s10 = scalar_select 0, %s9, %s7
  $region1: #{frequency_aware_sum_attention.4} parent=0
    #allocation2 [shape = 'u8[512]{0}', space=smem, size = 0x200, scoped, tag = 'input window, operand 0, single buffered']
    #allocation3 [shape = 's32[2]{0}', space=sflag, size = 0x8, scoped, tag = 'scoped memory for frequency_aware_sum_attention.4']
    #allocation4 [shape = 's32[2]{0}', space=sflag, size = 0x8, scoped, tag = 'scoped memory for frequency_aware_sum_attention.4']
    #allocation5 [shape = 's32[2]{0}', space=sflag, size = 0x8, scoped, tag = 'scoped memory for frequency_aware_sum_attention.4']
    #allocation6 [shape = 'u8[4096]{0}', space=vmem, size = 0x1000, scoped, tag = 'input window, operand 1']
    #allocation7 [shape = 'u8[65536]{0}', space=vmem, size = 0x10000, scoped, tag = 'input window, operand 2']
    #allocation8 [shape = 's32[2]{0}', space=sflag, size = 0x8, scoped, tag = 'scoped memory for frequency_aware_sum_attention.4']
    #allocation9 [shape = 'u8[4096]{0}', space=vmem, size = 0x1000, scoped, tag = 'input window, operand 3, single buffered']
    #allocation10 [shape = 'u8[2048]{0}', space=vmem, size = 0x800, scoped, tag = 'input window, operand 4, single buffered']
    #allocation11 [shape = 's32[1]{0}', space=sflag, size = 0x4, scoped, tag = 'scoped memory for frequency_aware_sum_attention.4']
    #allocation12 [shape = 'u8[2048]{0}', space=vmem, size = 0x800, scoped, tag = 'input window, operand 5, single buffered']
    #allocation13 [shape = 'u8[4096]{0}', space=vmem, size = 0x1000, scoped, tag = 'output window, operand 0']
    %11 = vsyncpa [#allocation5], 0
    %12 = vsyncpa [#allocation3], 0
    %s13 = scalar_lea.sflag [#allocation3], 1
    %14 = vsyncpa %s13, 0
    %15 = vsyncpa [#allocation8], 0
    %s16 = scalar_lea.sflag [#allocation8], 1
    %17 = vsyncpa %s16, 0
    %18 = vsyncpa [#allocation11], 0
    %19 = vsyncpa [#allocation4], 0
    %s20 = scalar_lea.sflag [#allocation4], 1
    %21 = vsyncpa %s20, 0
    loop: start=0, step=1, limit=10
    $region2: #{frequency_aware_sum_attention.4} parent=1 // loop_pre_header
      _
    $region3: #{frequency_aware_sum_attention.4} parent=1 // loop_header
      %s23 = sphi 0, %s27
      %p24 = scmp.ge.s32.totalorder %s23, 10
      %s30 = sphi 0, %s42
      %s31 = sphi 0, %s38
      %s32 = sphi 0, %s30
      %s33 = sphi 0, %s31
      %s34 = sphi 0, %s32
      %s35 = sphi 0, %s33
      %s43 = sphi 0, %s43
      %s45 = sphi 0, %s43
      %s46 = sphi 0, %s45
      %s60 = sphi 0, %s46
      %s68 = sphi 0, %s70
      %s71 = sphi 0, %s68
      %s72 = sphi 0, %s71
      %s88 = sphi 0, %s72
      %s96 = sphi 0, %s98
      %s99 = sphi 0, %s96
      %s100 = sphi 0, %s99
      %s116 = sphi 0, %s100
      %s120 = sphi 0, %s120
      %s122 = sphi 0, %s120
      %s123 = sphi 0, %s122
      %s137 = sphi 0, %s123
      %s141 = sphi 0, %s141
      %s143 = sphi 0, %s141
      %s144 = sphi 0, %s143
      %s158 = sphi 0, %s144
      %s162 = sphi 0, %s162
      %s164 = sphi 0, %s162
      %s165 = sphi 0, %s164
      %s179 = sphi 0, %s165
      %s187 = sphi 0, %s189
      %s190 = sphi 0, %s187
      %s191 = sphi 0, %s190
      %s207 = sphi 0, %s191
    $region4: #{frequency_aware_sum_attention.4} parent=1 // loop_header_branch
      %26 = sbr.rel (%p24) target = $region8
    $region5: #{frequency_aware_sum_attention.4} parent=1 // loop_body
      %s28 = ssub.s32 %s23, 1
      %s29 = ssub.s32 %s23, 2
      %s36 = sadd.s32 1, %s31
      %p37 = scmp.ge.s32.totalorder %s36, 4
      %s38 = scalar_select %p37, 0, %s36
      %s39 = sadd.s32 1, %s30
      %s40 = scalar_select %p37, %s39, %s30
      %p41 = scmp.ge.s32.totalorder %s40, 2
      %s42 = scalar_select %p41, 0, %s40
      %s44 = sadd.s32 %s43, 1
      %p47 = scmp.eq.s32.totalorder %s23, 7
      %p48 = scmp.ne.s32.totalorder %s43, %s45
      %p49 = scmp.eq.s32.totalorder %s23, 0
      %p50 = por %p48, %p49
      %p51 = scmp.ne.s32.totalorder %s43, %s45
      %p52 = scmp.eq.s32.totalorder %s28, 7
      %p53 = por %p51, %p52
      %p54 = scmp.ne.s32.totalorder %s45, %s46
      %p55 = scmp.eq.s32.totalorder %s28, 0
      %p56 = por %p54, %p55
      %p57 = scmp.ne.s32.totalorder %s45, %s46
      %p58 = scmp.eq.s32.totalorder %s29, 7
      %p59 = por %p57, %p58
      %p61 = scmp.ne.s32.totalorder %s46, %s60
      %p62 = scmp.eq.s32.totalorder %s29, 0
      %p63 = por %p61, %p62
      %s64 = ssub.s32 %s30, %s42
      %s65 = ssub.s32 %s31, %s38
      %s66 = sor.u32 %s64, %s65
      %p67 = scmp.eq.s32.totalorder %s66, 0
      %s69 = sadd.s32 %s68, 1
      %s70 = scalar_select %p67, %s68, %s69
      %p73 = pneg %p67
      %p74 = scmp.eq.s32.totalorder %s23, 7
      %p75 = por %p73, %p74
      %p76 = scmp.ne.s32.totalorder %s68, %s71
      %p77 = scmp.eq.s32.totalorder %s23, 0
      %p78 = por %p76, %p77
      %p79 = scmp.ne.s32.totalorder %s68, %s71
      %p80 = scmp.eq.s32.totalorder %s28, 7
      %p81 = por %p79, %p80
      %p82 = scmp.ne.s32.totalorder %s71, %s72
      %p83 = scmp.eq.s32.totalorder %s28, 0
      %p84 = por %p82, %p83
      %p85 = scmp.ne.s32.totalorder %s71, %s72
      %p86 = scmp.eq.s32.totalorder %s29, 7
      %p87 = por %p85, %p86
      %p89 = scmp.ne.s32.totalorder %s72, %s88
      %p90 = scmp.eq.s32.totalorder %s29, 0
      %p91 = por %p89, %p90
      %s92 = ssub.s32 %s30, %s42
      %s93 = ssub.s32 %s31, %s38
      %s94 = sor.u32 %s92, %s93
      %p95 = scmp.eq.s32.totalorder %s94, 0
      %s97 = sadd.s32 %s96, 1
      %s98 = scalar_select %p95, %s96, %s97
      %p101 = pneg %p95
      %p102 = scmp.eq.s32.totalorder %s23, 7
      %p103 = por %p101, %p102
      %p104 = scmp.ne.s32.totalorder %s96, %s99
      %p105 = scmp.eq.s32.totalorder %s23, 0
      %p106 = por %p104, %p105
      %p107 = scmp.ne.s32.totalorder %s96, %s99
      %p108 = scmp.eq.s32.totalorder %s28, 7
      %p109 = por %p107, %p108
      %p110 = scmp.ne.s32.totalorder %s99, %s100
      %p111 = scmp.eq.s32.totalorder %s28, 0
      %p112 = por %p110, %p111
      %p113 = scmp.ne.s32.totalorder %s99, %s100
      %p114 = scmp.eq.s32.totalorder %s29, 7
      %p115 = por %p113, %p114
      %p117 = scmp.ne.s32.totalorder %s100, %s116
      %p118 = scmp.eq.s32.totalorder %s29, 0
      %p119 = por %p117, %p118
      %s121 = sadd.s32 %s120, 1
      %p124 = scmp.eq.s32.totalorder %s23, 7
      %p125 = scmp.ne.s32.totalorder %s120, %s122
      %p126 = scmp.eq.s32.totalorder %s23, 0
      %p127 = por %p125, %p126
      %p128 = scmp.ne.s32.totalorder %s120, %s122
      %p129 = scmp.eq.s32.totalorder %s28, 7
      %p130 = por %p128, %p129
      %p131 = scmp.ne.s32.totalorder %s122, %s123
      %p132 = scmp.eq.s32.totalorder %s28, 0
      %p133 = por %p131, %p132
      %p134 = scmp.ne.s32.totalorder %s122, %s123
      %p135 = scmp.eq.s32.totalorder %s29, 7
      %p136 = por %p134, %p135
      %p138 = scmp.ne.s32.totalorder %s123, %s137
      %p139 = scmp.eq.s32.totalorder %s29, 0
      %p140 = por %p138, %p139
      %s142 = sadd.s32 %s141, 1
      %p145 = scmp.eq.s32.totalorder %s23, 7
      %p146 = scmp.ne.s32.totalorder %s141, %s143
      %p147 = scmp.eq.s32.totalorder %s23, 0
      %p148 = por %p146, %p147
      %p149 = scmp.ne.s32.totalorder %s141, %s143
      %p150 = scmp.eq.s32.totalorder %s28, 7
      %p151 = por %p149, %p150
      %p152 = scmp.ne.s32.totalorder %s143, %s144
      %p153 = scmp.eq.s32.totalorder %s28, 0
      %p154 = por %p152, %p153
      %p155 = scmp.ne.s32.totalorder %s143, %s144
      %p156 = scmp.eq.s32.totalorder %s29, 7
      %p157 = por %p155, %p156
      %p159 = scmp.ne.s32.totalorder %s144, %s158
      %p160 = scmp.eq.s32.totalorder %s29, 0
      %p161 = por %p159, %p160
      %s163 = sadd.s32 %s162, 1
      %p166 = scmp.eq.s32.totalorder %s23, 7
      %p167 = scmp.ne.s32.totalorder %s162, %s164
      %p168 = scmp.eq.s32.totalorder %s23, 0
      %p169 = por %p167, %p168
      %p170 = scmp.ne.s32.totalorder %s162, %s164
      %p171 = scmp.eq.s32.totalorder %s28, 7
      %p172 = por %p170, %p171
      %p173 = scmp.ne.s32.totalorder %s164, %s165
      %p174 = scmp.eq.s32.totalorder %s28, 0
      %p175 = por %p173, %p174
      %p176 = scmp.ne.s32.totalorder %s164, %s165
      %p177 = scmp.eq.s32.totalorder %s29, 7
      %p178 = por %p176, %p177
      %p180 = scmp.ne.s32.totalorder %s165, %s179
      %p181 = scmp.eq.s32.totalorder %s29, 0
      %p182 = por %p180, %p181
      %s183 = ssub.s32 %s30, %s42
      %s184 = ssub.s32 %s31, %s38
      %s185 = sor.u32 %s183, %s184
      %p186 = scmp.eq.s32.totalorder %s185, 0
      %s188 = sadd.s32 %s187, 1
      %s189 = scalar_select %p186, %s187, %s188
      %p192 = pneg %p186
      %p193 = scmp.eq.s32.totalorder %s23, 7
      %p194 = por %p192, %p193
      %p195 = scmp.ne.s32.totalorder %s187, %s190
      %p196 = scmp.eq.s32.totalorder %s23, 0
      %p197 = por %p195, %p196
      %p198 = scmp.ne.s32.totalorder %s187, %s190
      %p199 = scmp.eq.s32.totalorder %s28, 7
      %p200 = por %p198, %p199
      %p201 = scmp.ne.s32.totalorder %s190, %s191
      %p202 = scmp.eq.s32.totalorder %s28, 0
      %p203 = por %p201, %p202
      %p204 = scmp.ne.s32.totalorder %s190, %s191
      %p205 = scmp.eq.s32.totalorder %s29, 7
      %p206 = por %p204, %p205
      %p208 = scmp.ne.s32.totalorder %s191, %s207
      %p209 = scmp.eq.s32.totalorder %s29, 0
      %p210 = por %p208, %p209
      %p211 = scmp.le.s32.totalorder 1, %s23
      %p212 = scmp.lt.s32.totalorder %s23, 9
      %p213 = pnand %p211, %p212
      %p214 = pneg %p213
      // Predicated region
      $region9: #{frequency_aware_sum_attention.4} parent=5 // pred_check
        _
      $region10: #{frequency_aware_sum_attention.4} parent=5 // pred_check_branch
        %216 = sbr.rel (%p213) target = $region12
      $region11: #{frequency_aware_sum_attention.4} parent=5 // pred_region
        %s217 = ssub.s32 %s23, 1
        // Predicated region
        $region13: #{frequency_aware_sum_attention.4} parent=11 // pred_check
          %p218 = pneg %p56
        $region14: #{frequency_aware_sum_attention.4} parent=11 // pred_check_branch
          %220 = sbr.rel (%p218) target = $region16
        $region15: #{frequency_aware_sum_attention.4} parent=11 // pred_region
          %s222 = ssub.s32 16, 16
          %223 = vsyncadd [#allocation5], %s222
          %226 = dma.hbm_to_smem %s0, 16, [#allocation2], [#allocation5]
        $region16: #{frequency_aware_sum_attention.4} parent=11 // pred_fallthru
          _
        // Predicated region
        $region17: #{frequency_aware_sum_attention.4} parent=11 // pred_check
          %p227 = pneg %p133
        $region18: #{frequency_aware_sum_attention.4} parent=11 // pred_check_branch
          %229 = sbr.rel (%p227) target = $region20
        $region19: #{frequency_aware_sum_attention.4} parent=11 // pred_region
          %s231 = ssub.s32 128, 128
          %232 = vsyncadd [#allocation8], %s231
          %s233 = sshll.u32 [#allocation9], 4
          %s234 = int_to_ptr.vmem [resolvable:$true] %s233
          %239 = dma.hbm_to_vmem [thread:$0]  %s3, 128, %s234, [#allocation8], 64, 64, 4
        $region20: #{frequency_aware_sum_attention.4} parent=11 // pred_fallthru
          _
        // Predicated region
        $region21: #{frequency_aware_sum_attention.4} parent=11 // pred_check
          %p240 = pneg %p154
        $region22: #{frequency_aware_sum_attention.4} parent=11 // pred_check_branch
          %242 = sbr.rel (%p240) target = $region24
        $region23: #{frequency_aware_sum_attention.4} parent=11 // pred_region
          %s244 = ssub.s32 64, 64
          %245 = vsyncadd [#allocation11], %s244
          %s247 = sshll.u32 [#allocation10], 4
          %s248 = int_to_ptr.vmem [resolvable:$true] %s247
          %250 = dma.hbm_to_vmem [thread:$0]  %s4, 64, %s248, [#allocation11]
        $region24: #{frequency_aware_sum_attention.4} parent=11 // pred_fallthru
          _
        // Predicated region
        $region25: #{frequency_aware_sum_attention.4} parent=11 // pred_check
          %p251 = pneg %p175
        $region26: #{frequency_aware_sum_attention.4} parent=11 // pred_check_branch
          %253 = sbr.rel (%p251) target = $region28
        $region27: #{frequency_aware_sum_attention.4} parent=11 // pred_region
          %s255 = ssub.s32 64, 64
          %256 = vsyncadd [#allocation11], %s255
          %s258 = sshll.u32 [#allocation12], 4
          %s259 = int_to_ptr.vmem [resolvable:$true] %s258
          %261 = dma.hbm_to_vmem [thread:$0]  %s5, 64, %s259, [#allocation11]
        $region28: #{frequency_aware_sum_attention.4} parent=11 // pred_fallthru
          _
      $region12: #{frequency_aware_sum_attention.4} parent=5 // pred_fallthru
        _
      %p262 = scmp.lt.s32.totalorder %s23, 8
      // Predicated region
      $region29: #{frequency_aware_sum_attention.4} parent=5 // pred_check
        %p263 = pneg %p262
      $region30: #{frequency_aware_sum_attention.4} parent=5 // pred_check_branch
        %265 = sbr.rel (%p263) target = $region32
      $region31: #{frequency_aware_sum_attention.4} parent=5 // pred_region
        // Predicated region
        $region33: #{frequency_aware_sum_attention.4} parent=31 // pred_check
          %p266 = pneg %p78
        $region34: #{frequency_aware_sum_attention.4} parent=31 // pred_check_branch
          %268 = sbr.rel (%p266) target = $region36
        $region35: #{frequency_aware_sum_attention.4} parent=31 // pred_region
          %s269 = sand.u32 %s68, 1
          %s270 = scalar_lea.sflag [#allocation3], %s269
          %s271 = sand.u32 %s68, 1
          %s272 = smul.addr %s271, 4
          %s273 = scalar_lea.vmem [#allocation6], %s272
          %s275 = ssub.s32 64, 64
          %276 = vsyncadd %s270, %s275
          %s277 = smul.addr %s30, 4
          %s278 = sadd.s32 %s31, %s277
          %s279 = smul.addr %s278, 64
          %s280 = scalar_lea.hbm %s1, %s279
          %s282 = sshll.u32 %s273, 4
          %s283 = int_to_ptr.vmem [resolvable:$true] %s282
          %285 = dma.hbm_to_vmem [thread:$0]  %s280, 64, %s283, %s270
        $region36: #{frequency_aware_sum_attention.4} parent=31 // pred_fallthru
          _
        // Predicated region
        $region37: #{frequency_aware_sum_attention.4} parent=31 // pred_check
          %p286 = pneg %p106
        $region38: #{frequency_aware_sum_attention.4} parent=31 // pred_check_branch
          %288 = sbr.rel (%p286) target = $region40
        $region39: #{frequency_aware_sum_attention.4} parent=31 // pred_region
          %s289 = sand.u32 %s23, 1
          %s290 = scalar_lea.sflag [#allocation8], %s289
          %s291 = sand.u32 %s96, 1
          %s292 = smul.addr %s291, 64
          %s293 = scalar_lea.vmem [#allocation7], %s292
          %s295 = ssub.s32 1024, 1024
          %296 = vsyncadd %s290, %s295
          %s297 = smul.addr %s30, 32
          %s298 = sadd.s32 %s31, %s297
          %s299 = smul.addr %s298, 128
          %s300 = scalar_lea.hbm %s2, %s299
          %s301 = sshll.u32 %s293, 4
          %s302 = int_to_ptr.vmem [resolvable:$true] %s301
          %307 = dma.hbm_to_vmem [thread:$0]  %s300, 1024, %s302, %s290, 512, 128, 8
        $region40: #{frequency_aware_sum_attention.4} parent=31 // pred_fallthru
          _
      $region32: #{frequency_aware_sum_attention.4} parent=5 // pred_fallthru
        _
      %p308 = scmp.le.s32.totalorder 1, %s23
      %p309 = scmp.lt.s32.totalorder %s23, 9
      %p310 = pnand %p308, %p309
      %p311 = pneg %p310
      // Predicated region
      $region41: #{frequency_aware_sum_attention.4} parent=5 // pred_check
        _
      $region42: #{frequency_aware_sum_attention.4} parent=5 // pred_check_branch
        %313 = sbr.rel (%p310) target = $region44
      $region43: #{frequency_aware_sum_attention.4} parent=5 // pred_region
        %s314 = ssub.s32 %s23, 1
        // Predicated region
        $region45: #{frequency_aware_sum_attention.4} parent=43 // pred_check
          %p315 = pneg %p56
        $region46: #{frequency_aware_sum_attention.4} parent=43 // pred_check_branch
          %317 = sbr.rel (%p315) target = $region48
        $region47: #{frequency_aware_sum_attention.4} parent=43 // pred_region
          %318 = dma.done [#allocation5], 16
        $region48: #{frequency_aware_sum_attention.4} parent=43 // pred_fallthru
          _
        %s319 = sand.u32 %s71, 1
        %s320 = scalar_lea.sflag [#allocation3], %s319
        %s321 = sand.u32 %s71, 1
        %s322 = smul.addr %s321, 4
        %s323 = scalar_lea.vmem [#allocation6], %s322
        // Predicated region
        $region49: #{frequency_aware_sum_attention.4} parent=43 // pred_check
          %p324 = pneg %p84
        $region50: #{frequency_aware_sum_attention.4} parent=43 // pred_check_branch
          %326 = sbr.rel (%p324) target = $region52
        $region51: #{frequency_aware_sum_attention.4} parent=43 // pred_region
          %327 = dma.done %s320, 64
        $region52: #{frequency_aware_sum_attention.4} parent=43 // pred_fallthru
          _
        %s328 = sand.u32 %s28, 1
        %s329 = scalar_lea.sflag [#allocation8], %s328
        %s330 = sand.u32 %s99, 1
        %s331 = smul.addr %s330, 64
        %s332 = scalar_lea.vmem [#allocation7], %s331
        // Predicated region
        $region53: #{frequency_aware_sum_attention.4} parent=43 // pred_check
          %p333 = pneg %p112
        $region54: #{frequency_aware_sum_attention.4} parent=43 // pred_check_branch
          %335 = sbr.rel (%p333) target = $region56
        $region55: #{frequency_aware_sum_attention.4} parent=43 // pred_region
          %336 = dma.done %s329, 1024
        $region56: #{frequency_aware_sum_attention.4} parent=43 // pred_fallthru
          _
        // Predicated region
        $region57: #{frequency_aware_sum_attention.4} parent=43 // pred_check
          %p337 = pneg %p133
        $region58: #{frequency_aware_sum_attention.4} parent=43 // pred_check_branch
          %339 = sbr.rel (%p337) target = $region60
        $region59: #{frequency_aware_sum_attention.4} parent=43 // pred_region
          %340 = dma.done [#allocation8], 128
        $region60: #{frequency_aware_sum_attention.4} parent=43 // pred_fallthru
          _
        // Predicated region
        $region61: #{frequency_aware_sum_attention.4} parent=43 // pred_check
          %p341 = pneg %p154
        $region62: #{frequency_aware_sum_attention.4} parent=43 // pred_check_branch
          %343 = sbr.rel (%p341) target = $region64
        $region63: #{frequency_aware_sum_attention.4} parent=43 // pred_region
          %344 = dma.done [#allocation11], 64
        $region64: #{frequency_aware_sum_attention.4} parent=43 // pred_fallthru
          _
        // Predicated region
        $region65: #{frequency_aware_sum_attention.4} parent=43 // pred_check
          %p345 = pneg %p175
        $region66: #{frequency_aware_sum_attention.4} parent=43 // pred_check_branch
          %347 = sbr.rel (%p345) target = $region68
        $region67: #{frequency_aware_sum_attention.4} parent=43 // pred_region
          %348 = dma.done [#allocation11], 64
        $region68: #{frequency_aware_sum_attention.4} parent=43 // pred_fallthru
          _
        %349 = sfence
        %p350 = pneg %p56
        %p351 = pneg %p53
        %s352 = sand.u32 %s71, 1
        %s353 = scalar_lea.sflag [#allocation3], %s352
        %s354 = sand.u32 %s71, 1
        %s355 = smul.addr %s354, 4
        %s356 = scalar_lea.vmem [#allocation6], %s355
        %p357 = pneg %p84
        %p358 = pneg %p81
        %s359 = sand.u32 %s28, 1
        %s360 = scalar_lea.sflag [#allocation8], %s359
        %s361 = sand.u32 %s99, 1
        %s362 = smul.addr %s361, 64
        %s363 = scalar_lea.vmem [#allocation7], %s362
        %p364 = pneg %p112
        %p365 = pneg %p109
        %p366 = pneg %p133
        %p367 = pneg %p130
        %p368 = pneg %p154
        %p369 = pneg %p151
        %p370 = pneg %p175
        %p371 = pneg %p172
        %p372 = pneg %p203
        %p373 = pneg %p200
        %s374 = sand.u32 %s190, 1
        %s375 = scalar_lea.sflag [#allocation4], %s374
        %s376 = sand.u32 %s190, 1
        %s377 = smul.addr %s376, 4
        %s378 = scalar_lea.vmem [#allocation13], %s377
        %s380 = sld [smem:[#allocation2]]
        %s381 = sld [smem:[#allocation2 + $0x1]]
        %v382 = vld [vmem:[#allocation9] sm:$0xf]
        %v383 = vld [vmem:[#allocation9 + $0x4] sm:$0xf]
        %v384 = vld [vmem:[#allocation10] sm:$0xf]
        %v385 = vld [vmem:[#allocation12] sm:$0xf]
        %v386 = vld [vmem:[%s323] sm:$0xf]
        %v389 = vunpack.c.l.b16 %v382
        %v390 = vunpack.c.l.b16 %v383
        %v391 = vpack.c.b16 %v390, %v389
        %vm392 = vcmask 64512
        %v394 = vsel %vm392, %v391, 0
        %vm396 = vcmask 1043456
        %v398 = vsel %vm396, %v386, 0
        %400 = vmatprep.subr.bf16.mxu0 0
        %401 = vmatpush1.bf16.msra.mxu0 %v398
        %402 = vmatprep.subr.bf16.mxu0 0
        %403 = vmatpush1.bf16.msra.mxu0 0
        %404 = vmatprep.subr.bf16.mxu0 0
        %405 = vmatpush1.bf16.msra.mxu0 0
        %406 = vmatprep.subr.bf16.mxu0 0
        %407 = vmatpush1.bf16.msra.mxu0 0
        %408 = vmatprep.subr.bf16.mxu0 0
        %409 = vmatpush1.bf16.msra.mxu0 0
        %410 = vmatprep.subr.bf16.mxu0 0
        %411 = vmatpush1.bf16.msra.mxu0 0
        %412 = vmatprep.subr.bf16.mxu0 0
        %413 = vmatpush1.bf16.msra.mxu0 0
        %414 = vmatprep.subr.bf16.mxu0 0
        %415 = vmatpush1.bf16.msra.mxu0 0
        %416 = vmatprep.subr.bf16.mxu0 0
        %417 = vmatpush1.bf16.msra.mxu0 0
        %418 = vmatprep.subr.bf16.mxu0 0
        %419 = vmatpush1.bf16.msra.mxu0 0
        %420 = vmatprep.subr.bf16.mxu0 0
        %421 = vmatpush1.bf16.msra.mxu0 0
        %422 = vmatprep.subr.bf16.mxu0 0
        %423 = vmatpush1.bf16.msra.mxu0 0
        %424 = vmatprep.subr.bf16.mxu0 0
        %425 = vmatpush1.bf16.msra.mxu0 0
        %426 = vmatprep.subr.bf16.mxu0 0
        %427 = vmatpush1.bf16.msra.mxu0 0
        %428 = vmatprep.subr.bf16.mxu0 0
        %429 = vmatpush1.bf16.msra.mxu0 0
        %430 = vmatprep.subr.bf16.mxu0 0
        %431 = vmatpush1.bf16.msra.mxu0 0
        %432 = vmatprep.mubr.bf16.mxu0 0
        %433 = vmatmul.mubr.bf16.gmra.mrb[0].mxu0 %v394
        %v434 = vpop.f32.mrb[0].mxu0
        %v435 = vadd.f32 0.0, %v434
        %v436 = vpop.f32.mrb[0].mxu0
        %v437 = vpop.f32.mrb[0].mxu0
        %v438 = vadd.f32 0.0, %v437
        %v439 = vpop.f32.mrb[0].mxu0
        %440 = vdwg.mxu0
        %v441 = vpack.c.bf16 %v438, %v435
        %v443 = vunpack.c.l.b16 %v386
        %v444 = vpack.c.b16 %v443, %v443
        %445 = vrot.lane.b32.xlu0 %v444, 96
        %v446 = vpop.permute.xlu0 %445
        %v448 = vsel %vm396, %v446, 0
        %450 = vmatprep.subr.bf16.mxu0 0
        %451 = vmatpush1.bf16.msra.mxu0 %v448
        %452 = vmatprep.subr.bf16.mxu0 0
        %453 = vmatpush1.bf16.msra.mxu0 0
        %454 = vmatprep.subr.bf16.mxu0 0
        %455 = vmatpush1.bf16.msra.mxu0 0
        %456 = vmatprep.subr.bf16.mxu0 0
        %457 = vmatpush1.bf16.msra.mxu0 0
        %458 = vmatprep.subr.bf16.mxu0 0
        %459 = vmatpush1.bf16.msra.mxu0 0
        %460 = vmatprep.subr.bf16.mxu0 0
        %461 = vmatpush1.bf16.msra.mxu0 0
        %462 = vmatprep.subr.bf16.mxu0 0
        %463 = vmatpush1.bf16.msra.mxu0 0
        %464 = vmatprep.subr.bf16.mxu0 0
        %465 = vmatpush1.bf16.msra.mxu0 0
        %466 = vmatprep.subr.bf16.mxu0 0
        %467 = vmatpush1.bf16.msra.mxu0 0
        %468 = vmatprep.subr.bf16.mxu0 0
        %469 = vmatpush1.bf16.msra.mxu0 0
        %470 = vmatprep.subr.bf16.mxu0 0
        %471 = vmatpush1.bf16.msra.mxu0 0
        %472 = vmatprep.subr.bf16.mxu0 0
        %473 = vmatpush1.bf16.msra.mxu0 0
        %474 = vmatprep.subr.bf16.mxu0 0
        %475 = vmatpush1.bf16.msra.mxu0 0
        %476 = vmatprep.subr.bf16.mxu0 0
        %477 = vmatpush1.bf16.msra.mxu0 0
        %478 = vmatprep.subr.bf16.mxu0 0
        %479 = vmatpush1.bf16.msra.mxu0 0
        %480 = vmatprep.subr.bf16.mxu0 0
        %481 = vmatpush1.bf16.msra.mxu0 0
        %482 = vmatprep.mubr.bf16.mxu0 0
        %483 = vmatmul.mubr.bf16.gmra.mrb[0].mxu0 %v394
        %v484 = vpop.f32.mrb[0].mxu0
        %v485 = vadd.f32 0.0, %v484
        %v486 = vpop.f32.mrb[0].mxu0
        %v487 = vpop.f32.mrb[0].mxu0
        %v488 = vadd.f32 0.0, %v487
        %v489 = vpop.f32.mrb[0].mxu0
        %490 = vdwg.mxu0
        %v491 = vpack.c.bf16 %v488, %v485
        %v492 = vlaneseq
        %v493 = vand.u32 %v492, 127
        %vm494 = vcmp.lt.s32.totalorder %v493, 2
        %v495 = vsel %vm494, 0.0, -1e+30
        %vm496 = vcmask 31744
        %v497 = vsel %vm496, %v386, 0
        %v499 = vsel %vm496, %v446, 0
        %501 = vmatprep.subr.bf16.mxu0 0
        %502 = vmatpush1.bf16.xpose.msra.mxu0 %v499
        %503 = vmatprep.subr.bf16.mxu0 0
        %504 = vmatpush1.bf16.xpose.msra.mxu0 0
        %505 = vmatprep.subr.bf16.mxu0 0
        %506 = vmatpush1.bf16.xpose.msra.mxu0 0
        %507 = vmatprep.subr.bf16.mxu0 0
        %508 = vmatpush1.bf16.xpose.msra.mxu0 0
        %509 = vmatprep.subr.bf16.mxu0 0
        %510 = vmatpush1.bf16.xpose.msra.mxu0 0
        %511 = vmatprep.subr.bf16.mxu0 0
        %512 = vmatpush1.bf16.xpose.msra.mxu0 0
        %513 = vmatprep.subr.bf16.mxu0 0
        %514 = vmatpush1.bf16.xpose.msra.mxu0 0
        %515 = vmatprep.subr.bf16.mxu0 0
        %516 = vmatpush1.bf16.xpose.msra.mxu0 0
        %517 = vmatprep.subr.bf16.mxu0 0
        %518 = vmatpush1.bf16.xpose.msra.mxu0 0
        %519 = vmatprep.subr.bf16.mxu0 0
        %520 = vmatpush1.bf16.xpose.msra.mxu0 0
        %521 = vmatprep.subr.bf16.mxu0 0
        %522 = vmatpush1.bf16.xpose.msra.mxu0 0
        %523 = vmatprep.subr.bf16.mxu0 0
        %524 = vmatpush1.bf16.xpose.msra.mxu0 0
        %525 = vmatprep.subr.bf16.mxu0 0
        %526 = vmatpush1.bf16.xpose.msra.mxu0 0
        %527 = vmatprep.subr.bf16.mxu0 0
        %528 = vmatpush1.bf16.xpose.msra.mxu0 0
        %529 = vmatprep.subr.bf16.mxu0 0
        %530 = vmatpush1.bf16.xpose.msra.mxu0 0
        %531 = vmatprep.subr.bf16.mxu0 0
        %532 = vmatpush1.bf16.xpose.msra.mxu0 0
        %533 = vmatprep.mubr.bf16.mxu0 0
        %534 = vmatmul.mubr.bf16.gmra.mrb[0].mxu0 %v497
        %v535 = vpop.f32.mrb[0].mxu0
        %v536 = vadd.f32 0.0, %v535
        %v537 = vpop.f32.mrb[0].mxu0
        %v538 = vpop.f32.mrb[0].mxu0
        %v539 = vpop.f32.mrb[0].mxu0
        %540 = vdwg.mxu0
        %v541 = vsel %vm392, %v536, -inf
        %542 = vmax.xlane.f32.xlu0 %v541
        %v543 = vpop.xlane.xlu0 %542
        %v544 = vsub.f32 %v536, %v543
        %v545 = vmul.f32 %v544, 1.442695
        %v546 = vpow.pop %v545
        %v547 = vsel %vm392, %v546, 0.0
        %548 = vadd.xlane.f32.xlu0 %v547
        %v549 = vpop.xlane.xlu0 %548
        %v550 = vrcp.pop %v549
        %v551 = vmul.f32 %v546, %v550
        %v553 = vrot.slane %v441, 4
        %v555 = vrot.slane %v491, 4
        %v557 = vsel %vm496, %v553, 0
        %v560 = vsel %vm496, %v555, 0
        %562 = vmatprep.subr.bf16.mxu0 0
        %563 = vmatpush1.bf16.xpose.msra.mxu0 %v560
        %564 = vmatprep.subr.bf16.mxu0 0
        %565 = vmatpush1.bf16.xpose.msra.mxu0 0
        %566 = vmatprep.subr.bf16.mxu0 0
        %567 = vmatpush1.bf16.xpose.msra.mxu0 0
        %568 = vmatprep.subr.bf16.mxu0 0
        %569 = vmatpush1.bf16.xpose.msra.mxu0 0
        %570 = vmatprep.subr.bf16.mxu0 0
        %571 = vmatpush1.bf16.xpose.msra.mxu0 0
        %572 = vmatprep.subr.bf16.mxu0 0
        %573 = vmatpush1.bf16.xpose.msra.mxu0 0
        %574 = vmatprep.subr.bf16.mxu0 0
        %575 = vmatpush1.bf16.xpose.msra.mxu0 0
        %576 = vmatprep.subr.bf16.mxu0 0
        %577 = vmatpush1.bf16.xpose.msra.mxu0 0
        %578 = vmatprep.subr.bf16.mxu0 0
        %579 = vmatpush1.bf16.xpose.msra.mxu0 0
        %580 = vmatprep.subr.bf16.mxu0 0
        %581 = vmatpush1.bf16.xpose.msra.mxu0 0
        %582 = vmatprep.subr.bf16.mxu0 0
        %583 = vmatpush1.bf16.xpose.msra.mxu0 0
        %584 = vmatprep.subr.bf16.mxu0 0
        %585 = vmatpush1.bf16.xpose.msra.mxu0 0
        %586 = vmatprep.subr.bf16.mxu0 0
        %587 = vmatpush1.bf16.xpose.msra.mxu0 0
        %588 = vmatprep.subr.bf16.mxu0 0
        %589 = vmatpush1.bf16.xpose.msra.mxu0 0
        %590 = vmatprep.subr.bf16.mxu0 0
        %591 = vmatpush1.bf16.xpose.msra.mxu0 0
        %592 = vmatprep.subr.bf16.mxu0 0
        %593 = vmatpush1.bf16.xpose.msra.mxu0 0
        %594 = vmatprep.mubr.bf16.mxu0 0
        %595 = vmatmul.mubr.bf16.gmra.mrb[0].mxu0 %v557
        %v596 = vpop.f32.mrb[0].mxu0
        %v597 = vadd.f32 0.0, %v596
        %v598 = vpop.f32.mrb[0].mxu0
        %v599 = vpop.f32.mrb[0].mxu0
        %v600 = vpop.f32.mrb[0].mxu0
        %601 = vdwg.mxu0
        %v603 = vsel %vm496, %v441, 0
        %v606 = vsel %vm496, %v491, 0
        %608 = vmatprep.subr.bf16.mxu0 0
        %609 = vmatpush1.bf16.xpose.msra.mxu0 %v606
        %610 = vmatprep.subr.bf16.mxu0 0
        %611 = vmatpush1.bf16.xpose.msra.mxu0 0
        %612 = vmatprep.subr.bf16.mxu0 0
        %613 = vmatpush1.bf16.xpose.msra.mxu0 0
        %614 = vmatprep.subr.bf16.mxu0 0
        %615 = vmatpush1.bf16.xpose.msra.mxu0 0
        %616 = vmatprep.subr.bf16.mxu0 0
        %617 = vmatpush1.bf16.xpose.msra.mxu0 0
        %618 = vmatprep.subr.bf16.mxu0 0
        %619 = vmatpush1.bf16.xpose.msra.mxu0 0
        %620 = vmatprep.subr.bf16.mxu0 0
        %621 = vmatpush1.bf16.xpose.msra.mxu0 0
        %622 = vmatprep.subr.bf16.mxu0 0
        %623 = vmatpush1.bf16.xpose.msra.mxu0 0
        %624 = vmatprep.subr.bf16.mxu0 0
        %625 = vmatpush1.bf16.xpose.msra.mxu0 0
        %626 = vmatprep.subr.bf16.mxu0 0
        %627 = vmatpush1.bf16.xpose.msra.mxu0 0
        %628 = vmatprep.subr.bf16.mxu0 0
        %629 = vmatpush1.bf16.xpose.msra.mxu0 0
        %630 = vmatprep.subr.bf16.mxu0 0
        %631 = vmatpush1.bf16.xpose.msra.mxu0 0
        %632 = vmatprep.subr.bf16.mxu0 0
        %633 = vmatpush1.bf16.xpose.msra.mxu0 0
        %634 = vmatprep.subr.bf16.mxu0 0
        %635 = vmatpush1.bf16.xpose.msra.mxu0 0
        %636 = vmatprep.subr.bf16.mxu0 0
        %637 = vmatpush1.bf16.xpose.msra.mxu0 0
        %638 = vmatprep.subr.bf16.mxu0 0
        %639 = vmatpush1.bf16.xpose.msra.mxu0 0
        %640 = vmatprep.mubr.bf16.mxu0 0
        %641 = vmatmul.mubr.bf16.gmra.mrb[0].mxu0 %v603
        %v642 = vpop.f32.mrb[0].mxu0
        %v643 = vadd.f32 %v597, %v642
        %v644 = vpop.f32.mrb[0].mxu0
        %v645 = vpop.f32.mrb[0].mxu0
        %v646 = vpop.f32.mrb[0].mxu0
        %647 = vdwg.mxu0
        %v648 = vadd.f32 %v643, %v495
        %v649 = vsel %vm392, %v648, -inf
        %650 = vmax.xlane.f32.xlu0 %v649
        %v651 = vpop.xlane.xlu0 %650
        %v652 = vsub.f32 %v648, %v651
        %v653 = vmul.f32 %v652, 1.442695
        %v654 = vpow.pop %v653
        %v655 = vsel %vm392, %v654, 0.0
        %656 = vadd.xlane.f32.xlu0 %v655
        %v657 = vpop.xlane.xlu0 %656
        %v658 = vrcp.pop %v657
        %v659 = vmul.f32 %v654, %v658
        %v660 = vpack.c.bf16 %v659, %v659
        %v662 = vsel %vm392, %v384, 0
        %v665 = vsel %vm396, %v660, 0
        %667 = vmatprep.subr.bf16.mxu0 0
        %668 = vmatpush1.bf16.msra.mxu0 %v665
        %669 = vmatprep.subr.bf16.mxu0 0
        %670 = vmatpush1.bf16.msra.mxu0 0
        %671 = vmatprep.subr.bf16.mxu0 0
        %672 = vmatpush1.bf16.msra.mxu0 0
        %673 = vmatprep.subr.bf16.mxu0 0
        %674 = vmatpush1.bf16.msra.mxu0 0
        %675 = vmatprep.subr.bf16.mxu0 0
        %676 = vmatpush1.bf16.msra.mxu0 0
        %677 = vmatprep.subr.bf16.mxu0 0
        %678 = vmatpush1.bf16.msra.mxu0 0
        %679 = vmatprep.subr.bf16.mxu0 0
        %680 = vmatpush1.bf16.msra.mxu0 0
        %681 = vmatprep.subr.bf16.mxu0 0
        %682 = vmatpush1.bf16.msra.mxu0 0
        %683 = vmatprep.subr.bf16.mxu0 0
        %684 = vmatpush1.bf16.msra.mxu0 0
        %685 = vmatprep.subr.bf16.mxu0 0
        %686 = vmatpush1.bf16.msra.mxu0 0
        %687 = vmatprep.subr.bf16.mxu0 0
        %688 = vmatpush1.bf16.msra.mxu0 0
        %689 = vmatprep.subr.bf16.mxu0 0
        %690 = vmatpush1.bf16.msra.mxu0 0
        %691 = vmatprep.subr.bf16.mxu0 0
        %692 = vmatpush1.bf16.msra.mxu0 0
        %693 = vmatprep.subr.bf16.mxu0 0
        %694 = vmatpush1.bf16.msra.mxu0 0
        %695 = vmatprep.subr.bf16.mxu0 0
        %696 = vmatpush1.bf16.msra.mxu0 0
        %697 = vmatprep.subr.bf16.mxu0 0
        %698 = vmatpush1.bf16.msra.mxu0 0
        %699 = vmatprep.mubr.bf16.mxu0 0
        %700 = vmatmul.mubr.bf16.gmra.mrb[0].mxu0 %v662
        %v701 = vpop.f32.mrb[0].mxu0
        %v702 = vadd.f32 0.0, %v701
        %v703 = vpop.f32.mrb[0].mxu0
        %v704 = vpop.f32.mrb[0].mxu0
        %v705 = vpop.f32.mrb[0].mxu0
        %706 = vdwg.mxu0
        %v707 = vpack.c.bf16 %v702, %v702
        %v708 = vstv %s380
        %v709 = vmul.f32 %v708, %v551
        %v711 = vsel %vm392, %v707, 0
        %v714 = vsel %vm392, %v385, 0
        %716 = vmatprep.subr.bf16.mxu0 0
        %717 = vmatpush1.bf16.xpose.msra.mxu0 %v714
        %718 = vmatprep.subr.bf16.mxu0 0
        %719 = vmatpush1.bf16.xpose.msra.mxu0 0
        %720 = vmatprep.subr.bf16.mxu0 0
        %721 = vmatpush1.bf16.xpose.msra.mxu0 0
        %722 = vmatprep.subr.bf16.mxu0 0
        %723 = vmatpush1.bf16.xpose.msra.mxu0 0
        %724 = vmatprep.subr.bf16.mxu0 0
        %725 = vmatpush1.bf16.xpose.msra.mxu0 0
        %726 = vmatprep.subr.bf16.mxu0 0
        %727 = vmatpush1.bf16.xpose.msra.mxu0 0
        %728 = vmatprep.subr.bf16.mxu0 0
        %729 = vmatpush1.bf16.xpose.msra.mxu0 0
        %730 = vmatprep.subr.bf16.mxu0 0
        %731 = vmatpush1.bf16.xpose.msra.mxu0 0
        %732 = vmatprep.subr.bf16.mxu0 0
        %733 = vmatpush1.bf16.xpose.msra.mxu0 0
        %734 = vmatprep.subr.bf16.mxu0 0
        %735 = vmatpush1.bf16.xpose.msra.mxu0 0
        %736 = vmatprep.subr.bf16.mxu0 0
        %737 = vmatpush1.bf16.xpose.msra.mxu0 0
        %738 = vmatprep.subr.bf16.mxu0 0
        %739 = vmatpush1.bf16.xpose.msra.mxu0 0
        %740 = vmatprep.subr.bf16.mxu0 0
        %741 = vmatpush1.bf16.xpose.msra.mxu0 0
        %742 = vmatprep.subr.bf16.mxu0 0
        %743 = vmatpush1.bf16.xpose.msra.mxu0 0
        %744 = vmatprep.subr.bf16.mxu0 0
        %745 = vmatpush1.bf16.xpose.msra.mxu0 0
        %746 = vmatprep.subr.bf16.mxu0 0
        %747 = vmatpush1.bf16.xpose.msra.mxu0 0
        %748 = vmatprep.mubr.bf16.mxu0 0
        %749 = vmatmul.mubr.bf16.gmra.mrb[0].mxu0 %v711
        %v750 = vpop.f32.mrb[0].mxu0
        %v751 = vadd.f32 %v709, %v750
        %v752 = vpop.f32.mrb[0].mxu0
        %v753 = vpop.f32.mrb[0].mxu0
        %v754 = vpop.f32.mrb[0].mxu0
        %755 = vdwg.mxu0
        %v756 = vld [vmem:[%s332] sm:$0xff]
        %v757 = vstv %s381
        %v758 = vmul.f32 %v757, %v756
        %v759 = vadd.f32 %v751, %v758
        %v760 = vpack.c.bf16 %v759, %v759
        %761 = vrot.lane.b32.xlu0 %v444, 64
        %v762 = vpop.permute.xlu0 %761
        %v764 = vsel %vm392, %v760, 0
        %v767 = vsel %vm396, %v762, 0
        %769 = vmatprep.subr.bf16.mxu0 0
        %770 = vmatpush1.bf16.msra.mxu0 %v767
        %771 = vmatprep.subr.bf16.mxu0 0
        %772 = vmatpush1.bf16.msra.mxu0 0
        %773 = vmatprep.subr.bf16.mxu0 0
        %774 = vmatpush1.bf16.msra.mxu0 0
        %775 = vmatprep.subr.bf16.mxu0 0
        %776 = vmatpush1.bf16.msra.mxu0 0
        %777 = vmatprep.subr.bf16.mxu0 0
        %778 = vmatpush1.bf16.msra.mxu0 0
        %779 = vmatprep.subr.bf16.mxu0 0
        %780 = vmatpush1.bf16.msra.mxu0 0
        %781 = vmatprep.subr.bf16.mxu0 0
        %782 = vmatpush1.bf16.msra.mxu0 0
        %783 = vmatprep.subr.bf16.mxu0 0
        %784 = vmatpush1.bf16.msra.mxu0 0
        %785 = vmatprep.subr.bf16.mxu0 0
        %786 = vmatpush1.bf16.msra.mxu0 0
        %787 = vmatprep.subr.bf16.mxu0 0
        %788 = vmatpush1.bf16.msra.mxu0 0
        %789 = vmatprep.subr.bf16.mxu0 0
        %790 = vmatpush1.bf16.msra.mxu0 0
        %791 = vmatprep.subr.bf16.mxu0 0
        %792 = vmatpush1.bf16.msra.mxu0 0
        %793 = vmatprep.subr.bf16.mxu0 0
        %794 = vmatpush1.bf16.msra.mxu0 0
        %795 = vmatprep.subr.bf16.mxu0 0
        %796 = vmatpush1.bf16.msra.mxu0 0
        %797 = vmatprep.subr.bf16.mxu0 0
        %798 = vmatpush1.bf16.msra.mxu0 0
        %799 = vmatprep.subr.bf16.mxu0 0
        %800 = vmatpush1.bf16.msra.mxu0 0
        %801 = vmatprep.mubr.bf16.mxu0 0
        %802 = vmatmul.mubr.bf16.gmra.mrb[0].mxu0 %v764
        %v803 = vpop.f32.mrb[0].mxu0
        %v804 = vadd.f32 0.0, %v803
        %v805 = vpop.f32.mrb[0].mxu0
        %v806 = vpop.f32.mrb[0].mxu0
        %v807 = vpop.f32.mrb[0].mxu0
        %808 = vdwg.mxu0
        %v809 = vpack.c.bf16 %v804, %v804
        %vm810 = vcmask 27648
        %811 = vst.msk [vmem:[%s378] sm:$0xf] %vm810, %v809
        %v812 = vld [vmem:[%s323] sm:$0xf]
        %v814 = vunpack.c.l.b16 %v812
        %v815 = vpack.c.b16 %v814, %v814
        %816 = vrot.lane.b32.xlu0 %v815, 124
        %v817 = vpop.permute.xlu0 %816
        %818 = vrot.lane.b32.xlu0 %v815, 92
        %v819 = vpop.permute.xlu0 %818
        %v821 = vsel %vm496, %v817, 0
        %v824 = vsel %vm496, %v819, 0
        %826 = vmatprep.subr.bf16.mxu0 0
        %827 = vmatpush1.bf16.xpose.msra.mxu0 %v824
        %828 = vmatprep.subr.bf16.mxu0 0
        %829 = vmatpush1.bf16.xpose.msra.mxu0 0
        %830 = vmatprep.subr.bf16.mxu0 0
        %831 = vmatpush1.bf16.xpose.msra.mxu0 0
        %832 = vmatprep.subr.bf16.mxu0 0
        %833 = vmatpush1.bf16.xpose.msra.mxu0 0
        %834 = vmatprep.subr.bf16.mxu0 0
        %835 = vmatpush1.bf16.xpose.msra.mxu0 0
        %836 = vmatprep.subr.bf16.mxu0 0
        %837 = vmatpush1.bf16.xpose.msra.mxu0 0
        %838 = vmatprep.subr.bf16.mxu0 0
        %839 = vmatpush1.bf16.xpose.msra.mxu0 0
        %840 = vmatprep.subr.bf16.mxu0 0
        %841 = vmatpush1.bf16.xpose.msra.mxu0 0
        %842 = vmatprep.subr.bf16.mxu0 0
        %843 = vmatpush1.bf16.xpose.msra.mxu0 0
        %844 = vmatprep.subr.bf16.mxu0 0
        %845 = vmatpush1.bf16.xpose.msra.mxu0 0
        %846 = vmatprep.subr.bf16.mxu0 0
        %847 = vmatpush1.bf16.xpose.msra.mxu0 0
        %848 = vmatprep.subr.bf16.mxu0 0
        %849 = vmatpush1.bf16.xpose.msra.mxu0 0
        %850 = vmatprep.subr.bf16.mxu0 0
        %851 = vmatpush1.bf16.xpose.msra.mxu0 0
        %852 = vmatprep.subr.bf16.mxu0 0
        %853 = vmatpush1.bf16.xpose.msra.mxu0 0
        %854 = vmatprep.subr.bf16.mxu0 0
        %855 = vmatpush1.bf16.xpose.msra.mxu0 0
        %856 = vmatprep.subr.bf16.mxu0 0
        %857 = vmatpush1.bf16.xpose.msra.mxu0 0
        %858 = vmatprep.mubr.bf16.mxu0 0
        %859 = vmatmul.mubr.bf16.gmra.mrb[0].mxu0 %v821
        %v860 = vpop.f32.mrb[0].mxu0
        %v861 = vadd.f32 0.0, %v860
        %v862 = vpop.f32.mrb[0].mxu0
        %v863 = vpop.f32.mrb[0].mxu0
        %v864 = vpop.f32.mrb[0].mxu0
        %865 = vdwg.mxu0
        %v866 = vsel %vm392, %v861, -inf
        %867 = vmax.xlane.f32.xlu0 %v866
        %v868 = vpop.xlane.xlu0 %867
        %v869 = vsub.f32 %v861, %v868
        %v870 = vmul.f32 %v869, 1.442695
        %v871 = vpow.pop %v870
        %v872 = vsel %vm392, %v871, 0.0
        %873 = vadd.xlane.f32.xlu0 %v872
        %v874 = vpop.xlane.xlu0 %873
        %v875 = vrcp.pop %v874
        %v876 = vmul.f32 %v871, %v875
        %877 = vrot.lane.b32.xlu0 %v553, 124
        %v878 = vpop.permute.xlu0 %877
        %879 = vrot.lane.b32.xlu0 %v555, 124
        %v880 = vpop.permute.xlu0 %879
        %v882 = vsel %vm496, %v878, 0
        %v885 = vsel %vm496, %v880, 0
        %887 = vmatprep.subr.bf16.mxu0 0
        %888 = vmatpush1.bf16.xpose.msra.mxu0 %v885
        %889 = vmatprep.subr.bf16.mxu0 0
        %890 = vmatpush1.bf16.xpose.msra.mxu0 0
        %891 = vmatprep.subr.bf16.mxu0 0
        %892 = vmatpush1.bf16.xpose.msra.mxu0 0
        %893 = vmatprep.subr.bf16.mxu0 0
        %894 = vmatpush1.bf16.xpose.msra.mxu0 0
        %895 = vmatprep.subr.bf16.mxu0 0
        %896 = vmatpush1.bf16.xpose.msra.mxu0 0
        %897 = vmatprep.subr.bf16.mxu0 0
        %898 = vmatpush1.bf16.xpose.msra.mxu0 0
        %899 = vmatprep.subr.bf16.mxu0 0
        %900 = vmatpush1.bf16.xpose.msra.mxu0 0
        %901 = vmatprep.subr.bf16.mxu0 0
        %902 = vmatpush1.bf16.xpose.msra.mxu0 0
        %903 = vmatprep.subr.bf16.mxu0 0
        %904 = vmatpush1.bf16.xpose.msra.mxu0 0
        %905 = vmatprep.subr.bf16.mxu0 0
        %906 = vmatpush1.bf16.xpose.msra.mxu0 0
        %907 = vmatprep.subr.bf16.mxu0 0
        %908 = vmatpush1.bf16.xpose.msra.mxu0 0
        %909 = vmatprep.subr.bf16.mxu0 0
        %910 = vmatpush1.bf16.xpose.msra.mxu0 0
        %911 = vmatprep.subr.bf16.mxu0 0
        %912 = vmatpush1.bf16.xpose.msra.mxu0 0
        %913 = vmatprep.subr.bf16.mxu0 0
        %914 = vmatpush1.bf16.xpose.msra.mxu0 0
        %915 = vmatprep.subr.bf16.mxu0 0
        %916 = vmatpush1.bf16.xpose.msra.mxu0 0
        %917 = vmatprep.subr.bf16.mxu0 0
        %918 = vmatpush1.bf16.xpose.msra.mxu0 0
        %919 = vmatprep.mubr.bf16.mxu0 0
        %920 = vmatmul.mubr.bf16.gmra.mrb[0].mxu0 %v882
        %v921 = vpop.f32.mrb[0].mxu0
        %v922 = vadd.f32 0.0, %v921
        %v923 = vpop.f32.mrb[0].mxu0
        %v924 = vpop.f32.mrb[0].mxu0
        %v925 = vpop.f32.mrb[0].mxu0
        %926 = vdwg.mxu0
        %927 = vrot.lane.b32.xlu0 %v441, 124
        %v928 = vpop.permute.xlu0 %927
        %929 = vrot.lane.b32.xlu0 %v491, 124
        %v930 = vpop.permute.xlu0 %929
        %v932 = vsel %vm496, %v928, 0
        %v935 = vsel %vm496, %v930, 0
        %937 = vmatprep.subr.bf16.mxu0 0
        %938 = vmatpush1.bf16.xpose.msra.mxu0 %v935
        %939 = vmatprep.subr.bf16.mxu0 0
        %940 = vmatpush1.bf16.xpose.msra.mxu0 0
        %941 = vmatprep.subr.bf16.mxu0 0
        %942 = vmatpush1.bf16.xpose.msra.mxu0 0
        %943 = vmatprep.subr.bf16.mxu0 0
        %944 = vmatpush1.bf16.xpose.msra.mxu0 0
        %945 = vmatprep.subr.bf16.mxu0 0
        %946 = vmatpush1.bf16.xpose.msra.mxu0 0
        %947 = vmatprep.subr.bf16.mxu0 0
        %948 = vmatpush1.bf16.xpose.msra.mxu0 0
        %949 = vmatprep.subr.bf16.mxu0 0
        %950 = vmatpush1.bf16.xpose.msra.mxu0 0
        %951 = vmatprep.subr.bf16.mxu0 0
        %952 = vmatpush1.bf16.xpose.msra.mxu0 0
        %953 = vmatprep.subr.bf16.mxu0 0
        %954 = vmatpush1.bf16.xpose.msra.mxu0 0
        %955 = vmatprep.subr.bf16.mxu0 0
        %956 = vmatpush1.bf16.xpose.msra.mxu0 0
        %957 = vmatprep.subr.bf16.mxu0 0
        %958 = vmatpush1.bf16.xpose.msra.mxu0 0
        %959 = vmatprep.subr.bf16.mxu0 0
        %960 = vmatpush1.bf16.xpose.msra.mxu0 0
        %961 = vmatprep.subr.bf16.mxu0 0
        %962 = vmatpush1.bf16.xpose.msra.mxu0 0
        %963 = vmatprep.subr.bf16.mxu0 0
        %964 = vmatpush1.bf16.xpose.msra.mxu0 0
        %965 = vmatprep.subr.bf16.mxu0 0
        %966 = vmatpush1.bf16.xpose.msra.mxu0 0
        %967 = vmatprep.subr.bf16.mxu0 0
        %968 = vmatpush1.bf16.xpose.msra.mxu0 0
        %969 = vmatprep.mubr.bf16.mxu0 0
        %970 = vmatmul.mubr.bf16.gmra.mrb[0].mxu0 %v932
        %v971 = vpop.f32.mrb[0].mxu0
        %v972 = vadd.f32 %v922, %v971
        %v973 = vpop.f32.mrb[0].mxu0
        %v974 = vpop.f32.mrb[0].mxu0
        %v975 = vpop.f32.mrb[0].mxu0
        %976 = vdwg.mxu0
        %v977 = vadd.f32 %v972, %v495
        %v978 = vsel %vm392, %v977, -inf
        %979 = vmax.xlane.f32.xlu0 %v978
        %v980 = vpop.xlane.xlu0 %979
        %v981 = vsub.f32 %v977, %v980
        %v982 = vmul.f32 %v981, 1.442695
        %v983 = vpow.pop %v982
        %v984 = vsel %vm392, %v983, 0.0
        %985 = vadd.xlane.f32.xlu0 %v984
        %v986 = vpop.xlane.xlu0 %985
        %v987 = vrcp.pop %v986
        %v988 = vmul.f32 %v983, %v987
        %v989 = vpack.c.bf16 %v988, %v988
        %v991 = vsel %vm396, %v989, 0
        %993 = vmatprep.subr.bf16.mxu0 0
        %994 = vmatpush1.bf16.msra.mxu0 %v991
        %995 = vmatprep.subr.bf16.mxu0 0
        %996 = vmatpush1.bf16.msra.mxu0 0
        %997 = vmatprep.subr.bf16.mxu0 0
        %998 = vmatpush1.bf16.msra.mxu0 0
        %999 = vmatprep.subr.bf16.mxu0 0
        %1000 = vmatpush1.bf16.msra.mxu0 0
        %1001 = vmatprep.subr.bf16.mxu0 0
        %1002 = vmatpush1.bf16.msra.mxu0 0
        %1003 = vmatprep.subr.bf16.mxu0 0
        %1004 = vmatpush1.bf16.msra.mxu0 0
        %1005 = vmatprep.subr.bf16.mxu0 0
        %1006 = vmatpush1.bf16.msra.mxu0 0
        %1007 = vmatprep.subr.bf16.mxu0 0
        %1008 = vmatpush1.bf16.msra.mxu0 0
        %1009 = vmatprep.subr.bf16.mxu0 0
        %1010 = vmatpush1.bf16.msra.mxu0 0
        %1011 = vmatprep.subr.bf16.mxu0 0
        %1012 = vmatpush1.bf16.msra.mxu0 0
        %1013 = vmatprep.subr.bf16.mxu0 0
        %1014 = vmatpush1.bf16.msra.mxu0 0
        %1015 = vmatprep.subr.bf16.mxu0 0
        %1016 = vmatpush1.bf16.msra.mxu0 0
        %1017 = vmatprep.subr.bf16.mxu0 0
        %1018 = vmatpush1.bf16.msra.mxu0 0
        %1019 = vmatprep.subr.bf16.mxu0 0
        %1020 = vmatpush1.bf16.msra.mxu0 0
        %1021 = vmatprep.subr.bf16.mxu0 0
        %1022 = vmatpush1.bf16.msra.mxu0 0
        %1023 = vmatprep.subr.bf16.mxu0 0
        %1024 = vmatpush1.bf16.msra.mxu0 0
        %1025 = vmatprep.mubr.bf16.mxu0 0
        %1026 = vmatmul.mubr.bf16.gmra.mrb[0].mxu0 %v662
        %v1027 = vpop.f32.mrb[0].mxu0
        %v1028 = vadd.f32 0.0, %v1027
        %v1029 = vpop.f32.mrb[0].mxu0
        %v1030 = vpop.f32.mrb[0].mxu0
        %v1031 = vpop.f32.mrb[0].mxu0
        %1032 = vdwg.mxu0
        %v1033 = vpack.c.bf16 %v1028, %v1028
        %v1034 = vmul.f32 %v708, %v876
        %v1036 = vsel %vm392, %v1033, 0
        %1038 = vmatprep.subr.bf16.mxu0 0
        %1039 = vmatpush1.bf16.xpose.msra.mxu0 %v714
        %1040 = vmatprep.subr.bf16.mxu0 0
        %1041 = vmatpush1.bf16.xpose.msra.mxu0 0
        %1042 = vmatprep.subr.bf16.mxu0 0
        %1043 = vmatpush1.bf16.xpose.msra.mxu0 0
        %1044 = vmatprep.subr.bf16.mxu0 0
        %1045 = vmatpush1.bf16.xpose.msra.mxu0 0
        %1046 = vmatprep.subr.bf16.mxu0 0
        %1047 = vmatpush1.bf16.xpose.msra.mxu0 0
        %1048 = vmatprep.subr.bf16.mxu0 0
        %1049 = vmatpush1.bf16.xpose.msra.mxu0 0
        %1050 = vmatprep.subr.bf16.mxu0 0
        %1051 = vmatpush1.bf16.xpose.msra.mxu0 0
        %1052 = vmatprep.subr.bf16.mxu0 0
        %1053 = vmatpush1.bf16.xpose.msra.mxu0 0
        %1054 = vmatprep.subr.bf16.mxu0 0
        %1055 = vmatpush1.bf16.xpose.msra.mxu0 0
        %1056 = vmatprep.subr.bf16.mxu0 0
        %1057 = vmatpush1.bf16.xpose.msra.mxu0 0
        %1058 = vmatprep.subr.bf16.mxu0 0
        %1059 = vmatpush1.bf16.xpose.msra.mxu0 0
        %1060 = vmatprep.subr.bf16.mxu0 0
        %1061 = vmatpush1.bf16.xpose.msra.mxu0 0
        %1062 = vmatprep.subr.bf16.mxu0 0
        %1063 = vmatpush1.bf16.xpose.msra.mxu0 0
        %1064 = vmatprep.subr.bf16.mxu0 0
        %1065 = vmatpush1.bf16.xpose.msra.mxu0 0
        %1066 = vmatprep.subr.bf16.mxu0 0
        %1067 = vmatpush1.bf16.xpose.msra.mxu0 0
        %1068 = vmatprep.subr.bf16.mxu0 0
        %1069 = vmatpush1.bf16.xpose.msra.mxu0 0
        %1070 = vmatprep.mubr.bf16.mxu0 0
        %1071 = vmatmul.mubr.bf16.gmra.mrb[0].mxu0 %v1036
        %v1072 = vpop.f32.mrb[0].mxu0
        %v1073 = vadd.f32 %v1034, %v1072
        %v1074 = vpop.f32.mrb[0].mxu0
        %v1075 = vpop.f32.mrb[0].mxu0
        %v1076 = vpop.f32.mrb[0].mxu0
        %1077 = vdwg.mxu0
        %s1078 = scalar_lea.vmem %s332, 8 [#allocation7]
        %v1079 = vld [vmem:[%s1078] sm:$0xff]
        %v1080 = vmul.f32 %v757, %v1079
        %v1081 = vadd.f32 %v1073, %v1080
        %v1082 = vpack.c.bf16 %v1081, %v1081
        %1083 = vrot.lane.b32.xlu0 %v815, 60
        %v1084 = vpop.permute.xlu0 %1083
        %v1086 = vsel %vm392, %v1082, 0
        %v1089 = vsel %vm396, %v1084, 0
        %1091 = vmatprep.subr.bf16.mxu0 0
        %1092 = vmatpush1.bf16.msra.mxu0 %v1089
        %1093 = vmatprep.subr.bf16.mxu0 0
        %1094 = vmatpush1.bf16.msra.mxu0 0
        %1095 = vmatprep.subr.bf16.mxu0 0
        %1096 = vmatpush1.bf16.msra.mxu0 0
        %1097 = vmatprep.subr.bf16.mxu0 0
        %1098 = vmatpush1.bf16.msra.mxu0 0
        %1099 = vmatprep.subr.bf16.mxu0 0
        %1100 = vmatpush1.bf16.msra.mxu0 0
        %1101 = vmatprep.subr.bf16.mxu0 0
        %1102 = vmatpush1.bf16.msra.mxu0 0
        %1103 = vmatprep.subr.bf16.mxu0 0
        %1104 = vmatpush1.bf16.msra.mxu0 0
        %1105 = vmatprep.subr.bf16.mxu0 0
        %1106 = vmatpush1.bf16.msra.mxu0 0
        %1107 = vmatprep.subr.bf16.mxu0 0
        %1108 = vmatpush1.bf16.msra.mxu0 0
        %1109 = vmatprep.subr.bf16.mxu0 0
        %1110 = vmatpush1.bf16.msra.mxu0 0
        %1111 = vmatprep.subr.bf16.mxu0 0
        %1112 = vmatpush1.bf16.msra.mxu0 0
        %1113 = vmatprep.subr.bf16.mxu0 0
        %1114 = vmatpush1.bf16.msra.mxu0 0
        %1115 = vmatprep.subr.bf16.mxu0 0
        %1116 = vmatpush1.bf16.msra.mxu0 0
        %1117 = vmatprep.subr.bf16.mxu0 0
        %1118 = vmatpush1.bf16.msra.mxu0 0
        %1119 = vmatprep.subr.bf16.mxu0 0
        %1120 = vmatpush1.bf16.msra.mxu0 0
        %1121 = vmatprep.subr.bf16.mxu0 0
        %1122 = vmatpush1.bf16.msra.mxu0 0
        %1123 = vmatprep.mubr.bf16.mxu0 0
        %1124 = vmatmul.mubr.bf16.gmra.mrb[0].mxu0 %v1086
        %v1125 = vpop.f32.mrb[0].mxu0
        %v1126 = vadd.f32 0.0, %v1125
        %v1127 = vpop.f32.mrb[0].mxu0
        %v1128 = vpop.f32.mrb[0].mxu0
        %v1129 = vpop.f32.mrb[0].mxu0
        %1130 = vdwg.mxu0
        %v1131 = vpack.c.bf16 %v1126, %v1126
        %v1133 = vunpack.c.l.b16 %v1131
        %v1134 = vpack.c.b16 %v1133, %v1133
        %1135 = vrot.lane.b32.xlu0 %v1134, 4
        %v1136 = vpop.permute.xlu0 %1135
        %vm1138 = vcmask 60448
        %1139 = vst.msk [vmem:[%s378] sm:$0xf] %vm1138, %v1136
        %v1140 = vld [vmem:[%s323] sm:$0xf]
        %v1142 = vunpack.c.l.b16 %v1140
        %v1143 = vpack.c.b16 %v1142, %v1142
        %1144 = vrot.lane.b32.xlu0 %v1143, 120
        %v1145 = vpop.permute.xlu0 %1144
        %1146 = vrot.lane.b32.xlu0 %v1143, 88
        %v1147 = vpop.permute.xlu0 %1146
        %v1149 = vsel %vm496, %v1145, 0
        %v1152 = vsel %vm496, %v1147, 0
        %1154 = vmatprep.subr.bf16.mxu0 0
        %1155 = vmatpush1.bf16.xpose.msra.mxu0 %v1152
        %1156 = vmatprep.subr.bf16.mxu0 0
        %1157 = vmatpush1.bf16.xpose.msra.mxu0 0
        %1158 = vmatprep.subr.bf16.mxu0 0
        %1159 = vmatpush1.bf16.xpose.msra.mxu0 0
        %1160 = vmatprep.subr.bf16.mxu0 0
        %1161 = vmatpush1.bf16.xpose.msra.mxu0 0
        %1162 = vmatprep.subr.bf16.mxu0 0
        %1163 = vmatpush1.bf16.xpose.msra.mxu0 0
        %1164 = vmatprep.subr.bf16.mxu0 0
        %1165 = vmatpush1.bf16.xpose.msra.mxu0 0
        %1166 = vmatprep.subr.bf16.mxu0 0
        %1167 = vmatpush1.bf16.xpose.msra.mxu0 0
        %1168 = vmatprep.subr.bf16.mxu0 0
        %1169 = vmatpush1.bf16.xpose.msra.mxu0 0
        %1170 = vmatprep.subr.bf16.mxu0 0
        %1171 = vmatpush1.bf16.xpose.msra.mxu0 0
        %1172 = vmatprep.subr.bf16.mxu0 0
        %1173 = vmatpush1.bf16.xpose.msra.mxu0 0
        %1174 = vmatprep.subr.bf16.mxu0 0
        %1175 = vmatpush1.bf16.xpose.msra.mxu0 0
        %1176 = vmatprep.subr.bf16.mxu0 0
        %1177 = vmatpush1.bf16.xpose.msra.mxu0 0
        %1178 = vmatprep.subr.bf16.mxu0 0
        %1179 = vmatpush1.bf16.xpose.msra.mxu0 0
        %1180 = vmatprep.subr.bf16.mxu0 0
        %1181 = vmatpush1.bf16.xpose.msra.mxu0 0
        %1182 = vmatprep.subr.bf16.mxu0 0
        %1183 = vmatpush1.bf16.xpose.msra.mxu0 0
        %1184 = vmatprep.subr.bf16.mxu0 0
        %1185 = vmatpush1.bf16.xpose.msra.mxu0 0
        %1186 = vmatprep.mubr.bf16.mxu0 0
        %1187 = vmatmul.mubr.bf16.gmra.mrb[0].mxu0 %v1149
        %v1188 = vpop.f32.mrb[0].mxu0
        %v1189 = vadd.f32 0.0, %v1188
        %v1190 = vpop.f32.mrb[0].mxu0
        %v1191 = vpop.f32.mrb[0].mxu0
        %v1192 = vpop.f32.mrb[0].mxu0
        %1193 = vdwg.mxu0
        %v1194 = vsel %vm392, %v1189, -inf
        %1195 = vmax.xlane.f32.xlu0 %v1194
        %v1196 = vpop.xlane.xlu0 %1195
        %v1197 = vsub.f32 %v1189, %v1196
        %v1198 = vmul.f32 %v1197, 1.442695
        %v1199 = vpow.pop %v1198
        %v1200 = vsel %vm392, %v1199, 0.0
        %1201 = vadd.xlane.f32.xlu0 %v1200
        %v1202 = vpop.xlane.xlu0 %1201
        %v1203 = vrcp.pop %v1202
        %v1204 = vmul.f32 %v1199, %v1203
        %1205 = vrot.lane.b32.xlu0 %v553, 120
        %v1206 = vpop.permute.xlu0 %1205
        %1207 = vrot.lane.b32.xlu0 %v555, 120
        %v1208 = vpop.permute.xlu0 %1207
        %v1210 = vsel %vm496, %v1206, 0
        %v1213 = vsel %vm496, %v1208, 0
        %1215 = vmatprep.subr.bf16.mxu0 0
        %1216 = vmatpush1.bf16.xpose.msra.mxu0 %v1213
        %1217 = vmatprep.subr.bf16.mxu0 0
        %1218 = vmatpush1.bf16.xpose.msra.mxu0 0
        %1219 = vmatprep.subr.bf16.mxu0 0
        %1220 = vmatpush1.bf16.xpose.msra.mxu0 0
        %1221 = vmatprep.subr.bf16.mxu0 0
        %1222 = vmatpush1.bf16.xpose.msra.mxu0 0
        %1223 = vmatprep.subr.bf16.mxu0 0
        %1224 = vmatpush1.bf16.xpose.msra.mxu0 0
        %1225 = vmatprep.subr.bf16.mxu0 0
        %1226 = vmatpush1.bf16.xpose.msra.mxu0 0
        %1227 = vmatprep.subr.bf16.mxu0 0
        %1228 = vmatpush1.bf16.xpose.msra.mxu0 0
        %1229 = vmatprep.subr.bf16.mxu0 0
        %1230 = vmatpush1.bf16.xpose.msra.mxu0 0
        %1231 = vmatprep.subr.bf16.mxu0 0
        %1232 = vmatpush1.bf16.xpose.msra.mxu0 0
        %1233 = vmatprep.subr.bf16.mxu0 0
        %1234 = vmatpush1.bf16.xpose.msra.mxu0 0
        %1235 = vmatprep.subr.bf16.mxu0 0
        %1236 = vmatpush1.bf16.xpose.msra.mxu0 0
        %1237 = vmatprep.subr.bf16.mxu0 0
        %1238 = vmatpush1.bf16.xpose.msra.mxu0 0
        %1239 = vmatprep.subr.bf16.mxu0 0
        %1240 = vmatpush1.bf16.xpose.msra.mxu0 0
        %1241 = vmatprep.subr.bf16.mxu0 0
        %1242 = vmatpush1.bf16.xpose.msra.mxu0 0
        %1243 = vmatprep.subr.bf16.mxu0 0
        %1244 = vmatpush1.bf16.xpose.msra.mxu0 0
        %1245 = vmatprep.subr.bf16.mxu0 0
        %1246 = vmatpush1.bf16.xpose.msra.mxu0 0
        %1247 = vmatprep.mubr.bf16.mxu0 0
        %1248 = vmatmul.mubr.bf16.gmra.mrb[0].mxu0 %v1210
        %v1249 = vpop.f32.mrb[0].mxu0
        %v1250 = vadd.f32 0.0, %v1249
        %v1251 = vpop.f32.mrb[0].mxu0
        %v1252 = vpop.f32.mrb[0].mxu0
        %v1253 = vpop.f32.mrb[0].mxu0
        %1254 = vdwg.mxu0
        %1255 = vrot.lane.b32.xlu0 %v441, 120
        %v1256 = vpop.permute.xlu0 %1255
        %1257 = vrot.lane.b32.xlu0 %v491, 120
        %v1258 = vpop.permute.xlu0 %1257
        %v1260 = vsel %vm496, %v1256, 0
        %v1263 = vsel %vm496, %v1258, 0
        %1265 = vmatprep.subr.bf16.mxu0 0
        %1266 = vmatpush1.bf16.xpose.msra.mxu0 %v1263
        %1267 = vmatprep.subr.bf16.mxu0 0
        %1268 = vmatpush1.bf16.xpose.msra.mxu0 0
        %1269 = vmatprep.subr.bf16.mxu0 0
        %1270 = vmatpush1.bf16.xpose.msra.mxu0 0
        %1271 = vmatprep.subr.bf16.mxu0 0
        %1272 = vmatpush1.bf16.xpose.msra.mxu0 0
        %1273 = vmatprep.subr.bf16.mxu0 0
        %1274 = vmatpush1.bf16.xpose.msra.mxu0 0
        %1275 = vmatprep.subr.bf16.mxu0 0
        %1276 = vmatpush1.bf16.xpose.msra.mxu0 0
        %1277 = vmatprep.subr.bf16.mxu0 0
        %1278 = vmatpush1.bf16.xpose.msra.mxu0 0
        %1279 = vmatprep.subr.bf16.mxu0 0
        %1280 = vmatpush1.bf16.xpose.msra.mxu0 0
        %1281 = vmatprep.subr.bf16.mxu0 0
        %1282 = vmatpush1.bf16.xpose.msra.mxu0 0
        %1283 = vmatprep.subr.bf16.mxu0 0
        %1284 = vmatpush1.bf16.xpose.msra.mxu0 0
        %1285 = vmatprep.subr.bf16.mxu0 0
        %1286 = vmatpush1.bf16.xpose.msra.mxu0 0
        %1287 = vmatprep.subr.bf16.mxu0 0
        %1288 = vmatpush1.bf16.xpose.msra.mxu0 0
        %1289 = vmatprep.subr.bf16.mxu0 0
        %1290 = vmatpush1.bf16.xpose.msra.mxu0 0
        %1291 = vmatprep.subr.bf16.mxu0 0
        %1292 = vmatpush1.bf16.xpose.msra.mxu0 0
        %1293 = vmatprep.subr.bf16.mxu0 0
        %1294 = vmatpush1.bf16.xpose.msra.mxu0 0
        %1295 = vmatprep.subr.bf16.mxu0 0
        %1296 = vmatpush1.bf16.xpose.msra.mxu0 0
        %1297 = vmatprep.mubr.bf16.mxu0 0
        %1298 = vmatmul.mubr.bf16.gmra.mrb[0].mxu0 %v1260
        %v1299 = vpop.f32.mrb[0].mxu0
        %v1300 = vadd.f32 %v1250, %v1299
        %v1301 = vpop.f32.mrb[0].mxu0
        %v1302 = vpop.f32.mrb[0].mxu0
        %v1303 = vpop.f32.mrb[0].mxu0
        %1304 = vdwg.mxu0
        %v1305 = vadd.f32 %v1300, %v495
        %v1306 = vsel %vm392, %v1305, -inf
        %1307 = vmax.xlane.f32.xlu0 %v1306
        %v1308 = vpop.xlane.xlu0 %1307
        %v1309 = vsub.f32 %v1305, %v1308
        %v1310 = vmul.f32 %v1309, 1.442695
        %v1311 = vpow.pop %v1310
        %v1312 = vsel %vm392, %v1311, 0.0
        %1313 = vadd.xlane.f32.xlu0 %v1312
        %v1314 = vpop.xlane.xlu0 %1313
        %v1315 = vrcp.pop %v1314
        %v1316 = vmul.f32 %v1311, %v1315
        %v1317 = vpack.c.bf16 %v1316, %v1316
        %v1319 = vsel %vm396, %v1317, 0
        %1321 = vmatprep.subr.bf16.mxu0 0
        %1322 = vmatpush1.bf16.msra.mxu0 %v1319
        %1323 = vmatprep.subr.bf16.mxu0 0
        %1324 = vmatpush1.bf16.msra.mxu0 0
        %1325 = vmatprep.subr.bf16.mxu0 0
        %1326 = vmatpush1.bf16.msra.mxu0 0
        %1327 = vmatprep.subr.bf16.mxu0 0
        %1328 = vmatpush1.bf16.msra.mxu0 0
        %1329 = vmatprep.subr.bf16.mxu0 0
        %1330 = vmatpush1.bf16.msra.mxu0 0
        %1331 = vmatprep.subr.bf16.mxu0 0
        %1332 = vmatpush1.bf16.msra.mxu0 0
        %1333 = vmatprep.subr.bf16.mxu0 0
        %1334 = vmatpush1.bf16.msra.mxu0 0
        %1335 = vmatprep.subr.bf16.mxu0 0
        %1336 = vmatpush1.bf16.msra.mxu0 0
        %1337 = vmatprep.subr.bf16.mxu0 0
        %1338 = vmatpush1.bf16.msra.mxu0 0
        %1339 = vmatprep.subr.bf16.mxu0 0
        %1340 = vmatpush1.bf16.msra.mxu0 0
        %1341 = vmatprep.subr.bf16.mxu0 0
        %1342 = vmatpush1.bf16.msra.mxu0 0
        %1343 = vmatprep.subr.bf16.mxu0 0
        %1344 = vmatpush1.bf16.msra.mxu0 0
        %1345 = vmatprep.subr.bf16.mxu0 0
        %1346 = vmatpush1.bf16.msra.mxu0 0
        %1347 = vmatprep.subr.bf16.mxu0 0
        %1348 = vmatpush1.bf16.msra.mxu0 0
        %1349 = vmatprep.subr.bf16.mxu0 0
        %1350 = vmatpush1.bf16.msra.mxu0 0
        %1351 = vmatprep.subr.bf16.mxu0 0
        %1352 = vmatpush1.bf16.msra.mxu0 0
        %1353 = vmatprep.mubr.bf16.mxu0 0
        %1354 = vmatmul.mubr.bf16.gmra.mrb[0].mxu0 %v662
        %v1355 = vpop.f32.mrb[0].mxu0
        %v1356 = vadd.f32 0.0, %v1355
        %v1357 = vpop.f32.mrb[0].mxu0
        %v1358 = vpop.f32.mrb[0].mxu0
        %v1359 = vpop.f32.mrb[0].mxu0
        %1360 = vdwg.mxu0
        %v1361 = vpack.c.bf16 %v1356, %v1356
        %v1362 = vmul.f32 %v708, %v1204
        %v1364 = vsel %vm392, %v1361, 0
        %1366 = vmatprep.subr.bf16.mxu0 0
        %1367 = vmatpush1.bf16.xpose.msra.mxu0 %v714
        %1368 = vmatprep.subr.bf16.mxu0 0
        %1369 = vmatpush1.bf16.xpose.msra.mxu0 0
        %1370 = vmatprep.subr.bf16.mxu0 0
        %1371 = vmatpush1.bf16.xpose.msra.mxu0 0
        %1372 = vmatprep.subr.bf16.mxu0 0
        %1373 = vmatpush1.bf16.xpose.msra.mxu0 0
        %1374 = vmatprep.subr.bf16.mxu0 0
        %1375 = vmatpush1.bf16.xpose.msra.mxu0 0
        %1376 = vmatprep.subr.bf16.mxu0 0
        %1377 = vmatpush1.bf16.xpose.msra.mxu0 0
        %1378 = vmatprep.subr.bf16.mxu0 0
        %1379 = vmatpush1.bf16.xpose.msra.mxu0 0
        %1380 = vmatprep.subr.bf16.mxu0 0
        %1381 = vmatpush1.bf16.xpose.msra.mxu0 0
        %1382 = vmatprep.subr.bf16.mxu0 0
        %1383 = vmatpush1.bf16.xpose.msra.mxu0 0
        %1384 = vmatprep.subr.bf16.mxu0 0
        %1385 = vmatpush1.bf16.xpose.msra.mxu0 0
        %1386 = vmatprep.subr.bf16.mxu0 0
        %1387 = vmatpush1.bf16.xpose.msra.mxu0 0
        %1388 = vmatprep.subr.bf16.mxu0 0
        %1389 = vmatpush1.bf16.xpose.msra.mxu0 0
        %1390 = vmatprep.subr.bf16.mxu0 0
        %1391 = vmatpush1.bf16.xpose.msra.mxu0 0
        %1392 = vmatprep.subr.bf16.mxu0 0
        %1393 = vmatpush1.bf16.xpose.msra.mxu0 0
        %1394 = vmatprep.subr.bf16.mxu0 0
        %1395 = vmatpush1.bf16.xpose.msra.mxu0 0
        %1396 = vmatprep.subr.bf16.mxu0 0
        %1397 = vmatpush1.bf16.xpose.msra.mxu0 0
        %1398 = vmatprep.mubr.bf16.mxu0 0
        %1399 = vmatmul.mubr.bf16.gmra.mrb[0].mxu0 %v1364
        %v1400 = vpop.f32.mrb[0].mxu0
        %v1401 = vadd.f32 %v1362, %v1400
        %v1402 = vpop.f32.mrb[0].mxu0
        %v1403 = vpop.f32.mrb[0].mxu0
        %v1404 = vpop.f32.mrb[0].mxu0
        %1405 = vdwg.mxu0
        %s1406 = scalar_lea.vmem %s332, 16 [#allocation7]
        %v1407 = vld [vmem:[%s1406] sm:$0xff]
        %v1408 = vmul.f32 %v757, %v1407
        %v1409 = vadd.f32 %v1401, %v1408
        %v1410 = vpack.c.bf16 %v1409, %v1409
        %1411 = vrot.lane.b32.xlu0 %v1143, 56
        %v1412 = vpop.permute.xlu0 %1411
        %v1414 = vsel %vm392, %v1410, 0
        %v1417 = vsel %vm396, %v1412, 0
        %1419 = vmatprep.subr.bf16.mxu0 0
        %1420 = vmatpush1.bf16.msra.mxu0 %v1417
        %1421 = vmatprep.subr.bf16.mxu0 0
        %1422 = vmatpush1.bf16.msra.mxu0 0
        %1423 = vmatprep.subr.bf16.mxu0 0
        %1424 = vmatpush1.bf16.msra.mxu0 0
        %1425 = vmatprep.subr.bf16.mxu0 0
        %1426 = vmatpush1.bf16.msra.mxu0 0
        %1427 = vmatprep.subr.bf16.mxu0 0
        %1428 = vmatpush1.bf16.msra.mxu0 0
        %1429 = vmatprep.subr.bf16.mxu0 0
        %1430 = vmatpush1.bf16.msra.mxu0 0
        %1431 = vmatprep.subr.bf16.mxu0 0
        %1432 = vmatpush1.bf16.msra.mxu0 0
        %1433 = vmatprep.subr.bf16.mxu0 0
        %1434 = vmatpush1.bf16.msra.mxu0 0
        %1435 = vmatprep.subr.bf16.mxu0 0
        %1436 = vmatpush1.bf16.msra.mxu0 0
        %1437 = vmatprep.subr.bf16.mxu0 0
        %1438 = vmatpush1.bf16.msra.mxu0 0
        %1439 = vmatprep.subr.bf16.mxu0 0
        %1440 = vmatpush1.bf16.msra.mxu0 0
        %1441 = vmatprep.subr.bf16.mxu0 0
        %1442 = vmatpush1.bf16.msra.mxu0 0
        %1443 = vmatprep.subr.bf16.mxu0 0
        %1444 = vmatpush1.bf16.msra.mxu0 0
        %1445 = vmatprep.subr.bf16.mxu0 0
        %1446 = vmatpush1.bf16.msra.mxu0 0
        %1447 = vmatprep.subr.bf16.mxu0 0
        %1448 = vmatpush1.bf16.msra.mxu0 0
        %1449 = vmatprep.subr.bf16.mxu0 0
        %1450 = vmatpush1.bf16.msra.mxu0 0
        %1451 = vmatprep.mubr.bf16.mxu0 0
        %1452 = vmatmul.mubr.bf16.gmra.mrb[0].mxu0 %v1414
        %v1453 = vpop.f32.mrb[0].mxu0
        %v1454 = vadd.f32 0.0, %v1453
        %v1455 = vpop.f32.mrb[0].mxu0
        %v1456 = vpop.f32.mrb[0].mxu0
        %v1457 = vpop.f32.mrb[0].mxu0
        %1458 = vdwg.mxu0
        %v1459 = vpack.c.bf16 %v1454, %v1454
        %v1461 = vunpack.c.l.b16 %v1459
        %v1462 = vpack.c.b16 %v1461, %v1461
        %1463 = vrot.lane.b32.xlu0 %v1462, 8
        %v1464 = vpop.permute.xlu0 %1463
        %vm1466 = vcmask 93248
        %1467 = vst.msk [vmem:[%s378] sm:$0xf] %vm1466, %v1464
        %v1468 = vld [vmem:[%s323] sm:$0xf]
        %v1470 = vunpack.c.l.b16 %v1468
        %v1471 = vpack.c.b16 %v1470, %v1470
        %1472 = vrot.lane.b32.xlu0 %v1471, 116
        %v1473 = vpop.permute.xlu0 %1472
        %1474 = vrot.lane.b32.xlu0 %v1471, 84
        %v1475 = vpop.permute.xlu0 %1474
        %v1477 = vsel %vm496, %v1473, 0
        %v1480 = vsel %vm496, %v1475, 0
        %1482 = vmatprep.subr.bf16.mxu0 0
        %1483 = vmatpush1.bf16.xpose.msra.mxu0 %v1480
        %1484 = vmatprep.subr.bf16.mxu0 0
        %1485 = vmatpush1.bf16.xpose.msra.mxu0 0
        %1486 = vmatprep.subr.bf16.mxu0 0
        %1487 = vmatpush1.bf16.xpose.msra.mxu0 0
        %1488 = vmatprep.subr.bf16.mxu0 0
        %1489 = vmatpush1.bf16.xpose.msra.mxu0 0
        %1490 = vmatprep.subr.bf16.mxu0 0
        %1491 = vmatpush1.bf16.xpose.msra.mxu0 0
        %1492 = vmatprep.subr.bf16.mxu0 0
        %1493 = vmatpush1.bf16.xpose.msra.mxu0 0
        %1494 = vmatprep.subr.bf16.mxu0 0
        %1495 = vmatpush1.bf16.xpose.msra.mxu0 0
        %1496 = vmatprep.subr.bf16.mxu0 0
        %1497 = vmatpush1.bf16.xpose.msra.mxu0 0
        %1498 = vmatprep.subr.bf16.mxu0 0
        %1499 = vmatpush1.bf16.xpose.msra.mxu0 0
        %1500 = vmatprep.subr.bf16.mxu0 0
        %1501 = vmatpush1.bf16.xpose.msra.mxu0 0
        %1502 = vmatprep.subr.bf16.mxu0 0
        %1503 = vmatpush1.bf16.xpose.msra.mxu0 0
        %1504 = vmatprep.subr.bf16.mxu0 0
        %1505 = vmatpush1.bf16.xpose.msra.mxu0 0
        %1506 = vmatprep.subr.bf16.mxu0 0
        %1507 = vmatpush1.bf16.xpose.msra.mxu0 0
        %1508 = vmatprep.subr.bf16.mxu0 0
        %1509 = vmatpush1.bf16.xpose.msra.mxu0 0
        %1510 = vmatprep.subr.bf16.mxu0 0
        %1511 = vmatpush1.bf16.xpose.msra.mxu0 0
        %1512 = vmatprep.subr.bf16.mxu0 0
        %1513 = vmatpush1.bf16.xpose.msra.mxu0 0
        %1514 = vmatprep.mubr.bf16.mxu0 0
        %1515 = vmatmul.mubr.bf16.gmra.mrb[0].mxu0 %v1477
        %v1516 = vpop.f32.mrb[0].mxu0
        %v1517 = vadd.f32 0.0, %v1516
        %v1518 = vpop.f32.mrb[0].mxu0
        %v1519 = vpop.f32.mrb[0].mxu0
        %v1520 = vpop.f32.mrb[0].mxu0
        %1521 = vdwg.mxu0
        %v1522 = vsel %vm392, %v1517, -inf
        %1523 = vmax.xlane.f32.xlu0 %v1522
        %v1524 = vpop.xlane.xlu0 %1523
        %v1525 = vsub.f32 %v1517, %v1524
        %v1526 = vmul.f32 %v1525, 1.442695
        %v1527 = vpow.pop %v1526
        %v1528 = vsel %vm392, %v1527, 0.0
        %1529 = vadd.xlane.f32.xlu0 %v1528
        %v1530 = vpop.xlane.xlu0 %1529
        %v1531 = vrcp.pop %v1530
        %v1532 = vmul.f32 %v1527, %v1531
        %1533 = vrot.lane.b32.xlu0 %v553, 116
        %v1534 = vpop.permute.xlu0 %1533
        %1535 = vrot.lane.b32.xlu0 %v555, 116
        %v1536 = vpop.permute.xlu0 %1535
        %v1538 = vsel %vm496, %v1534, 0
        %v1541 = vsel %vm496, %v1536, 0
        %1543 = vmatprep.subr.bf16.mxu0 0
        %1544 = vmatpush1.bf16.xpose.msra.mxu0 %v1541
        %1545 = vmatprep.subr.bf16.mxu0 0
        %1546 = vmatpush1.bf16.xpose.msra.mxu0 0
        %1547 = vmatprep.subr.bf16.mxu0 0
        %1548 = vmatpush1.bf16.xpose.msra.mxu0 0
        %1549 = vmatprep.subr.bf16.mxu0 0
        %1550 = vmatpush1.bf16.xpose.msra.mxu0 0
        %1551 = vmatprep.subr.bf16.mxu0 0
        %1552 = vmatpush1.bf16.xpose.msra.mxu0 0
        %1553 = vmatprep.subr.bf16.mxu0 0
        %1554 = vmatpush1.bf16.xpose.msra.mxu0 0
        %1555 = vmatprep.subr.bf16.mxu0 0
        %1556 = vmatpush1.bf16.xpose.msra.mxu0 0
        %1557 = vmatprep.subr.bf16.mxu0 0
        %1558 = vmatpush1.bf16.xpose.msra.mxu0 0
        %1559 = vmatprep.subr.bf16.mxu0 0
        %1560 = vmatpush1.bf16.xpose.msra.mxu0 0
        %1561 = vmatprep.subr.bf16.mxu0 0
        %1562 = vmatpush1.bf16.xpose.msra.mxu0 0
        %1563 = vmatprep.subr.bf16.mxu0 0
        %1564 = vmatpush1.bf16.xpose.msra.mxu0 0
        %1565 = vmatprep.subr.bf16.mxu0 0
        %1566 = vmatpush1.bf16.xpose.msra.mxu0 0
        %1567 = vmatprep.subr.bf16.mxu0 0
        %1568 = vmatpush1.bf16.xpose.msra.mxu0 0
        %1569 = vmatprep.subr.bf16.mxu0 0
        %1570 = vmatpush1.bf16.xpose.msra.mxu0 0
        %1571 = vmatprep.subr.bf16.mxu0 0
        %1572 = vmatpush1.bf16.xpose.msra.mxu0 0
        %1573 = vmatprep.subr.bf16.mxu0 0
        %1574 = vmatpush1.bf16.xpose.msra.mxu0 0
        %1575 = vmatprep.mubr.bf16.mxu0 0
        %1576 = vmatmul.mubr.bf16.gmra.mrb[0].mxu0 %v1538
        %v1577 = vpop.f32.mrb[0].mxu0
        %v1578 = vadd.f32 0.0, %v1577
        %v1579 = vpop.f32.mrb[0].mxu0
        %v1580 = vpop.f32.mrb[0].mxu0
        %v1581 = vpop.f32.mrb[0].mxu0
        %1582 = vdwg.mxu0
        %1583 = vrot.lane.b32.xlu0 %v441, 116
        %v1584 = vpop.permute.xlu0 %1583
        %1585 = vrot.lane.b32.xlu0 %v491, 116
        %v1586 = vpop.permute.xlu0 %1585
        %v1588 = vsel %vm496, %v1584, 0
        %v1591 = vsel %vm496, %v1586, 0
        %1593 = vmatprep.subr.bf16.mxu0 0
        %1594 = vmatpush1.bf16.xpose.msra.mxu0 %v1591
        %1595 = vmatprep.subr.bf16.mxu0 0
        %1596 = vmatpush1.bf16.xpose.msra.mxu0 0
        %1597 = vmatprep.subr.bf16.mxu0 0
        %1598 = vmatpush1.bf16.xpose.msra.mxu0 0
        %1599 = vmatprep.subr.bf16.mxu0 0
        %1600 = vmatpush1.bf16.xpose.msra.mxu0 0
        %1601 = vmatprep.subr.bf16.mxu0 0
        %1602 = vmatpush1.bf16.xpose.msra.mxu0 0
        %1603 = vmatprep.subr.bf16.mxu0 0
        %1604 = vmatpush1.bf16.xpose.msra.mxu0 0
        %1605 = vmatprep.subr.bf16.mxu0 0
        %1606 = vmatpush1.bf16.xpose.msra.mxu0 0
        %1607 = vmatprep.subr.bf16.mxu0 0
        %1608 = vmatpush1.bf16.xpose.msra.mxu0 0
        %1609 = vmatprep.subr.bf16.mxu0 0
        %1610 = vmatpush1.bf16.xpose.msra.mxu0 0
        %1611 = vmatprep.subr.bf16.mxu0 0
        %1612 = vmatpush1.bf16.xpose.msra.mxu0 0
        %1613 = vmatprep.subr.bf16.mxu0 0
        %1614 = vmatpush1.bf16.xpose.msra.mxu0 0
        %1615 = vmatprep.subr.bf16.mxu0 0
        %1616 = vmatpush1.bf16.xpose.msra.mxu0 0
        %1617 = vmatprep.subr.bf16.mxu0 0
        %1618 = vmatpush1.bf16.xpose.msra.mxu0 0
        %1619 = vmatprep.subr.bf16.mxu0 0
        %1620 = vmatpush1.bf16.xpose.msra.mxu0 0
        %1621 = vmatprep.subr.bf16.mxu0 0
        %1622 = vmatpush1.bf16.xpose.msra.mxu0 0
        %1623 = vmatprep.subr.bf16.mxu0 0
        %1624 = vmatpush1.bf16.xpose.msra.mxu0 0
        %1625 = vmatprep.mubr.bf16.mxu0 0
        %1626 = vmatmul.mubr.bf16.gmra.mrb[0].mxu0 %v1588
        %v1627 = vpop.f32.mrb[0].mxu0
        %v1628 = vadd.f32 %v1578, %v1627
        %v1629 = vpop.f32.mrb[0].mxu0
        %v1630 = vpop.f32.mrb[0].mxu0
        %v1631 = vpop.f32.mrb[0].mxu0
        %1632 = vdwg.mxu0
        %v1633 = vadd.f32 %v1628, %v495
        %v1634 = vsel %vm392, %v1633, -inf
        %1635 = vmax.xlane.f32.xlu0 %v1634
        %v1636 = vpop.xlane.xlu0 %1635
        %v1637 = vsub.f32 %v1633, %v1636
        %v1638 = vmul.f32 %v1637, 1.442695
        %v1639 = vpow.pop %v1638
        %v1640 = vsel %vm392, %v1639, 0.0
        %1641 = vadd.xlane.f32.xlu0 %v1640
        %v1642 = vpop.xlane.xlu0 %1641
        %v1643 = vrcp.pop %v1642
        %v1644 = vmul.f32 %v1639, %v1643
        %v1645 = vpack.c.bf16 %v1644, %v1644
        %v1647 = vsel %vm396, %v1645, 0
        %1649 = vmatprep.subr.bf16.mxu0 0
        %1650 = vmatpush1.bf16.msra.mxu0 %v1647
        %1651 = vmatprep.subr.bf16.mxu0 0
        %1652 = vmatpush1.bf16.msra.mxu0 0
        %1653 = vmatprep.subr.bf16.mxu0 0
        %1654 = vmatpush1.bf16.msra.mxu0 0
        %1655 = vmatprep.subr.bf16.mxu0 0
        %1656 = vmatpush1.bf16.msra.mxu0 0
        %1657 = vmatprep.subr.bf16.mxu0 0
        %1658 = vmatpush1.bf16.msra.mxu0 0
        %1659 = vmatprep.subr.bf16.mxu0 0
        %1660 = vmatpush1.bf16.msra.mxu0 0
        %1661 = vmatprep.subr.bf16.mxu0 0
        %1662 = vmatpush1.bf16.msra.mxu0 0
        %1663 = vmatprep.subr.bf16.mxu0 0
        %1664 = vmatpush1.bf16.msra.mxu0 0
        %1665 = vmatprep.subr.bf16.mxu0 0
        %1666 = vmatpush1.bf16.msra.mxu0 0
        %1667 = vmatprep.subr.bf16.mxu0 0
        %1668 = vmatpush1.bf16.msra.mxu0 0
        %1669 = vmatprep.subr.bf16.mxu0 0
        %1670 = vmatpush1.bf16.msra.mxu0 0
        %1671 = vmatprep.subr.bf16.mxu0 0
        %1672 = vmatpush1.bf16.msra.mxu0 0
        %1673 = vmatprep.subr.bf16.mxu0 0
        %1674 = vmatpush1.bf16.msra.mxu0 0
        %1675 = vmatprep.subr.bf16.mxu0 0
        %1676 = vmatpush1.bf16.msra.mxu0 0
        %1677 = vmatprep.subr.bf16.mxu0 0
        %1678 = vmatpush1.bf16.msra.mxu0 0
        %1679 = vmatprep.subr.bf16.mxu0 0
        %1680 = vmatpush1.bf16.msra.mxu0 0
        %1681 = vmatprep.mubr.bf16.mxu0 0
        %1682 = vmatmul.mubr.bf16.gmra.mrb[0].mxu0 %v662
        %v1683 = vpop.f32.mrb[0].mxu0
        %v1684 = vadd.f32 0.0, %v1683
        %v1685 = vpop.f32.mrb[0].mxu0
        %v1686 = vpop.f32.mrb[0].mxu0
        %v1687 = vpop.f32.mrb[0].mxu0
        %1688 = vdwg.mxu0
        %v1689 = vpack.c.bf16 %v1684, %v1684
        %v1690 = vmul.f32 %v708, %v1532
        %v1692 = vsel %vm392, %v1689, 0
        %1694 = vmatprep.subr.bf16.mxu0 0
        %1695 = vmatpush1.bf16.xpose.msra.mxu0 %v714
        %1696 = vmatprep.subr.bf16.mxu0 0
        %1697 = vmatpush1.bf16.xpose.msra.mxu0 0
        %1698 = vmatprep.subr.bf16.mxu0 0
        %1699 = vmatpush1.bf16.xpose.msra.mxu0 0
        %1700 = vmatprep.subr.bf16.mxu0 0
        %1701 = vmatpush1.bf16.xpose.msra.mxu0 0
        %1702 = vmatprep.subr.bf16.mxu0 0
        %1703 = vmatpush1.bf16.xpose.msra.mxu0 0
        %1704 = vmatprep.subr.bf16.mxu0 0
        %1705 = vmatpush1.bf16.xpose.msra.mxu0 0
        %1706 = vmatprep.subr.bf16.mxu0 0
        %1707 = vmatpush1.bf16.xpose.msra.mxu0 0
        %1708 = vmatprep.subr.bf16.mxu0 0
        %1709 = vmatpush1.bf16.xpose.msra.mxu0 0
        %1710 = vmatprep.subr.bf16.mxu0 0
        %1711 = vmatpush1.bf16.xpose.msra.mxu0 0
        %1712 = vmatprep.subr.bf16.mxu0 0
        %1713 = vmatpush1.bf16.xpose.msra.mxu0 0
        %1714 = vmatprep.subr.bf16.mxu0 0
        %1715 = vmatpush1.bf16.xpose.msra.mxu0 0
        %1716 = vmatprep.subr.bf16.mxu0 0
        %1717 = vmatpush1.bf16.xpose.msra.mxu0 0
        %1718 = vmatprep.subr.bf16.mxu0 0
        %1719 = vmatpush1.bf16.xpose.msra.mxu0 0
        %1720 = vmatprep.subr.bf16.mxu0 0
        %1721 = vmatpush1.bf16.xpose.msra.mxu0 0
        %1722 = vmatprep.subr.bf16.mxu0 0
        %1723 = vmatpush1.bf16.xpose.msra.mxu0 0
        %1724 = vmatprep.subr.bf16.mxu0 0
        %1725 = vmatpush1.bf16.xpose.msra.mxu0 0
        %1726 = vmatprep.mubr.bf16.mxu0 0
        %1727 = vmatmul.mubr.bf16.gmra.mrb[0].mxu0 %v1692
        %v1728 = vpop.f32.mrb[0].mxu0
        %v1729 = vadd.f32 %v1690, %v1728
        %v1730 = vpop.f32.mrb[0].mxu0
        %v1731 = vpop.f32.mrb[0].mxu0
        %v1732 = vpop.f32.mrb[0].mxu0
        %1733 = vdwg.mxu0
        %s1734 = scalar_lea.vmem %s332, 24 [#allocation7]
        %v1735 = vld [vmem:[%s1734] sm:$0xff]
        %v1736 = vmul.f32 %v757, %v1735
        %v1737 = vadd.f32 %v1729, %v1736
        %v1738 = vpack.c.bf16 %v1737, %v1737
        %1739 = vrot.lane.b32.xlu0 %v1471, 52
        %v1740 = vpop.permute.xlu0 %1739
        %v1742 = vsel %vm392, %v1738, 0
        %v1745 = vsel %vm396, %v1740, 0
        %1747 = vmatprep.subr.bf16.mxu0 0
        %1748 = vmatpush1.bf16.msra.mxu0 %v1745
        %1749 = vmatprep.subr.bf16.mxu0 0
        %1750 = vmatpush1.bf16.msra.mxu0 0
        %1751 = vmatprep.subr.bf16.mxu0 0
        %1752 = vmatpush1.bf16.msra.mxu0 0
        %1753 = vmatprep.subr.bf16.mxu0 0
        %1754 = vmatpush1.bf16.msra.mxu0 0
        %1755 = vmatprep.subr.bf16.mxu0 0
        %1756 = vmatpush1.bf16.msra.mxu0 0
        %1757 = vmatprep.subr.bf16.mxu0 0
        %1758 = vmatpush1.bf16.msra.mxu0 0
        %1759 = vmatprep.subr.bf16.mxu0 0
        %1760 = vmatpush1.bf16.msra.mxu0 0
        %1761 = vmatprep.subr.bf16.mxu0 0
        %1762 = vmatpush1.bf16.msra.mxu0 0
        %1763 = vmatprep.subr.bf16.mxu0 0
        %1764 = vmatpush1.bf16.msra.mxu0 0
        %1765 = vmatprep.subr.bf16.mxu0 0
        %1766 = vmatpush1.bf16.msra.mxu0 0
        %1767 = vmatprep.subr.bf16.mxu0 0
        %1768 = vmatpush1.bf16.msra.mxu0 0
        %1769 = vmatprep.subr.bf16.mxu0 0
        %1770 = vmatpush1.bf16.msra.mxu0 0
        %1771 = vmatprep.subr.bf16.mxu0 0
        %1772 = vmatpush1.bf16.msra.mxu0 0
        %1773 = vmatprep.subr.bf16.mxu0 0
        %1774 = vmatpush1.bf16.msra.mxu0 0
        %1775 = vmatprep.subr.bf16.mxu0 0
        %1776 = vmatpush1.bf16.msra.mxu0 0
        %1777 = vmatprep.subr.bf16.mxu0 0
        %1778 = vmatpush1.bf16.msra.mxu0 0
        %1779 = vmatprep.mubr.bf16.mxu0 0
        %1780 = vmatmul.mubr.bf16.gmra.mrb[0].mxu0 %v1742
        %v1781 = vpop.f32.mrb[0].mxu0
        %v1782 = vadd.f32 0.0, %v1781
        %v1783 = vpop.f32.mrb[0].mxu0
        %v1784 = vpop.f32.mrb[0].mxu0
        %v1785 = vpop.f32.mrb[0].mxu0
        %1786 = vdwg.mxu0
        %v1787 = vpack.c.bf16 %v1782, %v1782
        %v1789 = vunpack.c.l.b16 %v1787
        %v1790 = vpack.c.b16 %v1789, %v1789
        %1791 = vrot.lane.b32.xlu0 %v1790, 12
        %v1792 = vpop.permute.xlu0 %1791
        %vm1794 = vcmask 126048
        %1795 = vst.msk [vmem:[%s378] sm:$0xf] %vm1794, %v1792
        %v1796 = vld [vmem:[%s323] sm:$0xf]
        %v1798 = vunpack.c.l.b16 %v1796
        %v1799 = vpack.c.b16 %v1798, %v1798
        %1800 = vrot.lane.b32.xlu0 %v1799, 112
        %v1801 = vpop.permute.xlu0 %1800
        %1802 = vrot.lane.b32.xlu0 %v1799, 80
        %v1803 = vpop.permute.xlu0 %1802
        %v1805 = vsel %vm496, %v1801, 0
        %v1808 = vsel %vm496, %v1803, 0
        %1810 = vmatprep.subr.bf16.mxu0 0
        %1811 = vmatpush1.bf16.xpose.msra.mxu0 %v1808
        %1812 = vmatprep.subr.bf16.mxu0 0
        %1813 = vmatpush1.bf16.xpose.msra.mxu0 0
        %1814 = vmatprep.subr.bf16.mxu0 0
        %1815 = vmatpush1.bf16.xpose.msra.mxu0 0
        %1816 = vmatprep.subr.bf16.mxu0 0
        %1817 = vmatpush1.bf16.xpose.msra.mxu0 0
        %1818 = vmatprep.subr.bf16.mxu0 0
        %1819 = vmatpush1.bf16.xpose.msra.mxu0 0
        %1820 = vmatprep.subr.bf16.mxu0 0
        %1821 = vmatpush1.bf16.xpose.msra.mxu0 0
        %1822 = vmatprep.subr.bf16.mxu0 0
        %1823 = vmatpush1.bf16.xpose.msra.mxu0 0
        %1824 = vmatprep.subr.bf16.mxu0 0
        %1825 = vmatpush1.bf16.xpose.msra.mxu0 0
        %1826 = vmatprep.subr.bf16.mxu0 0
        %1827 = vmatpush1.bf16.xpose.msra.mxu0 0
        %1828 = vmatprep.subr.bf16.mxu0 0
        %1829 = vmatpush1.bf16.xpose.msra.mxu0 0
        %1830 = vmatprep.subr.bf16.mxu0 0
        %1831 = vmatpush1.bf16.xpose.msra.mxu0 0
        %1832 = vmatprep.subr.bf16.mxu0 0
        %1833 = vmatpush1.bf16.xpose.msra.mxu0 0
        %1834 = vmatprep.subr.bf16.mxu0 0
        %1835 = vmatpush1.bf16.xpose.msra.mxu0 0
        %1836 = vmatprep.subr.bf16.mxu0 0
        %1837 = vmatpush1.bf16.xpose.msra.mxu0 0
        %1838 = vmatprep.subr.bf16.mxu0 0
        %1839 = vmatpush1.bf16.xpose.msra.mxu0 0
        %1840 = vmatprep.subr.bf16.mxu0 0
        %1841 = vmatpush1.bf16.xpose.msra.mxu0 0
        %1842 = vmatprep.mubr.bf16.mxu0 0
        %1843 = vmatmul.mubr.bf16.gmra.mrb[0].mxu0 %v1805
        %v1844 = vpop.f32.mrb[0].mxu0
        %v1845 = vadd.f32 0.0, %v1844
        %v1846 = vpop.f32.mrb[0].mxu0
        %v1847 = vpop.f32.mrb[0].mxu0
        %v1848 = vpop.f32.mrb[0].mxu0
        %1849 = vdwg.mxu0
        %v1850 = vsel %vm392, %v1845, -inf
        %1851 = vmax.xlane.f32.xlu0 %v1850
        %v1852 = vpop.xlane.xlu0 %1851
        %v1853 = vsub.f32 %v1845, %v1852
        %v1854 = vmul.f32 %v1853, 1.442695
        %v1855 = vpow.pop %v1854
        %v1856 = vsel %vm392, %v1855, 0.0
        %1857 = vadd.xlane.f32.xlu0 %v1856
        %v1858 = vpop.xlane.xlu0 %1857
        %v1859 = vrcp.pop %v1858
        %v1860 = vmul.f32 %v1855, %v1859
        %1861 = vrot.lane.b32.xlu0 %v553, 112
        %v1862 = vpop.permute.xlu0 %1861
        %1863 = vrot.lane.b32.xlu0 %v555, 112
        %v1864 = vpop.permute.xlu0 %1863
        %v1866 = vsel %vm496, %v1862, 0
        %v1869 = vsel %vm496, %v1864, 0
        %1871 = vmatprep.subr.bf16.mxu0 0
        %1872 = vmatpush1.bf16.xpose.msra.mxu0 %v1869
        %1873 = vmatprep.subr.bf16.mxu0 0
        %1874 = vmatpush1.bf16.xpose.msra.mxu0 0
        %1875 = vmatprep.subr.bf16.mxu0 0
        %1876 = vmatpush1.bf16.xpose.msra.mxu0 0
        %1877 = vmatprep.subr.bf16.mxu0 0
        %1878 = vmatpush1.bf16.xpose.msra.mxu0 0
        %1879 = vmatprep.subr.bf16.mxu0 0
        %1880 = vmatpush1.bf16.xpose.msra.mxu0 0
        %1881 = vmatprep.subr.bf16.mxu0 0
        %1882 = vmatpush1.bf16.xpose.msra.mxu0 0
        %1883 = vmatprep.subr.bf16.mxu0 0
        %1884 = vmatpush1.bf16.xpose.msra.mxu0 0
        %1885 = vmatprep.subr.bf16.mxu0 0
        %1886 = vmatpush1.bf16.xpose.msra.mxu0 0
        %1887 = vmatprep.subr.bf16.mxu0 0
        %1888 = vmatpush1.bf16.xpose.msra.mxu0 0
        %1889 = vmatprep.subr.bf16.mxu0 0
        %1890 = vmatpush1.bf16.xpose.msra.mxu0 0
        %1891 = vmatprep.subr.bf16.mxu0 0
        %1892 = vmatpush1.bf16.xpose.msra.mxu0 0
        %1893 = vmatprep.subr.bf16.mxu0 0
        %1894 = vmatpush1.bf16.xpose.msra.mxu0 0
        %1895 = vmatprep.subr.bf16.mxu0 0
        %1896 = vmatpush1.bf16.xpose.msra.mxu0 0
        %1897 = vmatprep.subr.bf16.mxu0 0
        %1898 = vmatpush1.bf16.xpose.msra.mxu0 0
        %1899 = vmatprep.subr.bf16.mxu0 0
        %1900 = vmatpush1.bf16.xpose.msra.mxu0 0
        %1901 = vmatprep.subr.bf16.mxu0 0
        %1902 = vmatpush1.bf16.xpose.msra.mxu0 0
        %1903 = vmatprep.mubr.bf16.mxu0 0
        %1904 = vmatmul.mubr.bf16.gmra.mrb[0].mxu0 %v1866
        %v1905 = vpop.f32.mrb[0].mxu0
        %v1906 = vadd.f32 0.0, %v1905
        %v1907 = vpop.f32.mrb[0].mxu0
        %v1908 = vpop.f32.mrb[0].mxu0
        %v1909 = vpop.f32.mrb[0].mxu0
        %1910 = vdwg.mxu0
        %1911 = vrot.lane.b32.xlu0 %v441, 112
        %v1912 = vpop.permute.xlu0 %1911
        %1913 = vrot.lane.b32.xlu0 %v491, 112
        %v1914 = vpop.permute.xlu0 %1913
        %v1916 = vsel %vm496, %v1912, 0
        %v1919 = vsel %vm496, %v1914, 0
        %1921 = vmatprep.subr.bf16.mxu0 0
        %1922 = vmatpush1.bf16.xpose.msra.mxu0 %v1919
        %1923 = vmatprep.subr.bf16.mxu0 0
        %1924 = vmatpush1.bf16.xpose.msra.mxu0 0
        %1925 = vmatprep.subr.bf16.mxu0 0
        %1926 = vmatpush1.bf16.xpose.msra.mxu0 0
        %1927 = vmatprep.subr.bf16.mxu0 0
        %1928 = vmatpush1.bf16.xpose.msra.mxu0 0
        %1929 = vmatprep.subr.bf16.mxu0 0
        %1930 = vmatpush1.bf16.xpose.msra.mxu0 0
        %1931 = vmatprep.subr.bf16.mxu0 0
        %1932 = vmatpush1.bf16.xpose.msra.mxu0 0
        %1933 = vmatprep.subr.bf16.mxu0 0
        %1934 = vmatpush1.bf16.xpose.msra.mxu0 0
        %1935 = vmatprep.subr.bf16.mxu0 0
        %1936 = vmatpush1.bf16.xpose.msra.mxu0 0
        %1937 = vmatprep.subr.bf16.mxu0 0
        %1938 = vmatpush1.bf16.xpose.msra.mxu0 0
        %1939 = vmatprep.subr.bf16.mxu0 0
        %1940 = vmatpush1.bf16.xpose.msra.mxu0 0
        %1941 = vmatprep.subr.bf16.mxu0 0
        %1942 = vmatpush1.bf16.xpose.msra.mxu0 0
        %1943 = vmatprep.subr.bf16.mxu0 0
        %1944 = vmatpush1.bf16.xpose.msra.mxu0 0
        %1945 = vmatprep.subr.bf16.mxu0 0
        %1946 = vmatpush1.bf16.xpose.msra.mxu0 0
        %1947 = vmatprep.subr.bf16.mxu0 0
        %1948 = vmatpush1.bf16.xpose.msra.mxu0 0
        %1949 = vmatprep.subr.bf16.mxu0 0
        %1950 = vmatpush1.bf16.xpose.msra.mxu0 0
        %1951 = vmatprep.subr.bf16.mxu0 0
        %1952 = vmatpush1.bf16.xpose.msra.mxu0 0
        %1953 = vmatprep.mubr.bf16.mxu0 0
        %1954 = vmatmul.mubr.bf16.gmra.mrb[0].mxu0 %v1916
        %v1955 = vpop.f32.mrb[0].mxu0
        %v1956 = vadd.f32 %v1906, %v1955
        %v1957 = vpop.f32.mrb[0].mxu0
        %v1958 = vpop.f32.mrb[0].mxu0
        %v1959 = vpop.f32.mrb[0].mxu0
        %1960 = vdwg.mxu0
        %v1961 = vadd.f32 %v1956, %v495
        %v1962 = vsel %vm392, %v1961, -inf
        %1963 = vmax.xlane.f32.xlu0 %v1962
        %v1964 = vpop.xlane.xlu0 %1963
        %v1965 = vsub.f32 %v1961, %v1964
        %v1966 = vmul.f32 %v1965, 1.442695
        %v1967 = vpow.pop %v1966
        %v1968 = vsel %vm392, %v1967, 0.0
        %1969 = vadd.xlane.f32.xlu0 %v1968
        %v1970 = vpop.xlane.xlu0 %1969
        %v1971 = vrcp.pop %v1970
        %v1972 = vmul.f32 %v1967, %v1971
        %v1973 = vpack.c.bf16 %v1972, %v1972
        %v1975 = vsel %vm396, %v1973, 0
        %1977 = vmatprep.subr.bf16.mxu0 0
        %1978 = vmatpush1.bf16.msra.mxu0 %v1975
        %1979 = vmatprep.subr.bf16.mxu0 0
        %1980 = vmatpush1.bf16.msra.mxu0 0
        %1981 = vmatprep.subr.bf16.mxu0 0
        %1982 = vmatpush1.bf16.msra.mxu0 0
        %1983 = vmatprep.subr.bf16.mxu0 0
        %1984 = vmatpush1.bf16.msra.mxu0 0
        %1985 = vmatprep.subr.bf16.mxu0 0
        %1986 = vmatpush1.bf16.msra.mxu0 0
        %1987 = vmatprep.subr.bf16.mxu0 0
        %1988 = vmatpush1.bf16.msra.mxu0 0
        %1989 = vmatprep.subr.bf16.mxu0 0
        %1990 = vmatpush1.bf16.msra.mxu0 0
        %1991 = vmatprep.subr.bf16.mxu0 0
        %1992 = vmatpush1.bf16.msra.mxu0 0
        %1993 = vmatprep.subr.bf16.mxu0 0
        %1994 = vmatpush1.bf16.msra.mxu0 0
        %1995 = vmatprep.subr.bf16.mxu0 0
        %1996 = vmatpush1.bf16.msra.mxu0 0
        %1997 = vmatprep.subr.bf16.mxu0 0
        %1998 = vmatpush1.bf16.msra.mxu0 0
        %1999 = vmatprep.subr.bf16.mxu0 0
        %2000 = vmatpush1.bf16.msra.mxu0 0
        %2001 = vmatprep.subr.bf16.mxu0 0
        %2002 = vmatpush1.bf16.msra.mxu0 0
        %2003 = vmatprep.subr.bf16.mxu0 0
        %2004 = vmatpush1.bf16.msra.mxu0 0
        %2005 = vmatprep.subr.bf16.mxu0 0
        %2006 = vmatpush1.bf16.msra.mxu0 0
        %2007 = vmatprep.subr.bf16.mxu0 0
        %2008 = vmatpush1.bf16.msra.mxu0 0
        %2009 = vmatprep.mubr.bf16.mxu0 0
        %2010 = vmatmul.mubr.bf16.gmra.mrb[0].mxu0 %v662
        %v2011 = vpop.f32.mrb[0].mxu0
        %v2012 = vadd.f32 0.0, %v2011
        %v2013 = vpop.f32.mrb[0].mxu0
        %v2014 = vpop.f32.mrb[0].mxu0
        %v2015 = vpop.f32.mrb[0].mxu0
        %2016 = vdwg.mxu0
        %v2017 = vpack.c.bf16 %v2012, %v2012
        %v2018 = vmul.f32 %v708, %v1860
        %v2020 = vsel %vm392, %v2017, 0
        %2022 = vmatprep.subr.bf16.mxu0 0
        %2023 = vmatpush1.bf16.xpose.msra.mxu0 %v714
        %2024 = vmatprep.subr.bf16.mxu0 0
        %2025 = vmatpush1.bf16.xpose.msra.mxu0 0
        %2026 = vmatprep.subr.bf16.mxu0 0
        %2027 = vmatpush1.bf16.xpose.msra.mxu0 0
        %2028 = vmatprep.subr.bf16.mxu0 0
        %2029 = vmatpush1.bf16.xpose.msra.mxu0 0
        %2030 = vmatprep.subr.bf16.mxu0 0
        %2031 = vmatpush1.bf16.xpose.msra.mxu0 0
        %2032 = vmatprep.subr.bf16.mxu0 0
        %2033 = vmatpush1.bf16.xpose.msra.mxu0 0
        %2034 = vmatprep.subr.bf16.mxu0 0
        %2035 = vmatpush1.bf16.xpose.msra.mxu0 0
        %2036 = vmatprep.subr.bf16.mxu0 0
        %2037 = vmatpush1.bf16.xpose.msra.mxu0 0
        %2038 = vmatprep.subr.bf16.mxu0 0
        %2039 = vmatpush1.bf16.xpose.msra.mxu0 0
        %2040 = vmatprep.subr.bf16.mxu0 0
        %2041 = vmatpush1.bf16.xpose.msra.mxu0 0
        %2042 = vmatprep.subr.bf16.mxu0 0
        %2043 = vmatpush1.bf16.xpose.msra.mxu0 0
        %2044 = vmatprep.subr.bf16.mxu0 0
        %2045 = vmatpush1.bf16.xpose.msra.mxu0 0
        %2046 = vmatprep.subr.bf16.mxu0 0
        %2047 = vmatpush1.bf16.xpose.msra.mxu0 0
        %2048 = vmatprep.subr.bf16.mxu0 0
        %2049 = vmatpush1.bf16.xpose.msra.mxu0 0
        %2050 = vmatprep.subr.bf16.mxu0 0
        %2051 = vmatpush1.bf16.xpose.msra.mxu0 0
        %2052 = vmatprep.subr.bf16.mxu0 0
        %2053 = vmatpush1.bf16.xpose.msra.mxu0 0
        %2054 = vmatprep.mubr.bf16.mxu0 0
        %2055 = vmatmul.mubr.bf16.gmra.mrb[0].mxu0 %v2020
        %v2056 = vpop.f32.mrb[0].mxu0
        %v2057 = vadd.f32 %v2018, %v2056
        %v2058 = vpop.f32.mrb[0].mxu0
        %v2059 = vpop.f32.mrb[0].mxu0
        %v2060 = vpop.f32.mrb[0].mxu0
        %2061 = vdwg.mxu0
        %s2062 = scalar_lea.vmem %s332, 32 [#allocation7]
        %v2063 = vld [vmem:[%s2062] sm:$0xff]
        %v2064 = vmul.f32 %v757, %v2063
        %v2065 = vadd.f32 %v2057, %v2064
        %v2066 = vpack.c.bf16 %v2065, %v2065
        %2067 = vrot.lane.b32.xlu0 %v1799, 48
        %v2068 = vpop.permute.xlu0 %2067
        %v2070 = vsel %vm392, %v2066, 0
        %v2073 = vsel %vm396, %v2068, 0
        %2075 = vmatprep.subr.bf16.mxu0 0
        %2076 = vmatpush1.bf16.msra.mxu0 %v2073
        %2077 = vmatprep.subr.bf16.mxu0 0
        %2078 = vmatpush1.bf16.msra.mxu0 0
        %2079 = vmatprep.subr.bf16.mxu0 0
        %2080 = vmatpush1.bf16.msra.mxu0 0
        %2081 = vmatprep.subr.bf16.mxu0 0
        %2082 = vmatpush1.bf16.msra.mxu0 0
        %2083 = vmatprep.subr.bf16.mxu0 0
        %2084 = vmatpush1.bf16.msra.mxu0 0
        %2085 = vmatprep.subr.bf16.mxu0 0
        %2086 = vmatpush1.bf16.msra.mxu0 0
        %2087 = vmatprep.subr.bf16.mxu0 0
        %2088 = vmatpush1.bf16.msra.mxu0 0
        %2089 = vmatprep.subr.bf16.mxu0 0
        %2090 = vmatpush1.bf16.msra.mxu0 0
        %2091 = vmatprep.subr.bf16.mxu0 0
        %2092 = vmatpush1.bf16.msra.mxu0 0
        %2093 = vmatprep.subr.bf16.mxu0 0
        %2094 = vmatpush1.bf16.msra.mxu0 0
        %2095 = vmatprep.subr.bf16.mxu0 0
        %2096 = vmatpush1.bf16.msra.mxu0 0
        %2097 = vmatprep.subr.bf16.mxu0 0
        %2098 = vmatpush1.bf16.msra.mxu0 0
        %2099 = vmatprep.subr.bf16.mxu0 0
        %2100 = vmatpush1.bf16.msra.mxu0 0
        %2101 = vmatprep.subr.bf16.mxu0 0
        %2102 = vmatpush1.bf16.msra.mxu0 0
        %2103 = vmatprep.subr.bf16.mxu0 0
        %2104 = vmatpush1.bf16.msra.mxu0 0
        %2105 = vmatprep.subr.bf16.mxu0 0
        %2106 = vmatpush1.bf16.msra.mxu0 0
        %2107 = vmatprep.mubr.bf16.mxu0 0
        %2108 = vmatmul.mubr.bf16.gmra.mrb[0].mxu0 %v2070
        %v2109 = vpop.f32.mrb[0].mxu0
        %v2110 = vadd.f32 0.0, %v2109
        %v2111 = vpop.f32.mrb[0].mxu0
        %v2112 = vpop.f32.mrb[0].mxu0
        %v2113 = vpop.f32.mrb[0].mxu0
        %2114 = vdwg.mxu0
        %v2115 = vpack.c.bf16 %v2110, %v2110
        %v2117 = vunpack.c.l.b16 %v2115
        %v2118 = vpack.c.b16 %v2117, %v2117
        %2119 = vrot.lane.b32.xlu0 %v2118, 16
        %v2120 = vpop.permute.xlu0 %2119
        %vm2122 = vcmask 158848
        %2123 = vst.msk [vmem:[%s378] sm:$0xf] %vm2122, %v2120
        %v2124 = vld [vmem:[%s323] sm:$0xf]
        %v2126 = vunpack.c.l.b16 %v2124
        %v2127 = vpack.c.b16 %v2126, %v2126
        %2128 = vrot.lane.b32.xlu0 %v2127, 108
        %v2129 = vpop.permute.xlu0 %2128
        %2130 = vrot.lane.b32.xlu0 %v2127, 76
        %v2131 = vpop.permute.xlu0 %2130
        %v2133 = vsel %vm496, %v2129, 0
        %v2136 = vsel %vm496, %v2131, 0
        %2138 = vmatprep.subr.bf16.mxu0 0
        %2139 = vmatpush1.bf16.xpose.msra.mxu0 %v2136
        %2140 = vmatprep.subr.bf16.mxu0 0
        %2141 = vmatpush1.bf16.xpose.msra.mxu0 0
        %2142 = vmatprep.subr.bf16.mxu0 0
        %2143 = vmatpush1.bf16.xpose.msra.mxu0 0
        %2144 = vmatprep.subr.bf16.mxu0 0
        %2145 = vmatpush1.bf16.xpose.msra.mxu0 0
        %2146 = vmatprep.subr.bf16.mxu0 0
        %2147 = vmatpush1.bf16.xpose.msra.mxu0 0
        %2148 = vmatprep.subr.bf16.mxu0 0
        %2149 = vmatpush1.bf16.xpose.msra.mxu0 0
        %2150 = vmatprep.subr.bf16.mxu0 0
        %2151 = vmatpush1.bf16.xpose.msra.mxu0 0
        %2152 = vmatprep.subr.bf16.mxu0 0
        %2153 = vmatpush1.bf16.xpose.msra.mxu0 0
        %2154 = vmatprep.subr.bf16.mxu0 0
        %2155 = vmatpush1.bf16.xpose.msra.mxu0 0
        %2156 = vmatprep.subr.bf16.mxu0 0
        %2157 = vmatpush1.bf16.xpose.msra.mxu0 0
        %2158 = vmatprep.subr.bf16.mxu0 0
        %2159 = vmatpush1.bf16.xpose.msra.mxu0 0
        %2160 = vmatprep.subr.bf16.mxu0 0
        %2161 = vmatpush1.bf16.xpose.msra.mxu0 0
        %2162 = vmatprep.subr.bf16.mxu0 0
        %2163 = vmatpush1.bf16.xpose.msra.mxu0 0
        %2164 = vmatprep.subr.bf16.mxu0 0
        %2165 = vmatpush1.bf16.xpose.msra.mxu0 0
        %2166 = vmatprep.subr.bf16.mxu0 0
        %2167 = vmatpush1.bf16.xpose.msra.mxu0 0
        %2168 = vmatprep.subr.bf16.mxu0 0
        %2169 = vmatpush1.bf16.xpose.msra.mxu0 0
        %2170 = vmatprep.mubr.bf16.mxu0 0
        %2171 = vmatmul.mubr.bf16.gmra.mrb[0].mxu0 %v2133
        %v2172 = vpop.f32.mrb[0].mxu0
        %v2173 = vadd.f32 0.0, %v2172
        %v2174 = vpop.f32.mrb[0].mxu0
        %v2175 = vpop.f32.mrb[0].mxu0
        %v2176 = vpop.f32.mrb[0].mxu0
        %2177 = vdwg.mxu0
        %v2178 = vsel %vm392, %v2173, -inf
        %2179 = vmax.xlane.f32.xlu0 %v2178
        %v2180 = vpop.xlane.xlu0 %2179
        %v2181 = vsub.f32 %v2173, %v2180
        %v2182 = vmul.f32 %v2181, 1.442695
        %v2183 = vpow.pop %v2182
        %v2184 = vsel %vm392, %v2183, 0.0
        %2185 = vadd.xlane.f32.xlu0 %v2184
        %v2186 = vpop.xlane.xlu0 %2185
        %v2187 = vrcp.pop %v2186
        %v2188 = vmul.f32 %v2183, %v2187
        %2189 = vrot.lane.b32.xlu0 %v553, 108
        %v2190 = vpop.permute.xlu0 %2189
        %2191 = vrot.lane.b32.xlu0 %v555, 108
        %v2192 = vpop.permute.xlu0 %2191
        %v2194 = vsel %vm496, %v2190, 0
        %v2197 = vsel %vm496, %v2192, 0
        %2199 = vmatprep.subr.bf16.mxu0 0
        %2200 = vmatpush1.bf16.xpose.msra.mxu0 %v2197
        %2201 = vmatprep.subr.bf16.mxu0 0
        %2202 = vmatpush1.bf16.xpose.msra.mxu0 0
        %2203 = vmatprep.subr.bf16.mxu0 0
        %2204 = vmatpush1.bf16.xpose.msra.mxu0 0
        %2205 = vmatprep.subr.bf16.mxu0 0
        %2206 = vmatpush1.bf16.xpose.msra.mxu0 0
        %2207 = vmatprep.subr.bf16.mxu0 0
        %2208 = vmatpush1.bf16.xpose.msra.mxu0 0
        %2209 = vmatprep.subr.bf16.mxu0 0
        %2210 = vmatpush1.bf16.xpose.msra.mxu0 0
        %2211 = vmatprep.subr.bf16.mxu0 0
        %2212 = vmatpush1.bf16.xpose.msra.mxu0 0
        %2213 = vmatprep.subr.bf16.mxu0 0
        %2214 = vmatpush1.bf16.xpose.msra.mxu0 0
        %2215 = vmatprep.subr.bf16.mxu0 0
        %2216 = vmatpush1.bf16.xpose.msra.mxu0 0
        %2217 = vmatprep.subr.bf16.mxu0 0
        %2218 = vmatpush1.bf16.xpose.msra.mxu0 0
        %2219 = vmatprep.subr.bf16.mxu0 0
        %2220 = vmatpush1.bf16.xpose.msra.mxu0 0
        %2221 = vmatprep.subr.bf16.mxu0 0
        %2222 = vmatpush1.bf16.xpose.msra.mxu0 0
        %2223 = vmatprep.subr.bf16.mxu0 0
        %2224 = vmatpush1.bf16.xpose.msra.mxu0 0
        %2225 = vmatprep.subr.bf16.mxu0 0
        %2226 = vmatpush1.bf16.xpose.msra.mxu0 0
        %2227 = vmatprep.subr.bf16.mxu0 0
        %2228 = vmatpush1.bf16.xpose.msra.mxu0 0
        %2229 = vmatprep.subr.bf16.mxu0 0
        %2230 = vmatpush1.bf16.xpose.msra.mxu0 0
        %2231 = vmatprep.mubr.bf16.mxu0 0
        %2232 = vmatmul.mubr.bf16.gmra.mrb[0].mxu0 %v2194
        %v2233 = vpop.f32.mrb[0].mxu0
        %v2234 = vadd.f32 0.0, %v2233
        %v2235 = vpop.f32.mrb[0].mxu0
        %v2236 = vpop.f32.mrb[0].mxu0
        %v2237 = vpop.f32.mrb[0].mxu0
        %2238 = vdwg.mxu0
        %2239 = vrot.lane.b32.xlu0 %v441, 108
        %v2240 = vpop.permute.xlu0 %2239
        %2241 = vrot.lane.b32.xlu0 %v491, 108
        %v2242 = vpop.permute.xlu0 %2241
        %v2244 = vsel %vm496, %v2240, 0
        %v2247 = vsel %vm496, %v2242, 0
        %2249 = vmatprep.subr.bf16.mxu0 0
        %2250 = vmatpush1.bf16.xpose.msra.mxu0 %v2247
        %2251 = vmatprep.subr.bf16.mxu0 0
        %2252 = vmatpush1.bf16.xpose.msra.mxu0 0
        %2253 = vmatprep.subr.bf16.mxu0 0
        %2254 = vmatpush1.bf16.xpose.msra.mxu0 0
        %2255 = vmatprep.subr.bf16.mxu0 0
        %2256 = vmatpush1.bf16.xpose.msra.mxu0 0
        %2257 = vmatprep.subr.bf16.mxu0 0
        %2258 = vmatpush1.bf16.xpose.msra.mxu0 0
        %2259 = vmatprep.subr.bf16.mxu0 0
        %2260 = vmatpush1.bf16.xpose.msra.mxu0 0
        %2261 = vmatprep.subr.bf16.mxu0 0
        %2262 = vmatpush1.bf16.xpose.msra.mxu0 0
        %2263 = vmatprep.subr.bf16.mxu0 0
        %2264 = vmatpush1.bf16.xpose.msra.mxu0 0
        %2265 = vmatprep.subr.bf16.mxu0 0
        %2266 = vmatpush1.bf16.xpose.msra.mxu0 0
        %2267 = vmatprep.subr.bf16.mxu0 0
        %2268 = vmatpush1.bf16.xpose.msra.mxu0 0
        %2269 = vmatprep.subr.bf16.mxu0 0
        %2270 = vmatpush1.bf16.xpose.msra.mxu0 0
        %2271 = vmatprep.subr.bf16.mxu0 0
        %2272 = vmatpush1.bf16.xpose.msra.mxu0 0
        %2273 = vmatprep.subr.bf16.mxu0 0
        %2274 = vmatpush1.bf16.xpose.msra.mxu0 0
        %2275 = vmatprep.subr.bf16.mxu0 0
        %2276 = vmatpush1.bf16.xpose.msra.mxu0 0
        %2277 = vmatprep.subr.bf16.mxu0 0
        %2278 = vmatpush1.bf16.xpose.msra.mxu0 0
        %2279 = vmatprep.subr.bf16.mxu0 0
        %2280 = vmatpush1.bf16.xpose.msra.mxu0 0
        %2281 = vmatprep.mubr.bf16.mxu0 0
        %2282 = vmatmul.mubr.bf16.gmra.mrb[0].mxu0 %v2244
        %v2283 = vpop.f32.mrb[0].mxu0
        %v2284 = vadd.f32 %v2234, %v2283
        %v2285 = vpop.f32.mrb[0].mxu0
        %v2286 = vpop.f32.mrb[0].mxu0
        %v2287 = vpop.f32.mrb[0].mxu0
        %2288 = vdwg.mxu0
        %v2289 = vadd.f32 %v2284, %v495
        %v2290 = vsel %vm392, %v2289, -inf
        %2291 = vmax.xlane.f32.xlu0 %v2290
        %v2292 = vpop.xlane.xlu0 %2291
        %v2293 = vsub.f32 %v2289, %v2292
        %v2294 = vmul.f32 %v2293, 1.442695
        %v2295 = vpow.pop %v2294
        %v2296 = vsel %vm392, %v2295, 0.0
        %2297 = vadd.xlane.f32.xlu0 %v2296
        %v2298 = vpop.xlane.xlu0 %2297
        %v2299 = vrcp.pop %v2298
        %v2300 = vmul.f32 %v2295, %v2299
        %v2301 = vpack.c.bf16 %v2300, %v2300
        %v2303 = vsel %vm396, %v2301, 0
        %2305 = vmatprep.subr.bf16.mxu0 0
        %2306 = vmatpush1.bf16.msra.mxu0 %v2303
        %2307 = vmatprep.subr.bf16.mxu0 0
        %2308 = vmatpush1.bf16.msra.mxu0 0
        %2309 = vmatprep.subr.bf16.mxu0 0
        %2310 = vmatpush1.bf16.msra.mxu0 0
        %2311 = vmatprep.subr.bf16.mxu0 0
        %2312 = vmatpush1.bf16.msra.mxu0 0
        %2313 = vmatprep.subr.bf16.mxu0 0
        %2314 = vmatpush1.bf16.msra.mxu0 0
        %2315 = vmatprep.subr.bf16.mxu0 0
        %2316 = vmatpush1.bf16.msra.mxu0 0
        %2317 = vmatprep.subr.bf16.mxu0 0
        %2318 = vmatpush1.bf16.msra.mxu0 0
        %2319 = vmatprep.subr.bf16.mxu0 0
        %2320 = vmatpush1.bf16.msra.mxu0 0
        %2321 = vmatprep.subr.bf16.mxu0 0
        %2322 = vmatpush1.bf16.msra.mxu0 0
        %2323 = vmatprep.subr.bf16.mxu0 0
        %2324 = vmatpush1.bf16.msra.mxu0 0
        %2325 = vmatprep.subr.bf16.mxu0 0
        %2326 = vmatpush1.bf16.msra.mxu0 0
        %2327 = vmatprep.subr.bf16.mxu0 0
        %2328 = vmatpush1.bf16.msra.mxu0 0
        %2329 = vmatprep.subr.bf16.mxu0 0
        %2330 = vmatpush1.bf16.msra.mxu0 0
        %2331 = vmatprep.subr.bf16.mxu0 0
        %2332 = vmatpush1.bf16.msra.mxu0 0
        %2333 = vmatprep.subr.bf16.mxu0 0
        %2334 = vmatpush1.bf16.msra.mxu0 0
        %2335 = vmatprep.subr.bf16.mxu0 0
        %2336 = vmatpush1.bf16.msra.mxu0 0
        %2337 = vmatprep.mubr.bf16.mxu0 0
        %2338 = vmatmul.mubr.bf16.gmra.mrb[0].mxu0 %v662
        %v2339 = vpop.f32.mrb[0].mxu0
        %v2340 = vadd.f32 0.0, %v2339
        %v2341 = vpop.f32.mrb[0].mxu0
        %v2342 = vpop.f32.mrb[0].mxu0
        %v2343 = vpop.f32.mrb[0].mxu0
        %2344 = vdwg.mxu0
        %v2345 = vpack.c.bf16 %v2340, %v2340
        %v2346 = vmul.f32 %v708, %v2188
        %v2348 = vsel %vm392, %v2345, 0
        %2350 = vmatprep.subr.bf16.mxu0 0
        %2351 = vmatpush1.bf16.xpose.msra.mxu0 %v714
        %2352 = vmatprep.subr.bf16.mxu0 0
        %2353 = vmatpush1.bf16.xpose.msra.mxu0 0
        %2354 = vmatprep.subr.bf16.mxu0 0
        %2355 = vmatpush1.bf16.xpose.msra.mxu0 0
        %2356 = vmatprep.subr.bf16.mxu0 0
        %2357 = vmatpush1.bf16.xpose.msra.mxu0 0
        %2358 = vmatprep.subr.bf16.mxu0 0
        %2359 = vmatpush1.bf16.xpose.msra.mxu0 0
        %2360 = vmatprep.subr.bf16.mxu0 0
        %2361 = vmatpush1.bf16.xpose.msra.mxu0 0
        %2362 = vmatprep.subr.bf16.mxu0 0
        %2363 = vmatpush1.bf16.xpose.msra.mxu0 0
        %2364 = vmatprep.subr.bf16.mxu0 0
        %2365 = vmatpush1.bf16.xpose.msra.mxu0 0
        %2366 = vmatprep.subr.bf16.mxu0 0
        %2367 = vmatpush1.bf16.xpose.msra.mxu0 0
        %2368 = vmatprep.subr.bf16.mxu0 0
        %2369 = vmatpush1.bf16.xpose.msra.mxu0 0
        %2370 = vmatprep.subr.bf16.mxu0 0
        %2371 = vmatpush1.bf16.xpose.msra.mxu0 0
        %2372 = vmatprep.subr.bf16.mxu0 0
        %2373 = vmatpush1.bf16.xpose.msra.mxu0 0
        %2374 = vmatprep.subr.bf16.mxu0 0
        %2375 = vmatpush1.bf16.xpose.msra.mxu0 0
        %2376 = vmatprep.subr.bf16.mxu0 0
        %2377 = vmatpush1.bf16.xpose.msra.mxu0 0
        %2378 = vmatprep.subr.bf16.mxu0 0
        %2379 = vmatpush1.bf16.xpose.msra.mxu0 0
        %2380 = vmatprep.subr.bf16.mxu0 0
        %2381 = vmatpush1.bf16.xpose.msra.mxu0 0
        %2382 = vmatprep.mubr.bf16.mxu0 0
        %2383 = vmatmul.mubr.bf16.gmra.mrb[0].mxu0 %v2348
        %v2384 = vpop.f32.mrb[0].mxu0
        %v2385 = vadd.f32 %v2346, %v2384
        %v2386 = vpop.f32.mrb[0].mxu0
        %v2387 = vpop.f32.mrb[0].mxu0
        %v2388 = vpop.f32.mrb[0].mxu0
        %2389 = vdwg.mxu0
        %s2390 = scalar_lea.vmem %s332, 40 [#allocation7]
        %v2391 = vld [vmem:[%s2390] sm:$0xff]
        %v2392 = vmul.f32 %v757, %v2391
        %v2393 = vadd.f32 %v2385, %v2392
        %v2394 = vpack.c.bf16 %v2393, %v2393
        %2395 = vrot.lane.b32.xlu0 %v2127, 44
        %v2396 = vpop.permute.xlu0 %2395
        %v2398 = vsel %vm392, %v2394, 0
        %v2401 = vsel %vm396, %v2396, 0
        %2403 = vmatprep.subr.bf16.mxu0 0
        %2404 = vmatpush1.bf16.msra.mxu0 %v2401
        %2405 = vmatprep.subr.bf16.mxu0 0
        %2406 = vmatpush1.bf16.msra.mxu0 0
        %2407 = vmatprep.subr.bf16.mxu0 0
        %2408 = vmatpush1.bf16.msra.mxu0 0
        %2409 = vmatprep.subr.bf16.mxu0 0
        %2410 = vmatpush1.bf16.msra.mxu0 0
        %2411 = vmatprep.subr.bf16.mxu0 0
        %2412 = vmatpush1.bf16.msra.mxu0 0
        %2413 = vmatprep.subr.bf16.mxu0 0
        %2414 = vmatpush1.bf16.msra.mxu0 0
        %2415 = vmatprep.subr.bf16.mxu0 0
        %2416 = vmatpush1.bf16.msra.mxu0 0
        %2417 = vmatprep.subr.bf16.mxu0 0
        %2418 = vmatpush1.bf16.msra.mxu0 0
        %2419 = vmatprep.subr.bf16.mxu0 0
        %2420 = vmatpush1.bf16.msra.mxu0 0
        %2421 = vmatprep.subr.bf16.mxu0 0
        %2422 = vmatpush1.bf16.msra.mxu0 0
        %2423 = vmatprep.subr.bf16.mxu0 0
        %2424 = vmatpush1.bf16.msra.mxu0 0
        %2425 = vmatprep.subr.bf16.mxu0 0
        %2426 = vmatpush1.bf16.msra.mxu0 0
        %2427 = vmatprep.subr.bf16.mxu0 0
        %2428 = vmatpush1.bf16.msra.mxu0 0
        %2429 = vmatprep.subr.bf16.mxu0 0
        %2430 = vmatpush1.bf16.msra.mxu0 0
        %2431 = vmatprep.subr.bf16.mxu0 0
        %2432 = vmatpush1.bf16.msra.mxu0 0
        %2433 = vmatprep.subr.bf16.mxu0 0
        %2434 = vmatpush1.bf16.msra.mxu0 0
        %2435 = vmatprep.mubr.bf16.mxu0 0
        %2436 = vmatmul.mubr.bf16.gmra.mrb[0].mxu0 %v2398
        %v2437 = vpop.f32.mrb[0].mxu0
        %v2438 = vadd.f32 0.0, %v2437
        %v2439 = vpop.f32.mrb[0].mxu0
        %v2440 = vpop.f32.mrb[0].mxu0
        %v2441 = vpop.f32.mrb[0].mxu0
        %2442 = vdwg.mxu0
        %v2443 = vpack.c.bf16 %v2438, %v2438
        %v2445 = vunpack.c.l.b16 %v2443
        %v2446 = vpack.c.b16 %v2445, %v2445
        %2447 = vrot.lane.b32.xlu0 %v2446, 20
        %v2448 = vpop.permute.xlu0 %2447
        %vm2450 = vcmask 191648
        %2451 = vst.msk [vmem:[%s378] sm:$0xf] %vm2450, %v2448
        %v2452 = vld [vmem:[%s323] sm:$0xf]
        %v2454 = vunpack.c.l.b16 %v2452
        %v2455 = vpack.c.b16 %v2454, %v2454
        %2456 = vrot.lane.b32.xlu0 %v2455, 104
        %v2457 = vpop.permute.xlu0 %2456
        %2458 = vrot.lane.b32.xlu0 %v2455, 72
        %v2459 = vpop.permute.xlu0 %2458
        %v2461 = vsel %vm496, %v2457, 0
        %v2464 = vsel %vm496, %v2459, 0
        %2466 = vmatprep.subr.bf16.mxu0 0
        %2467 = vmatpush1.bf16.xpose.msra.mxu0 %v2464
        %2468 = vmatprep.subr.bf16.mxu0 0
        %2469 = vmatpush1.bf16.xpose.msra.mxu0 0
        %2470 = vmatprep.subr.bf16.mxu0 0
        %2471 = vmatpush1.bf16.xpose.msra.mxu0 0
        %2472 = vmatprep.subr.bf16.mxu0 0
        %2473 = vmatpush1.bf16.xpose.msra.mxu0 0
        %2474 = vmatprep.subr.bf16.mxu0 0
        %2475 = vmatpush1.bf16.xpose.msra.mxu0 0
        %2476 = vmatprep.subr.bf16.mxu0 0
        %2477 = vmatpush1.bf16.xpose.msra.mxu0 0
        %2478 = vmatprep.subr.bf16.mxu0 0
        %2479 = vmatpush1.bf16.xpose.msra.mxu0 0
        %2480 = vmatprep.subr.bf16.mxu0 0
        %2481 = vmatpush1.bf16.xpose.msra.mxu0 0
        %2482 = vmatprep.subr.bf16.mxu0 0
        %2483 = vmatpush1.bf16.xpose.msra.mxu0 0
        %2484 = vmatprep.subr.bf16.mxu0 0
        %2485 = vmatpush1.bf16.xpose.msra.mxu0 0
        %2486 = vmatprep.subr.bf16.mxu0 0
        %2487 = vmatpush1.bf16.xpose.msra.mxu0 0
        %2488 = vmatprep.subr.bf16.mxu0 0
        %2489 = vmatpush1.bf16.xpose.msra.mxu0 0
        %2490 = vmatprep.subr.bf16.mxu0 0
        %2491 = vmatpush1.bf16.xpose.msra.mxu0 0
        %2492 = vmatprep.subr.bf16.mxu0 0
        %2493 = vmatpush1.bf16.xpose.msra.mxu0 0
        %2494 = vmatprep.subr.bf16.mxu0 0
        %2495 = vmatpush1.bf16.xpose.msra.mxu0 0
        %2496 = vmatprep.subr.bf16.mxu0 0
        %2497 = vmatpush1.bf16.xpose.msra.mxu0 0
        %2498 = vmatprep.mubr.bf16.mxu0 0
        %2499 = vmatmul.mubr.bf16.gmra.mrb[0].mxu0 %v2461
        %v2500 = vpop.f32.mrb[0].mxu0
        %v2501 = vadd.f32 0.0, %v2500
        %v2502 = vpop.f32.mrb[0].mxu0
        %v2503 = vpop.f32.mrb[0].mxu0
        %v2504 = vpop.f32.mrb[0].mxu0
        %2505 = vdwg.mxu0
        %v2506 = vsel %vm392, %v2501, -inf
        %2507 = vmax.xlane.f32.xlu0 %v2506
        %v2508 = vpop.xlane.xlu0 %2507
        %v2509 = vsub.f32 %v2501, %v2508
        %v2510 = vmul.f32 %v2509, 1.442695
        %v2511 = vpow.pop %v2510
        %v2512 = vsel %vm392, %v2511, 0.0
        %2513 = vadd.xlane.f32.xlu0 %v2512
        %v2514 = vpop.xlane.xlu0 %2513
        %v2515 = vrcp.pop %v2514
        %v2516 = vmul.f32 %v2511, %v2515
        %2517 = vrot.lane.b32.xlu0 %v553, 104
        %v2518 = vpop.permute.xlu0 %2517
        %2519 = vrot.lane.b32.xlu0 %v555, 104
        %v2520 = vpop.permute.xlu0 %2519
        %v2522 = vsel %vm496, %v2518, 0
        %v2525 = vsel %vm496, %v2520, 0
        %2527 = vmatprep.subr.bf16.mxu0 0
        %2528 = vmatpush1.bf16.xpose.msra.mxu0 %v2525
        %2529 = vmatprep.subr.bf16.mxu0 0
        %2530 = vmatpush1.bf16.xpose.msra.mxu0 0
        %2531 = vmatprep.subr.bf16.mxu0 0
        %2532 = vmatpush1.bf16.xpose.msra.mxu0 0
        %2533 = vmatprep.subr.bf16.mxu0 0
        %2534 = vmatpush1.bf16.xpose.msra.mxu0 0
        %2535 = vmatprep.subr.bf16.mxu0 0
        %2536 = vmatpush1.bf16.xpose.msra.mxu0 0
        %2537 = vmatprep.subr.bf16.mxu0 0
        %2538 = vmatpush1.bf16.xpose.msra.mxu0 0
        %2539 = vmatprep.subr.bf16.mxu0 0
        %2540 = vmatpush1.bf16.xpose.msra.mxu0 0
        %2541 = vmatprep.subr.bf16.mxu0 0
        %2542 = vmatpush1.bf16.xpose.msra.mxu0 0
        %2543 = vmatprep.subr.bf16.mxu0 0
        %2544 = vmatpush1.bf16.xpose.msra.mxu0 0
        %2545 = vmatprep.subr.bf16.mxu0 0
        %2546 = vmatpush1.bf16.xpose.msra.mxu0 0
        %2547 = vmatprep.subr.bf16.mxu0 0
        %2548 = vmatpush1.bf16.xpose.msra.mxu0 0
        %2549 = vmatprep.subr.bf16.mxu0 0
        %2550 = vmatpush1.bf16.xpose.msra.mxu0 0
        %2551 = vmatprep.subr.bf16.mxu0 0
        %2552 = vmatpush1.bf16.xpose.msra.mxu0 0
        %2553 = vmatprep.subr.bf16.mxu0 0
        %2554 = vmatpush1.bf16.xpose.msra.mxu0 0
        %2555 = vmatprep.subr.bf16.mxu0 0
        %2556 = vmatpush1.bf16.xpose.msra.mxu0 0
        %2557 = vmatprep.subr.bf16.mxu0 0
        %2558 = vmatpush1.bf16.xpose.msra.mxu0 0
        %2559 = vmatprep.mubr.bf16.mxu0 0
        %2560 = vmatmul.mubr.bf16.gmra.mrb[0].mxu0 %v2522
        %v2561 = vpop.f32.mrb[0].mxu0
        %v2562 = vadd.f32 0.0, %v2561
        %v2563 = vpop.f32.mrb[0].mxu0
        %v2564 = vpop.f32.mrb[0].mxu0
        %v2565 = vpop.f32.mrb[0].mxu0
        %2566 = vdwg.mxu0
        %2567 = vrot.lane.b32.xlu0 %v441, 104
        %v2568 = vpop.permute.xlu0 %2567
        %2569 = vrot.lane.b32.xlu0 %v491, 104
        %v2570 = vpop.permute.xlu0 %2569
        %v2572 = vsel %vm496, %v2568, 0
        %v2575 = vsel %vm496, %v2570, 0
        %2577 = vmatprep.subr.bf16.mxu0 0
        %2578 = vmatpush1.bf16.xpose.msra.mxu0 %v2575
        %2579 = vmatprep.subr.bf16.mxu0 0
        %2580 = vmatpush1.bf16.xpose.msra.mxu0 0
        %2581 = vmatprep.subr.bf16.mxu0 0
        %2582 = vmatpush1.bf16.xpose.msra.mxu0 0
        %2583 = vmatprep.subr.bf16.mxu0 0
        %2584 = vmatpush1.bf16.xpose.msra.mxu0 0
        %2585 = vmatprep.subr.bf16.mxu0 0
        %2586 = vmatpush1.bf16.xpose.msra.mxu0 0
        %2587 = vmatprep.subr.bf16.mxu0 0
        %2588 = vmatpush1.bf16.xpose.msra.mxu0 0
        %2589 = vmatprep.subr.bf16.mxu0 0
        %2590 = vmatpush1.bf16.xpose.msra.mxu0 0
        %2591 = vmatprep.subr.bf16.mxu0 0
        %2592 = vmatpush1.bf16.xpose.msra.mxu0 0
        %2593 = vmatprep.subr.bf16.mxu0 0
        %2594 = vmatpush1.bf16.xpose.msra.mxu0 0
        %2595 = vmatprep.subr.bf16.mxu0 0
        %2596 = vmatpush1.bf16.xpose.msra.mxu0 0
        %2597 = vmatprep.subr.bf16.mxu0 0
        %2598 = vmatpush1.bf16.xpose.msra.mxu0 0
        %2599 = vmatprep.subr.bf16.mxu0 0
        %2600 = vmatpush1.bf16.xpose.msra.mxu0 0
        %2601 = vmatprep.subr.bf16.mxu0 0
        %2602 = vmatpush1.bf16.xpose.msra.mxu0 0
        %2603 = vmatprep.subr.bf16.mxu0 0
        %2604 = vmatpush1.bf16.xpose.msra.mxu0 0
        %2605 = vmatprep.subr.bf16.mxu0 0
        %2606 = vmatpush1.bf16.xpose.msra.mxu0 0
        %2607 = vmatprep.subr.bf16.mxu0 0
        %2608 = vmatpush1.bf16.xpose.msra.mxu0 0
        %2609 = vmatprep.mubr.bf16.mxu0 0
        %2610 = vmatmul.mubr.bf16.gmra.mrb[0].mxu0 %v2572
        %v2611 = vpop.f32.mrb[0].mxu0
        %v2612 = vadd.f32 %v2562, %v2611
        %v2613 = vpop.f32.mrb[0].mxu0
        %v2614 = vpop.f32.mrb[0].mxu0
        %v2615 = vpop.f32.mrb[0].mxu0
        %2616 = vdwg.mxu0
        %v2617 = vadd.f32 %v2612, %v495
        %v2618 = vsel %vm392, %v2617, -inf
        %2619 = vmax.xlane.f32.xlu0 %v2618
        %v2620 = vpop.xlane.xlu0 %2619
        %v2621 = vsub.f32 %v2617, %v2620
        %v2622 = vmul.f32 %v2621, 1.442695
        %v2623 = vpow.pop %v2622
        %v2624 = vsel %vm392, %v2623, 0.0
        %2625 = vadd.xlane.f32.xlu0 %v2624
        %v2626 = vpop.xlane.xlu0 %2625
        %v2627 = vrcp.pop %v2626
        %v2628 = vmul.f32 %v2623, %v2627
        %v2629 = vpack.c.bf16 %v2628, %v2628
        %v2631 = vsel %vm396, %v2629, 0
        %2633 = vmatprep.subr.bf16.mxu0 0
        %2634 = vmatpush1.bf16.msra.mxu0 %v2631
        %2635 = vmatprep.subr.bf16.mxu0 0
        %2636 = vmatpush1.bf16.msra.mxu0 0
        %2637 = vmatprep.subr.bf16.mxu0 0
        %2638 = vmatpush1.bf16.msra.mxu0 0
        %2639 = vmatprep.subr.bf16.mxu0 0
        %2640 = vmatpush1.bf16.msra.mxu0 0
        %2641 = vmatprep.subr.bf16.mxu0 0
        %2642 = vmatpush1.bf16.msra.mxu0 0
        %2643 = vmatprep.subr.bf16.mxu0 0
        %2644 = vmatpush1.bf16.msra.mxu0 0
        %2645 = vmatprep.subr.bf16.mxu0 0
        %2646 = vmatpush1.bf16.msra.mxu0 0
        %2647 = vmatprep.subr.bf16.mxu0 0
        %2648 = vmatpush1.bf16.msra.mxu0 0
        %2649 = vmatprep.subr.bf16.mxu0 0
        %2650 = vmatpush1.bf16.msra.mxu0 0
        %2651 = vmatprep.subr.bf16.mxu0 0
        %2652 = vmatpush1.bf16.msra.mxu0 0
        %2653 = vmatprep.subr.bf16.mxu0 0
        %2654 = vmatpush1.bf16.msra.mxu0 0
        %2655 = vmatprep.subr.bf16.mxu0 0
        %2656 = vmatpush1.bf16.msra.mxu0 0
        %2657 = vmatprep.subr.bf16.mxu0 0
        %2658 = vmatpush1.bf16.msra.mxu0 0
        %2659 = vmatprep.subr.bf16.mxu0 0
        %2660 = vmatpush1.bf16.msra.mxu0 0
        %2661 = vmatprep.subr.bf16.mxu0 0
        %2662 = vmatpush1.bf16.msra.mxu0 0
        %2663 = vmatprep.subr.bf16.mxu0 0
        %2664 = vmatpush1.bf16.msra.mxu0 0
        %2665 = vmatprep.mubr.bf16.mxu0 0
        %2666 = vmatmul.mubr.bf16.gmra.mrb[0].mxu0 %v662
        %v2667 = vpop.f32.mrb[0].mxu0
        %v2668 = vadd.f32 0.0, %v2667
        %v2669 = vpop.f32.mrb[0].mxu0
        %v2670 = vpop.f32.mrb[0].mxu0
        %v2671 = vpop.f32.mrb[0].mxu0
        %2672 = vdwg.mxu0
        %v2673 = vpack.c.bf16 %v2668, %v2668
        %v2674 = vmul.f32 %v708, %v2516
        %v2676 = vsel %vm392, %v2673, 0
        %2678 = vmatprep.subr.bf16.mxu0 0
        %2679 = vmatpush1.bf16.xpose.msra.mxu0 %v714
        %2680 = vmatprep.subr.bf16.mxu0 0
        %2681 = vmatpush1.bf16.xpose.msra.mxu0 0
        %2682 = vmatprep.subr.bf16.mxu0 0
        %2683 = vmatpush1.bf16.xpose.msra.mxu0 0
        %2684 = vmatprep.subr.bf16.mxu0 0
        %2685 = vmatpush1.bf16.xpose.msra.mxu0 0
        %2686 = vmatprep.subr.bf16.mxu0 0
        %2687 = vmatpush1.bf16.xpose.msra.mxu0 0
        %2688 = vmatprep.subr.bf16.mxu0 0
        %2689 = vmatpush1.bf16.xpose.msra.mxu0 0
        %2690 = vmatprep.subr.bf16.mxu0 0
        %2691 = vmatpush1.bf16.xpose.msra.mxu0 0
        %2692 = vmatprep.subr.bf16.mxu0 0
        %2693 = vmatpush1.bf16.xpose.msra.mxu0 0
        %2694 = vmatprep.subr.bf16.mxu0 0
        %2695 = vmatpush1.bf16.xpose.msra.mxu0 0
        %2696 = vmatprep.subr.bf16.mxu0 0
        %2697 = vmatpush1.bf16.xpose.msra.mxu0 0
        %2698 = vmatprep.subr.bf16.mxu0 0
        %2699 = vmatpush1.bf16.xpose.msra.mxu0 0
        %2700 = vmatprep.subr.bf16.mxu0 0
        %2701 = vmatpush1.bf16.xpose.msra.mxu0 0
        %2702 = vmatprep.subr.bf16.mxu0 0
        %2703 = vmatpush1.bf16.xpose.msra.mxu0 0
        %2704 = vmatprep.subr.bf16.mxu0 0
        %2705 = vmatpush1.bf16.xpose.msra.mxu0 0
        %2706 = vmatprep.subr.bf16.mxu0 0
        %2707 = vmatpush1.bf16.xpose.msra.mxu0 0
        %2708 = vmatprep.subr.bf16.mxu0 0
        %2709 = vmatpush1.bf16.xpose.msra.mxu0 0
        %2710 = vmatprep.mubr.bf16.mxu0 0
        %2711 = vmatmul.mubr.bf16.gmra.mrb[0].mxu0 %v2676
        %v2712 = vpop.f32.mrb[0].mxu0
        %v2713 = vadd.f32 %v2674, %v2712
        %v2714 = vpop.f32.mrb[0].mxu0
        %v2715 = vpop.f32.mrb[0].mxu0
        %v2716 = vpop.f32.mrb[0].mxu0
        %2717 = vdwg.mxu0
        %s2718 = scalar_lea.vmem %s332, 48 [#allocation7]
        %v2719 = vld [vmem:[%s2718] sm:$0xff]
        %v2720 = vmul.f32 %v757, %v2719
        %v2721 = vadd.f32 %v2713, %v2720
        %v2722 = vpack.c.bf16 %v2721, %v2721
        %2723 = vrot.lane.b32.xlu0 %v2455, 40
        %v2724 = vpop.permute.xlu0 %2723
        %v2726 = vsel %vm392, %v2722, 0
        %v2729 = vsel %vm396, %v2724, 0
        %2731 = vmatprep.subr.bf16.mxu0 0
        %2732 = vmatpush1.bf16.msra.mxu0 %v2729
        %2733 = vmatprep.subr.bf16.mxu0 0
        %2734 = vmatpush1.bf16.msra.mxu0 0
        %2735 = vmatprep.subr.bf16.mxu0 0
        %2736 = vmatpush1.bf16.msra.mxu0 0
        %2737 = vmatprep.subr.bf16.mxu0 0
        %2738 = vmatpush1.bf16.msra.mxu0 0
        %2739 = vmatprep.subr.bf16.mxu0 0
        %2740 = vmatpush1.bf16.msra.mxu0 0
        %2741 = vmatprep.subr.bf16.mxu0 0
        %2742 = vmatpush1.bf16.msra.mxu0 0
        %2743 = vmatprep.subr.bf16.mxu0 0
        %2744 = vmatpush1.bf16.msra.mxu0 0
        %2745 = vmatprep.subr.bf16.mxu0 0
        %2746 = vmatpush1.bf16.msra.mxu0 0
        %2747 = vmatprep.subr.bf16.mxu0 0
        %2748 = vmatpush1.bf16.msra.mxu0 0
        %2749 = vmatprep.subr.bf16.mxu0 0
        %2750 = vmatpush1.bf16.msra.mxu0 0
        %2751 = vmatprep.subr.bf16.mxu0 0
        %2752 = vmatpush1.bf16.msra.mxu0 0
        %2753 = vmatprep.subr.bf16.mxu0 0
        %2754 = vmatpush1.bf16.msra.mxu0 0
        %2755 = vmatprep.subr.bf16.mxu0 0
        %2756 = vmatpush1.bf16.msra.mxu0 0
        %2757 = vmatprep.subr.bf16.mxu0 0
        %2758 = vmatpush1.bf16.msra.mxu0 0
        %2759 = vmatprep.subr.bf16.mxu0 0
        %2760 = vmatpush1.bf16.msra.mxu0 0
        %2761 = vmatprep.subr.bf16.mxu0 0
        %2762 = vmatpush1.bf16.msra.mxu0 0
        %2763 = vmatprep.mubr.bf16.mxu0 0
        %2764 = vmatmul.mubr.bf16.gmra.mrb[0].mxu0 %v2726
        %v2765 = vpop.f32.mrb[0].mxu0
        %v2766 = vadd.f32 0.0, %v2765
        %v2767 = vpop.f32.mrb[0].mxu0
        %v2768 = vpop.f32.mrb[0].mxu0
        %v2769 = vpop.f32.mrb[0].mxu0
        %2770 = vdwg.mxu0
        %v2771 = vpack.c.bf16 %v2766, %v2766
        %v2773 = vunpack.c.l.b16 %v2771
        %v2774 = vpack.c.b16 %v2773, %v2773
        %2775 = vrot.lane.b32.xlu0 %v2774, 24
        %v2776 = vpop.permute.xlu0 %2775
        %vm2778 = vcmask 224448
        %2779 = vst.msk [vmem:[%s378] sm:$0xf] %vm2778, %v2776
        %v2780 = vld [vmem:[%s323] sm:$0xf]
        %v2782 = vunpack.c.l.b16 %v2780
        %v2783 = vpack.c.b16 %v2782, %v2782
        %2784 = vrot.lane.b32.xlu0 %v2783, 100
        %v2785 = vpop.permute.xlu0 %2784
        %2786 = vrot.lane.b32.xlu0 %v2783, 68
        %v2787 = vpop.permute.xlu0 %2786
        %v2789 = vsel %vm496, %v2785, 0
        %v2792 = vsel %vm496, %v2787, 0
        %2794 = vmatprep.subr.bf16.mxu0 0
        %2795 = vmatpush1.bf16.xpose.msra.mxu0 %v2792
        %2796 = vmatprep.subr.bf16.mxu0 0
        %2797 = vmatpush1.bf16.xpose.msra.mxu0 0
        %2798 = vmatprep.subr.bf16.mxu0 0
        %2799 = vmatpush1.bf16.xpose.msra.mxu0 0
        %2800 = vmatprep.subr.bf16.mxu0 0
        %2801 = vmatpush1.bf16.xpose.msra.mxu0 0
        %2802 = vmatprep.subr.bf16.mxu0 0
        %2803 = vmatpush1.bf16.xpose.msra.mxu0 0
        %2804 = vmatprep.subr.bf16.mxu0 0
        %2805 = vmatpush1.bf16.xpose.msra.mxu0 0
        %2806 = vmatprep.subr.bf16.mxu0 0
        %2807 = vmatpush1.bf16.xpose.msra.mxu0 0
        %2808 = vmatprep.subr.bf16.mxu0 0
        %2809 = vmatpush1.bf16.xpose.msra.mxu0 0
        %2810 = vmatprep.subr.bf16.mxu0 0
        %2811 = vmatpush1.bf16.xpose.msra.mxu0 0
        %2812 = vmatprep.subr.bf16.mxu0 0
        %2813 = vmatpush1.bf16.xpose.msra.mxu0 0
        %2814 = vmatprep.subr.bf16.mxu0 0
        %2815 = vmatpush1.bf16.xpose.msra.mxu0 0
        %2816 = vmatprep.subr.bf16.mxu0 0
        %2817 = vmatpush1.bf16.xpose.msra.mxu0 0
        %2818 = vmatprep.subr.bf16.mxu0 0
        %2819 = vmatpush1.bf16.xpose.msra.mxu0 0
        %2820 = vmatprep.subr.bf16.mxu0 0
        %2821 = vmatpush1.bf16.xpose.msra.mxu0 0
        %2822 = vmatprep.subr.bf16.mxu0 0
        %2823 = vmatpush1.bf16.xpose.msra.mxu0 0
        %2824 = vmatprep.subr.bf16.mxu0 0
        %2825 = vmatpush1.bf16.xpose.msra.mxu0 0
        %2826 = vmatprep.mubr.bf16.mxu0 0
        %2827 = vmatmul.mubr.bf16.gmra.mrb[0].mxu0 %v2789
        %v2828 = vpop.f32.mrb[0].mxu0
        %v2829 = vadd.f32 0.0, %v2828
        %v2830 = vpop.f32.mrb[0].mxu0
        %v2831 = vpop.f32.mrb[0].mxu0
        %v2832 = vpop.f32.mrb[0].mxu0
        %2833 = vdwg.mxu0
        %v2834 = vsel %vm392, %v2829, -inf
        %2835 = vmax.xlane.f32.xlu0 %v2834
        %v2836 = vpop.xlane.xlu0 %2835
        %v2837 = vsub.f32 %v2829, %v2836
        %v2838 = vmul.f32 %v2837, 1.442695
        %v2839 = vpow.pop %v2838
        %v2840 = vsel %vm392, %v2839, 0.0
        %2841 = vadd.xlane.f32.xlu0 %v2840
        %v2842 = vpop.xlane.xlu0 %2841
        %v2843 = vrcp.pop %v2842
        %v2844 = vmul.f32 %v2839, %v2843
        %2845 = vrot.lane.b32.xlu0 %v553, 100
        %v2846 = vpop.permute.xlu0 %2845
        %2847 = vrot.lane.b32.xlu0 %v555, 100
        %v2848 = vpop.permute.xlu0 %2847
        %v2850 = vsel %vm496, %v2846, 0
        %v2853 = vsel %vm496, %v2848, 0
        %2855 = vmatprep.subr.bf16.mxu0 0
        %2856 = vmatpush1.bf16.xpose.msra.mxu0 %v2853
        %2857 = vmatprep.subr.bf16.mxu0 0
        %2858 = vmatpush1.bf16.xpose.msra.mxu0 0
        %2859 = vmatprep.subr.bf16.mxu0 0
        %2860 = vmatpush1.bf16.xpose.msra.mxu0 0
        %2861 = vmatprep.subr.bf16.mxu0 0
        %2862 = vmatpush1.bf16.xpose.msra.mxu0 0
        %2863 = vmatprep.subr.bf16.mxu0 0
        %2864 = vmatpush1.bf16.xpose.msra.mxu0 0
        %2865 = vmatprep.subr.bf16.mxu0 0
        %2866 = vmatpush1.bf16.xpose.msra.mxu0 0
        %2867 = vmatprep.subr.bf16.mxu0 0
        %2868 = vmatpush1.bf16.xpose.msra.mxu0 0
        %2869 = vmatprep.subr.bf16.mxu0 0
        %2870 = vmatpush1.bf16.xpose.msra.mxu0 0
        %2871 = vmatprep.subr.bf16.mxu0 0
        %2872 = vmatpush1.bf16.xpose.msra.mxu0 0
        %2873 = vmatprep.subr.bf16.mxu0 0
        %2874 = vmatpush1.bf16.xpose.msra.mxu0 0
        %2875 = vmatprep.subr.bf16.mxu0 0
        %2876 = vmatpush1.bf16.xpose.msra.mxu0 0
        %2877 = vmatprep.subr.bf16.mxu0 0
        %2878 = vmatpush1.bf16.xpose.msra.mxu0 0
        %2879 = vmatprep.subr.bf16.mxu0 0
        %2880 = vmatpush1.bf16.xpose.msra.mxu0 0
        %2881 = vmatprep.subr.bf16.mxu0 0
        %2882 = vmatpush1.bf16.xpose.msra.mxu0 0
        %2883 = vmatprep.subr.bf16.mxu0 0
        %2884 = vmatpush1.bf16.xpose.msra.mxu0 0
        %2885 = vmatprep.subr.bf16.mxu0 0
        %2886 = vmatpush1.bf16.xpose.msra.mxu0 0
        %2887 = vmatprep.mubr.bf16.mxu0 0
        %2888 = vmatmul.mubr.bf16.gmra.mrb[0].mxu0 %v2850
        %v2889 = vpop.f32.mrb[0].mxu0
        %v2890 = vadd.f32 0.0, %v2889
        %v2891 = vpop.f32.mrb[0].mxu0
        %v2892 = vpop.f32.mrb[0].mxu0
        %v2893 = vpop.f32.mrb[0].mxu0
        %2894 = vdwg.mxu0
        %2895 = vrot.lane.b32.xlu0 %v441, 100
        %v2896 = vpop.permute.xlu0 %2895
        %2897 = vrot.lane.b32.xlu0 %v491, 100
        %v2898 = vpop.permute.xlu0 %2897
        %v2900 = vsel %vm496, %v2896, 0
        %v2903 = vsel %vm496, %v2898, 0
        %2905 = vmatprep.subr.bf16.mxu0 0
        %2906 = vmatpush1.bf16.xpose.msra.mxu0 %v2903
        %2907 = vmatprep.subr.bf16.mxu0 0
        %2908 = vmatpush1.bf16.xpose.msra.mxu0 0
        %2909 = vmatprep.subr.bf16.mxu0 0
        %2910 = vmatpush1.bf16.xpose.msra.mxu0 0
        %2911 = vmatprep.subr.bf16.mxu0 0
        %2912 = vmatpush1.bf16.xpose.msra.mxu0 0
        %2913 = vmatprep.subr.bf16.mxu0 0
        %2914 = vmatpush1.bf16.xpose.msra.mxu0 0
        %2915 = vmatprep.subr.bf16.mxu0 0
        %2916 = vmatpush1.bf16.xpose.msra.mxu0 0
        %2917 = vmatprep.subr.bf16.mxu0 0
        %2918 = vmatpush1.bf16.xpose.msra.mxu0 0
        %2919 = vmatprep.subr.bf16.mxu0 0
        %2920 = vmatpush1.bf16.xpose.msra.mxu0 0
        %2921 = vmatprep.subr.bf16.mxu0 0
        %2922 = vmatpush1.bf16.xpose.msra.mxu0 0
        %2923 = vmatprep.subr.bf16.mxu0 0
        %2924 = vmatpush1.bf16.xpose.msra.mxu0 0
        %2925 = vmatprep.subr.bf16.mxu0 0
        %2926 = vmatpush1.bf16.xpose.msra.mxu0 0
        %2927 = vmatprep.subr.bf16.mxu0 0
        %2928 = vmatpush1.bf16.xpose.msra.mxu0 0
        %2929 = vmatprep.subr.bf16.mxu0 0
        %2930 = vmatpush1.bf16.xpose.msra.mxu0 0
        %2931 = vmatprep.subr.bf16.mxu0 0
        %2932 = vmatpush1.bf16.xpose.msra.mxu0 0
        %2933 = vmatprep.subr.bf16.mxu0 0
        %2934 = vmatpush1.bf16.xpose.msra.mxu0 0
        %2935 = vmatprep.subr.bf16.mxu0 0
        %2936 = vmatpush1.bf16.xpose.msra.mxu0 0
        %2937 = vmatprep.mubr.bf16.mxu0 0
        %2938 = vmatmul.mubr.bf16.gmra.mrb[0].mxu0 %v2900
        %v2939 = vpop.f32.mrb[0].mxu0
        %v2940 = vadd.f32 %v2890, %v2939
        %v2941 = vpop.f32.mrb[0].mxu0
        %v2942 = vpop.f32.mrb[0].mxu0
        %v2943 = vpop.f32.mrb[0].mxu0
        %2944 = vdwg.mxu0
        %v2945 = vadd.f32 %v2940, %v495
        %v2946 = vsel %vm392, %v2945, -inf
        %2947 = vmax.xlane.f32.xlu0 %v2946
        %v2948 = vpop.xlane.xlu0 %2947
        %v2949 = vsub.f32 %v2945, %v2948
        %v2950 = vmul.f32 %v2949, 1.442695
        %v2951 = vpow.pop %v2950
        %v2952 = vsel %vm392, %v2951, 0.0
        %2953 = vadd.xlane.f32.xlu0 %v2952
        %v2954 = vpop.xlane.xlu0 %2953
        %v2955 = vrcp.pop %v2954
        %v2956 = vmul.f32 %v2951, %v2955
        %v2957 = vpack.c.bf16 %v2956, %v2956
        %v2959 = vsel %vm396, %v2957, 0
        %2961 = vmatprep.subr.bf16.mxu0 0
        %2962 = vmatpush1.bf16.msra.mxu0 %v2959
        %2963 = vmatprep.subr.bf16.mxu0 0
        %2964 = vmatpush1.bf16.msra.mxu0 0
        %2965 = vmatprep.subr.bf16.mxu0 0
        %2966 = vmatpush1.bf16.msra.mxu0 0
        %2967 = vmatprep.subr.bf16.mxu0 0
        %2968 = vmatpush1.bf16.msra.mxu0 0
        %2969 = vmatprep.subr.bf16.mxu0 0
        %2970 = vmatpush1.bf16.msra.mxu0 0
        %2971 = vmatprep.subr.bf16.mxu0 0
        %2972 = vmatpush1.bf16.msra.mxu0 0
        %2973 = vmatprep.subr.bf16.mxu0 0
        %2974 = vmatpush1.bf16.msra.mxu0 0
        %2975 = vmatprep.subr.bf16.mxu0 0
        %2976 = vmatpush1.bf16.msra.mxu0 0
        %2977 = vmatprep.subr.bf16.mxu0 0
        %2978 = vmatpush1.bf16.msra.mxu0 0
        %2979 = vmatprep.subr.bf16.mxu0 0
        %2980 = vmatpush1.bf16.msra.mxu0 0
        %2981 = vmatprep.subr.bf16.mxu0 0
        %2982 = vmatpush1.bf16.msra.mxu0 0
        %2983 = vmatprep.subr.bf16.mxu0 0
        %2984 = vmatpush1.bf16.msra.mxu0 0
        %2985 = vmatprep.subr.bf16.mxu0 0
        %2986 = vmatpush1.bf16.msra.mxu0 0
        %2987 = vmatprep.subr.bf16.mxu0 0
        %2988 = vmatpush1.bf16.msra.mxu0 0
        %2989 = vmatprep.subr.bf16.mxu0 0
        %2990 = vmatpush1.bf16.msra.mxu0 0
        %2991 = vmatprep.subr.bf16.mxu0 0
        %2992 = vmatpush1.bf16.msra.mxu0 0
        %2993 = vmatprep.mubr.bf16.mxu0 0
        %2994 = vmatmul.mubr.bf16.gmra.mrb[0].mxu0 %v662
        %v2995 = vpop.f32.mrb[0].mxu0
        %v2996 = vadd.f32 0.0, %v2995
        %v2997 = vpop.f32.mrb[0].mxu0
        %v2998 = vpop.f32.mrb[0].mxu0
        %v2999 = vpop.f32.mrb[0].mxu0
        %3000 = vdwg.mxu0
        %v3001 = vpack.c.bf16 %v2996, %v2996
        %v3002 = vmul.f32 %v708, %v2844
        %v3004 = vsel %vm392, %v3001, 0
        %3006 = vmatprep.subr.bf16.mxu0 0
        %3007 = vmatpush1.bf16.xpose.msra.mxu0 %v714
        %3008 = vmatprep.subr.bf16.mxu0 0
        %3009 = vmatpush1.bf16.xpose.msra.mxu0 0
        %3010 = vmatprep.subr.bf16.mxu0 0
        %3011 = vmatpush1.bf16.xpose.msra.mxu0 0
        %3012 = vmatprep.subr.bf16.mxu0 0
        %3013 = vmatpush1.bf16.xpose.msra.mxu0 0
        %3014 = vmatprep.subr.bf16.mxu0 0
        %3015 = vmatpush1.bf16.xpose.msra.mxu0 0
        %3016 = vmatprep.subr.bf16.mxu0 0
        %3017 = vmatpush1.bf16.xpose.msra.mxu0 0
        %3018 = vmatprep.subr.bf16.mxu0 0
        %3019 = vmatpush1.bf16.xpose.msra.mxu0 0
        %3020 = vmatprep.subr.bf16.mxu0 0
        %3021 = vmatpush1.bf16.xpose.msra.mxu0 0
        %3022 = vmatprep.subr.bf16.mxu0 0
        %3023 = vmatpush1.bf16.xpose.msra.mxu0 0
        %3024 = vmatprep.subr.bf16.mxu0 0
        %3025 = vmatpush1.bf16.xpose.msra.mxu0 0
        %3026 = vmatprep.subr.bf16.mxu0 0
        %3027 = vmatpush1.bf16.xpose.msra.mxu0 0
        %3028 = vmatprep.subr.bf16.mxu0 0
        %3029 = vmatpush1.bf16.xpose.msra.mxu0 0
        %3030 = vmatprep.subr.bf16.mxu0 0
        %3031 = vmatpush1.bf16.xpose.msra.mxu0 0
        %3032 = vmatprep.subr.bf16.mxu0 0
        %3033 = vmatpush1.bf16.xpose.msra.mxu0 0
        %3034 = vmatprep.subr.bf16.mxu0 0
        %3035 = vmatpush1.bf16.xpose.msra.mxu0 0
        %3036 = vmatprep.subr.bf16.mxu0 0
        %3037 = vmatpush1.bf16.xpose.msra.mxu0 0
        %3038 = vmatprep.mubr.bf16.mxu0 0
        %3039 = vmatmul.mubr.bf16.gmra.mrb[0].mxu0 %v3004
        %v3040 = vpop.f32.mrb[0].mxu0
        %v3041 = vadd.f32 %v3002, %v3040
        %v3042 = vpop.f32.mrb[0].mxu0
        %v3043 = vpop.f32.mrb[0].mxu0
        %v3044 = vpop.f32.mrb[0].mxu0
        %3045 = vdwg.mxu0
        %s3046 = scalar_lea.vmem %s332, 56 [#allocation7]
        %v3047 = vld [vmem:[%s3046] sm:$0xff]
        %v3048 = vmul.f32 %v757, %v3047
        %v3049 = vadd.f32 %v3041, %v3048
        %v3050 = vpack.c.bf16 %v3049, %v3049
        %3051 = vrot.lane.b32.xlu0 %v2783, 36
        %v3052 = vpop.permute.xlu0 %3051
        %v3054 = vsel %vm392, %v3050, 0
        %v3057 = vsel %vm396, %v3052, 0
        %3059 = vmatprep.subr.bf16.mxu0 0
        %3060 = vmatpush1.bf16.msra.mxu0 %v3057
        %3061 = vmatprep.subr.bf16.mxu0 0
        %3062 = vmatpush1.bf16.msra.mxu0 0
        %3063 = vmatprep.subr.bf16.mxu0 0
        %3064 = vmatpush1.bf16.msra.mxu0 0
        %3065 = vmatprep.subr.bf16.mxu0 0
        %3066 = vmatpush1.bf16.msra.mxu0 0
        %3067 = vmatprep.subr.bf16.mxu0 0
        %3068 = vmatpush1.bf16.msra.mxu0 0
        %3069 = vmatprep.subr.bf16.mxu0 0
        %3070 = vmatpush1.bf16.msra.mxu0 0
        %3071 = vmatprep.subr.bf16.mxu0 0
        %3072 = vmatpush1.bf16.msra.mxu0 0
        %3073 = vmatprep.subr.bf16.mxu0 0
        %3074 = vmatpush1.bf16.msra.mxu0 0
        %3075 = vmatprep.subr.bf16.mxu0 0
        %3076 = vmatpush1.bf16.msra.mxu0 0
        %3077 = vmatprep.subr.bf16.mxu0 0
        %3078 = vmatpush1.bf16.msra.mxu0 0
        %3079 = vmatprep.subr.bf16.mxu0 0
        %3080 = vmatpush1.bf16.msra.mxu0 0
        %3081 = vmatprep.subr.bf16.mxu0 0
        %3082 = vmatpush1.bf16.msra.mxu0 0
        %3083 = vmatprep.subr.bf16.mxu0 0
        %3084 = vmatpush1.bf16.msra.mxu0 0
        %3085 = vmatprep.subr.bf16.mxu0 0
        %3086 = vmatpush1.bf16.msra.mxu0 0
        %3087 = vmatprep.subr.bf16.mxu0 0
        %3088 = vmatpush1.bf16.msra.mxu0 0
        %3089 = vmatprep.subr.bf16.mxu0 0
        %3090 = vmatpush1.bf16.msra.mxu0 0
        %3091 = vmatprep.mubr.bf16.mxu0 0
        %3092 = vmatmul.mubr.bf16.gmra.mrb[0].mxu0 %v3054
        %v3093 = vpop.f32.mrb[0].mxu0
        %v3094 = vadd.f32 0.0, %v3093
        %v3095 = vpop.f32.mrb[0].mxu0
        %v3096 = vpop.f32.mrb[0].mxu0
        %v3097 = vpop.f32.mrb[0].mxu0
        %3098 = vdwg.mxu0
        %v3099 = vpack.c.bf16 %v3094, %v3094
        %v3101 = vunpack.c.l.b16 %v3099
        %v3102 = vpack.c.b16 %v3101, %v3101
        %3103 = vrot.lane.b32.xlu0 %v3102, 28
        %v3104 = vpop.permute.xlu0 %3103
        %vm3106 = vcmask 257248
        %3107 = vst.msk [vmem:[%s378] sm:$0xf] %vm3106, %v3104
        %s3108 = sand.u32 %s190, 1
        %s3109 = scalar_lea.sflag [#allocation4], %s3108
        %s3110 = sand.u32 %s190, 1
        %s3111 = smul.addr %s3110, 4
        %s3112 = scalar_lea.vmem [#allocation13], %s3111
        // Predicated region
        $region69: #{frequency_aware_sum_attention.4} parent=43 // pred_check
          %p3113 = pneg %p200
        $region70: #{frequency_aware_sum_attention.4} parent=43 // pred_check_branch
          %3115 = sbr.rel (%p3113) target = $region72
        $region71: #{frequency_aware_sum_attention.4} parent=43 // pred_region
          %s3117 = ssub.s32 64, 64
          %3118 = vsyncadd %s3109, %s3117
          %s3119 = smul.addr %s32, 4
          %s3120 = sadd.s32 %s33, %s3119
          %s3121 = smul.addr %s3120, 64
          %s3122 = scalar_lea.hbm %s6, %s3121
          %s3124 = sshll.u32 %s3112, 4
          %s3125 = int_to_ptr.vmem [resolvable:$true] %s3124
          %3127 = dma.vmem_to_hbm [thread:$0]  %s3125, 64, %s3122, %s3109
        $region72: #{frequency_aware_sum_attention.4} parent=43 // pred_fallthru
          _
      $region44: #{frequency_aware_sum_attention.4} parent=5 // pred_fallthru
        _
      %p3128 = scmp.le.s32.totalorder 2, %s23
      // Predicated region
      $region73: #{frequency_aware_sum_attention.4} parent=5 // pred_check
        %p3129 = pneg %p3128
      $region74: #{frequency_aware_sum_attention.4} parent=5 // pred_check_branch
        %3131 = sbr.rel (%p3129) target = $region76
      $region75: #{frequency_aware_sum_attention.4} parent=5 // pred_region
        %s3132 = ssub.s32 %s23, 2
        // Predicated region
        $region77: #{frequency_aware_sum_attention.4} parent=75 // pred_check
          %p3133 = pneg %p206
        $region78: #{frequency_aware_sum_attention.4} parent=75 // pred_check_branch
          %3135 = sbr.rel (%p3133) target = $region80
        $region79: #{frequency_aware_sum_attention.4} parent=75 // pred_region
          %s3136 = sand.u32 %s191, 1
          %s3137 = scalar_lea.sflag [#allocation4], %s3136
          %s3138 = sand.u32 %s191, 1
          %s3139 = smul.addr %s3138, 4
          %s3140 = scalar_lea.vmem [#allocation13], %s3139
          %3141 = dma.done %s3137, 64
        $region80: #{frequency_aware_sum_attention.4} parent=75 // pred_fallthru
          _
      $region76: #{frequency_aware_sum_attention.4} parent=5 // pred_fallthru
        _
    $region6: #{frequency_aware_sum_attention.4} parent=1 // loop_footer
      %s27 = sadd.s32 1, %s23
    $region7: #{frequency_aware_sum_attention.4} parent=1 // loop_footer_branch
      %22 = sbr.rel target = $region3
    $region8: #{frequency_aware_sum_attention.4} parent=1 // loop_exit
      _
    %3142 = vsyncpa [#allocation3], 1
    %s3143 = scalar_lea.sflag [#allocation3], 1
    %3144 = vsyncpa %s3143, 1
    %3145 = vsyncpa [#allocation8], 1
    %s3146 = scalar_lea.sflag [#allocation8], 1
    %3147 = vsyncpa %s3146, 1
    %3148 = vsyncpa [#allocation11], 1
    %3149 = vsyncpa [#allocation4], 1
    %s3150 = scalar_lea.sflag [#allocation4], 1
    %3151 = vsyncpa %s3150, 1
    %3152 = vsyncpa [#allocation5], 1
    %s3153 = scalar_lea.sflag [#allocation5], 1
    %3154 = vsyncpa %s3153, 1

</llo_original>
